<compile_context>
chip_gen: v5e
topology: v5e:2x2
jax: 0.10.0
libtpu: 0.0.40
codegen_flags: <defaults>
</compile_context>

<pallas_src>
import functools

import jax
import jax.numpy as jnp
from jax.experimental import pallas as pl
from jax.experimental.pallas import tpu as pltpu

GN_GROUPS = 32
GN_EPS = 1e-6
LN_EPS = 1e-5


# ----------------------------------------------------------------------------
# shared math (used inside the Pallas kernel AND by the pure-JAX reference)
# ----------------------------------------------------------------------------
def _group_norm_fm(x, g, b, n_groups):
    # x: (C, N) f32, groups are contiguous channel blocks. Centered two-pass.
    C, N = x.shape
    gs = C // n_groups
    npix = gs * N
    s1 = jnp.sum(x, axis=1, keepdims=True)                         # (C, 1)
    if gs == 1:
        mean_c = s1 / npix
    else:
        mean_g = jnp.sum(s1.reshape(n_groups, gs), axis=1, keepdims=True) / npix
        mean_c = jnp.repeat(mean_g, gs, axis=0)                    # (C, 1)
    xc = x - mean_c
    s2 = jnp.sum(xc * xc, axis=1, keepdims=True)                   # (C, 1)
    if gs == 1:
        var_c = s2 / npix
    else:
        var_g = jnp.sum(s2.reshape(n_groups, gs), axis=1, keepdims=True) / npix
        var_c = jnp.repeat(var_g, gs, axis=0)
    return xc * jax.lax.rsqrt(var_c + GN_EPS) * g + b


def _layer_norm_fm(x, g, b):
    # x: (D, N); normalize over the feature dim (axis 0). g/b: (D, 1).
    mu = jnp.mean(x, axis=0, keepdims=True)
    xc = x - mu
    var = jnp.mean(xc * xc, axis=0, keepdims=True)
    return xc * jax.lax.rsqrt(var + LN_EPS) * g + b


def _gelu_exact(x):
    # matches torch.nn.functional.gelu (erf formulation), kept in f32
    return 0.5 * x * (1.0 + jax.lax.erf(x * (2.0 ** -0.5)))


def _attention_fm(x_ln, w_qkv, wo, bo, n_heads, d_head, recip):
    # x_ln: (D, N) f32; w_qkv: (3D, D) bf16 (Q rows pre-scaled by d_head**-0.5);
    # wo: (D, D) bf16; bo: (D, 1) f32. PyTorch (out, in) weight layout.
    d_model, n_tok = x_ln.shape
    xb = x_ln.astype(jnp.bfloat16)
    qkv = jnp.dot(w_qkv, xb, preferred_element_type=jnp.float32)   # (3D, N) f32
    qh = qkv[:d_model].reshape(n_heads, d_head, n_tok)             # (H, dh, N)
    kh = qkv[d_model:2 * d_model].reshape(n_heads, d_head, n_tok)
    vh = qkv[2 * d_model:].reshape(n_heads, d_head, n_tok)

    # batched-head attention: minor-dims transpose on q only, then two
    # canonical batched contractions with bf16 MXU inputs, f32 accumulation.
    qt = jnp.transpose(qh, (0, 2, 1)).astype(jnp.bfloat16)         # (H, N, dh)
    sim = jnp.einsum("hqd,hdk->hqk", qt, kh.astype(jnp.bfloat16),
                     preferred_element_type=jnp.float32)           # (H, N, N) f32
    sim = sim - jnp.max(sim, axis=-1, keepdims=True)
    p = jnp.exp(sim)
    p = p * recip(jnp.sum(p, axis=-1, keepdims=True))
    o = jnp.einsum("hdk,hqk->hdq", vh.astype(jnp.bfloat16), p.astype(jnp.bfloat16),
                   preferred_element_type=jnp.float32)             # (H, dh, N)
    o = o.reshape(n_heads * d_head, n_tok)                         # (D, N)
    return jnp.dot(wo, o.astype(jnp.bfloat16),
                   preferred_element_type=jnp.float32) + bo


def _ff_geglu_fm(x_ln, w_gg, b_gg, w_ff2, b_ff2):
    # GEGLU feed-forward, feature-major: w_gg (2I, D), w_ff2 (D, I).
    xb = x_ln.astype(jnp.bfloat16)
    proj = jnp.dot(w_gg, xb, preferred_element_type=jnp.float32) + b_gg   # (2I, N)
    inner = proj.shape[0] // 2
    a, gate = proj[:inner], proj[inner:]
    hidden = a * _gelu_exact(gate)                                        # f32
    return jnp.dot(w_ff2, hidden.astype(jnp.bfloat16),
                   preferred_element_type=jnp.float32) + b_ff2


def _forward_featmaj(x, weights, n_heads, d_head, recip):
    """Full per-batch forward in feature-major layout. x: (C, N) f32."""
    (gn_g, gn_b, w_in, b_in,
     ln1_g, ln1_b, w_qkv1, wo1, bo1,
     ln2_g, ln2_b, w_qkv2, wo2, bo2,
     ln3_g, ln3_b, w_gg, b_gg, w_ff2, b_ff2,
     w_out, b_out) = weights

    # GroupNorm(32, eps=1e-6) with per-channel affine, computed in-kernel.
    xn = _group_norm_fm(x, gn_g, gn_b, GN_GROUPS)

    # proj_in: 1x1 conv == per-token linear (C -> D), feature-major 2D matmul.
    h = jnp.dot(w_in, xn.astype(jnp.bfloat16),
                preferred_element_type=jnp.float32) + b_in                # (D, N)

    # BasicTransformerBlock (context=None -> attn1 & attn2 are self-attention).
    h = h + _attention_fm(_layer_norm_fm(h, ln1_g, ln1_b),
                          w_qkv1, wo1, bo1, n_heads, d_head, recip)
    h = h + _attention_fm(_layer_norm_fm(h, ln2_g, ln2_b),
                          w_qkv2, wo2, bo2, n_heads, d_head, recip)
    h = h + _ff_geglu_fm(_layer_norm_fm(h, ln3_g, ln3_b),
                         w_gg, b_gg, w_ff2, b_ff2)

    # proj_out (zero-initialized 1x1 conv, D -> C) + residual with the input.
    out = jnp.dot(w_out, h.astype(jnp.bfloat16),
                  preferred_element_type=jnp.float32) + b_out
    return out + x


# ----------------------------------------------------------------------------
# Pallas kernel + wrapper
# ----------------------------------------------------------------------------
def spatial_transformer_kernel(*refs, n_heads, d_head):
    x_ref = refs[0]
    o_ref = refs[-1]
    weights = [r[...] for r in refs[1:-1]]
    out = _forward_featmaj(
        x_ref[0], weights, n_heads, d_head,
        recip=lambda v: pl.reciprocal(v, approx=True))
    o_ref[0] = out.astype(o_ref.dtype)


def _prep_weights(params, d_head):
    """Kernel operand list: matmul weights bf16 (Q/K/V fused, scale folded),
    norm affines / biases f32 in (d, 1) column layout."""
    f32 = lambda a: jnp.asarray(a, jnp.float32)
    bf16 = lambda a: jnp.asarray(a, jnp.float32).astype(jnp.bfloat16)
    scale = float(d_head) ** -0.5

    def qkv(wq, wk, wv):
        return bf16(jnp.concatenate([f32(wq) * scale, f32(wk), f32(wv)], axis=0))

    p = params
    return [
        f32(p["gn_g"]), f32(p["gn_b"]),
        bf16(p["w_in"]), f32(p["b_in"]),
        f32(p["ln1_g"]), f32(p["ln1_b"]),
        qkv(p["wq1"], p["wk1"], p["wv1"]), bf16(p["wo1"]), f32(p["bo1"]),
        f32(p["ln2_g"]), f32(p["ln2_b"]),
        qkv(p["wq2"], p["wk2"], p["wv2"]), bf16(p["wo2"]), f32(p["bo2"]),
        f32(p["ln3_g"]), f32(p["ln3_b"]),
        bf16(p["w_gg"]), f32(p["b_gg"]), bf16(p["w_ff2"]), f32(p["b_ff2"]),
        bf16(p["w_out"]), f32(p["b_out"]),
    ]


def _vmem_limit_bytes():
    # generation-aware: ~3/4 of physical VMEM, capped (v7x has only 64 MiB/TC).
    try:
        cap = int(pltpu.get_tpu_info().vmem_capacity_bytes)
    except Exception:
        cap = 64 << 20
    return max(32 << 20, min((cap * 3) // 4, 100 << 20))


def spatial_transformer(x_nchw, params, n_heads, d_head):
    B, C, H, W = x_nchw.shape
    N = H * W
    # feature-major slabs: pure reshape, no HBM transpose round-trip.
    x_cn = x_nchw.reshape(B, C, N).astype(jnp.float32)
    weights = _prep_weights(params, d_head)

    in_specs = [pl.BlockSpec((1, C, N), lambda b: (b, 0, 0))]
    for wt in weights:                       # all weights are 2D, constant index
        in_specs.append(pl.BlockSpec(wt.shape, lambda b: (0, 0)))

    out_cn = pl.pallas_call(
        functools.partial(spatial_transformer_kernel,
                          n_heads=n_heads, d_head=d_head),
        out_shape=jax.ShapeDtypeStruct((B, C, N), jnp.float32),
        grid_spec=pltpu.PrefetchScalarGridSpec(
            num_scalar_prefetch=0,
            grid=(B,),
            in_specs=in_specs,
            out_specs=pl.BlockSpec((1, C, N), lambda b: (b, 0, 0)),
        ),
        compiler_params=pltpu.CompilerParams(
            dimension_semantics=("parallel",),
            vmem_limit_bytes=_vmem_limit_bytes(),
        ),
    )(x_cn, *weights)

    return out_cn.reshape(B, C, H, W)


# ----------------------------------------------------------------------------
# parameter init (PyTorch (out, in) layout) + pure-JAX reference
# ----------------------------------------------------------------------------
def init_params(key, in_channels, n_heads, d_head):
    C = in_channels
    D = n_heads * d_head
    inner = 4 * D
    ks = jax.random.split(key, 16)

    def mat(k, dout, din, scale=0.02):
        return jax.random.normal(k, (dout, din), jnp.float32) * scale

    def bias(k, d, scale=0.02):
        return jax.random.normal(k, (d, 1), jnp.float32) * scale

    ones = lambda d: jnp.ones((d, 1), jnp.float32)
    zeros = lambda d: jnp.zeros((d, 1), jnp.float32)

    return {
        "gn_g": ones(C), "gn_b": zeros(C),
        "w_in": mat(ks[0], D, C), "b_in": bias(ks[1], D),
        "ln1_g": ones(D), "ln1_b": zeros(D),
        "wq1": mat(ks[2], D, D), "wk1": mat(ks[3], D, D), "wv1": mat(ks[4], D, D),
        "wo1": mat(ks[5], D, D), "bo1": bias(ks[6], D),
        "ln2_g": ones(D), "ln2_b": zeros(D),
        "wq2": mat(ks[7], D, D), "wk2": mat(ks[8], D, D), "wv2": mat(ks[9], D, D),
        "wo2": mat(ks[10], D, D), "bo2": bias(ks[11], D),
        "ln3_g": ones(D), "ln3_b": zeros(D),
        "w_gg": mat(ks[12], 2 * inner, D), "b_gg": bias(ks[13], 2 * inner),
        "w_ff2": mat(ks[14], D, inner), "b_ff2": bias(ks[15], D),
        # proj_out is zero_module()'d in the PyTorch __init__
        "w_out": jnp.zeros((C, D), jnp.float32), "b_out": zeros(C),
    }


def reference_forward(x_nchw, params, n_heads, d_head):
    B, C, H, W = x_nchw.shape
    N = H * W
    x_cn = x_nchw.reshape(B, C, N).astype(jnp.float32)
    weights = _prep_weights(params, d_head)
    outs = [_forward_featmaj(x_cn[b], weights, n_heads, d_head,
                             recip=lambda v: 1.0 / v)
            for b in range(B)]
    return jnp.stack(outs, axis=0).reshape(B, C, H, W)


if __name__ == "__main__":
    # SpatialTransformer(in_channels=32, n_heads=2, d_head=16, depth=1,
    #                    context_dim=None, use_linear=False)
    B, C, H, W = 2, 32, 8, 8              # GroupNorm(32) requires C % 32 == 0
    n_heads, d_head = 2, 16

    key = jax.random.PRNGKey(0)
    kx, kp, kw = jax.random.split(key, 3)
    x = jax.random.normal(kx, (B, C, H, W), jnp.float32)
    params = init_params(kp, C, n_heads, d_head)

    out = jax.block_until_ready(spatial_transformer(x, params, n_heads, d_head))
    assert out.shape == (B, C, H, W)
    # proj_out is zero-initialized, so the module output must equal its input.
    assert jnp.allclose(out, x, atol=1e-5, rtol=1e-5), "residual identity violated"

    # Exercise the transformer path too: non-zero proj_out vs. pure-JAX reference
    # using the same bf16-matmul / f32-elementwise policy.
    params_nz = dict(params)
    params_nz["w_out"] = jax.random.normal(kw, (C, n_heads * d_head), jnp.float32) * 0.02
    out_nz = jax.block_until_ready(spatial_transformer(x, params_nz, n_heads, d_head))
    ref_nz = reference_forward(x, params_nz, n_heads, d_head)
    assert jnp.allclose(out_nz, ref_nz, atol=2e-2, rtol=2e-2), (
        "kernel/reference mismatch, max abs diff = "
        f"{float(jnp.max(jnp.abs(out_nz - ref_nz)))}")

    print("KERNEL_OK")
</pallas_src>

<mosaic_0001>
module attributes {stable_mosaic.version = 11 : i64} {
  func.func @spatial_transformer_kernel(%arg0: i32, %arg1: memref<1x32x64xf32, #tpu.memory_space<vmem>>, %arg2: memref<32x1xf32, #tpu.memory_space<vmem>>, %arg3: memref<32x1xf32, #tpu.memory_space<vmem>>, %arg4: memref<32x32xbf16, #tpu.memory_space<vmem>>, %arg5: memref<32x1xf32, #tpu.memory_space<vmem>>, %arg6: memref<32x1xf32, #tpu.memory_space<vmem>>, %arg7: memref<32x1xf32, #tpu.memory_space<vmem>>, %arg8: memref<96x32xbf16, #tpu.memory_space<vmem>>, %arg9: memref<32x32xbf16, #tpu.memory_space<vmem>>, %arg10: memref<32x1xf32, #tpu.memory_space<vmem>>, %arg11: memref<32x1xf32, #tpu.memory_space<vmem>>, %arg12: memref<32x1xf32, #tpu.memory_space<vmem>>, %arg13: memref<96x32xbf16, #tpu.memory_space<vmem>>, %arg14: memref<32x32xbf16, #tpu.memory_space<vmem>>, %arg15: memref<32x1xf32, #tpu.memory_space<vmem>>, %arg16: memref<32x1xf32, #tpu.memory_space<vmem>>, %arg17: memref<32x1xf32, #tpu.memory_space<vmem>>, %arg18: memref<256x32xbf16, #tpu.memory_space<vmem>>, %arg19: memref<256x1xf32, #tpu.memory_space<vmem>>, %arg20: memref<32x128xbf16, #tpu.memory_space<vmem>>, %arg21: memref<32x1xf32, #tpu.memory_space<vmem>>, %arg22: memref<32x32xbf16, #tpu.memory_space<vmem>>, %arg23: memref<32x1xf32, #tpu.memory_space<vmem>>, %arg24: memref<1x32x64xf32, #tpu.memory_space<vmem>>) attributes {dimension_semantics = [#tpu.dimension_semantics<parallel>], iteration_bounds = array<i64: 2>, scalar_prefetch = 0 : i64, scratch_operands = 0 : i64, tpu.core_type = #tpu.core_type<tc>, window_params = [{transform_indices = @transform_0, window_bounds = array<i64: 1, 32, 64>}, {pipeline_mode = #tpu.pipeline_mode<synchronous>, transform_indices = @transform_1, window_bounds = array<i64: 32, 1>}, {pipeline_mode = #tpu.pipeline_mode<synchronous>, transform_indices = @transform_2, window_bounds = array<i64: 32, 1>}, {pipeline_mode = #tpu.pipeline_mode<synchronous>, transform_indices = @transform_3, window_bounds = array<i64: 32, 32>}, {pipeline_mode = #tpu.pipeline_mode<synchronous>, transform_indices = @transform_4, window_bounds = array<i64: 32, 1>}, {pipeline_mode = #tpu.pipeline_mode<synchronous>, transform_indices = @transform_5, window_bounds = array<i64: 32, 1>}, {pipeline_mode = #tpu.pipeline_mode<synchronous>, transform_indices = @transform_6, window_bounds = array<i64: 32, 1>}, {pipeline_mode = #tpu.pipeline_mode<synchronous>, transform_indices = @transform_7, window_bounds = array<i64: 96, 32>}, {pipeline_mode = #tpu.pipeline_mode<synchronous>, transform_indices = @transform_8, window_bounds = array<i64: 32, 32>}, {pipeline_mode = #tpu.pipeline_mode<synchronous>, transform_indices = @transform_9, window_bounds = array<i64: 32, 1>}, {pipeline_mode = #tpu.pipeline_mode<synchronous>, transform_indices = @transform_10, window_bounds = array<i64: 32, 1>}, {pipeline_mode = #tpu.pipeline_mode<synchronous>, transform_indices = @transform_11, window_bounds = array<i64: 32, 1>}, {pipeline_mode = #tpu.pipeline_mode<synchronous>, transform_indices = @transform_12, window_bounds = array<i64: 96, 32>}, {pipeline_mode = #tpu.pipeline_mode<synchronous>, transform_indices = @transform_13, window_bounds = array<i64: 32, 32>}, {pipeline_mode = #tpu.pipeline_mode<synchronous>, transform_indices = @transform_14, window_bounds = array<i64: 32, 1>}, {pipeline_mode = #tpu.pipeline_mode<synchronous>, transform_indices = @transform_15, window_bounds = array<i64: 32, 1>}, {pipeline_mode = #tpu.pipeline_mode<synchronous>, transform_indices = @transform_16, window_bounds = array<i64: 32, 1>}, {pipeline_mode = #tpu.pipeline_mode<synchronous>, transform_indices = @transform_17, window_bounds = array<i64: 256, 32>}, {pipeline_mode = #tpu.pipeline_mode<synchronous>, transform_indices = @transform_18, window_bounds = array<i64: 256, 1>}, {pipeline_mode = #tpu.pipeline_mode<synchronous>, transform_indices = @transform_19, window_bounds = array<i64: 32, 128>}, {pipeline_mode = #tpu.pipeline_mode<synchronous>, transform_indices = @transform_20, window_bounds = array<i64: 32, 1>}, {pipeline_mode = #tpu.pipeline_mode<synchronous>, transform_indices = @transform_21, window_bounds = array<i64: 32, 32>}, {pipeline_mode = #tpu.pipeline_mode<synchronous>, transform_indices = @transform_22, window_bounds = array<i64: 32, 1>}, {transform_indices = @transform_23, window_bounds = array<i64: 1, 32, 64>}]} {
    %c0 = arith.constant 0 : index
    %c0_0 = arith.constant 0 : index
    %0 = vector.load %arg2[%c0, %c0_0] : memref<32x1xf32, #tpu.memory_space<vmem>>, vector<32x1xf32>
    %c0_1 = arith.constant 0 : index
    %c0_2 = arith.constant 0 : index
    %1 = vector.load %arg3[%c0_1, %c0_2] : memref<32x1xf32, #tpu.memory_space<vmem>>, vector<32x1xf32>
    %c0_3 = arith.constant 0 : index
    %c0_4 = arith.constant 0 : index
    %2 = vector.load %arg4[%c0_3, %c0_4] : memref<32x32xbf16, #tpu.memory_space<vmem>>, vector<32x32xbf16>
    %c0_5 = arith.constant 0 : index
    %c0_6 = arith.constant 0 : index
    %3 = vector.load %arg5[%c0_5, %c0_6] : memref<32x1xf32, #tpu.memory_space<vmem>>, vector<32x1xf32>
    %c0_7 = arith.constant 0 : index
    %c0_8 = arith.constant 0 : index
    %4 = vector.load %arg6[%c0_7, %c0_8] : memref<32x1xf32, #tpu.memory_space<vmem>>, vector<32x1xf32>
    %c0_9 = arith.constant 0 : index
    %c0_10 = arith.constant 0 : index
    %5 = vector.load %arg7[%c0_9, %c0_10] : memref<32x1xf32, #tpu.memory_space<vmem>>, vector<32x1xf32>
    %c0_11 = arith.constant 0 : index
    %c0_12 = arith.constant 0 : index
    %6 = vector.load %arg8[%c0_11, %c0_12] : memref<96x32xbf16, #tpu.memory_space<vmem>>, vector<96x32xbf16>
    %c0_13 = arith.constant 0 : index
    %c0_14 = arith.constant 0 : index
    %7 = vector.load %arg9[%c0_13, %c0_14] : memref<32x32xbf16, #tpu.memory_space<vmem>>, vector<32x32xbf16>
    %c0_15 = arith.constant 0 : index
    %c0_16 = arith.constant 0 : index
    %8 = vector.load %arg10[%c0_15, %c0_16] : memref<32x1xf32, #tpu.memory_space<vmem>>, vector<32x1xf32>
    %c0_17 = arith.constant 0 : index
    %c0_18 = arith.constant 0 : index
    %9 = vector.load %arg11[%c0_17, %c0_18] : memref<32x1xf32, #tpu.memory_space<vmem>>, vector<32x1xf32>
    %c0_19 = arith.constant 0 : index
    %c0_20 = arith.constant 0 : index
    %10 = vector.load %arg12[%c0_19, %c0_20] : memref<32x1xf32, #tpu.memory_space<vmem>>, vector<32x1xf32>
    %c0_21 = arith.constant 0 : index
    %c0_22 = arith.constant 0 : index
    %11 = vector.load %arg13[%c0_21, %c0_22] : memref<96x32xbf16, #tpu.memory_space<vmem>>, vector<96x32xbf16>
    %c0_23 = arith.constant 0 : index
    %c0_24 = arith.constant 0 : index
    %12 = vector.load %arg14[%c0_23, %c0_24] : memref<32x32xbf16, #tpu.memory_space<vmem>>, vector<32x32xbf16>
    %c0_25 = arith.constant 0 : index
    %c0_26 = arith.constant 0 : index
    %13 = vector.load %arg15[%c0_25, %c0_26] : memref<32x1xf32, #tpu.memory_space<vmem>>, vector<32x1xf32>
    %c0_27 = arith.constant 0 : index
    %c0_28 = arith.constant 0 : index
    %14 = vector.load %arg16[%c0_27, %c0_28] : memref<32x1xf32, #tpu.memory_space<vmem>>, vector<32x1xf32>
    %c0_29 = arith.constant 0 : index
    %c0_30 = arith.constant 0 : index
    %15 = vector.load %arg17[%c0_29, %c0_30] : memref<32x1xf32, #tpu.memory_space<vmem>>, vector<32x1xf32>
    %c0_31 = arith.constant 0 : index
    %c0_32 = arith.constant 0 : index
    %16 = vector.load %arg18[%c0_31, %c0_32] : memref<256x32xbf16, #tpu.memory_space<vmem>>, vector<256x32xbf16>
    %c0_33 = arith.constant 0 : index
    %c0_34 = arith.constant 0 : index
    %17 = vector.load %arg19[%c0_33, %c0_34] : memref<256x1xf32, #tpu.memory_space<vmem>>, vector<256x1xf32>
    %c0_35 = arith.constant 0 : index
    %c0_36 = arith.constant 0 : index
    %18 = vector.load %arg20[%c0_35, %c0_36] : memref<32x128xbf16, #tpu.memory_space<vmem>>, vector<32x128xbf16>
    %c0_37 = arith.constant 0 : index
    %c0_38 = arith.constant 0 : index
    %19 = vector.load %arg21[%c0_37, %c0_38] : memref<32x1xf32, #tpu.memory_space<vmem>>, vector<32x1xf32>
    %c0_39 = arith.constant 0 : index
    %c0_40 = arith.constant 0 : index
    %20 = vector.load %arg22[%c0_39, %c0_40] : memref<32x32xbf16, #tpu.memory_space<vmem>>, vector<32x32xbf16>
    %c0_41 = arith.constant 0 : index
    %c0_42 = arith.constant 0 : index
    %21 = vector.load %arg23[%c0_41, %c0_42] : memref<32x1xf32, #tpu.memory_space<vmem>>, vector<32x1xf32>
    %c0_43 = arith.constant 0 : index
    %c0_44 = arith.constant 0 : index
    %c0_45 = arith.constant 0 : index
    %22 = vector.load %arg1[%c0_43, %c0_44, %c0_45] : memref<1x32x64xf32, #tpu.memory_space<vmem>>, vector<1x32x64xf32>
    %23 = vector.shape_cast %22 : vector<1x32x64xf32> to vector<32x64xf32>
    %cst = arith.constant dense<0.000000e+00> : vector<32xf32>
    %24 = vector.multi_reduction <add>, %23, %cst [1] : vector<32x64xf32> to vector<32xf32>
    %25 = vector.shape_cast %24 : vector<32xf32> to vector<32x1xf32>
    %cst_46 = arith.constant 6.400000e+01 : f32
    %26 = vector.broadcast %cst_46 : f32 to vector<32x1xf32>
    %27 = arith.divf %25, %26 : vector<32x1xf32>
    %28 = vector.broadcast %27 : vector<32x1xf32> to vector<32x64xf32>
    %29 = arith.subf %23, %28 : vector<32x64xf32>
    %30 = arith.mulf %29, %29 : vector<32x64xf32>
    %cst_47 = arith.constant dense<0.000000e+00> : vector<32xf32>
    %31 = vector.multi_reduction <add>, %30, %cst_47 [1] : vector<32x64xf32> to vector<32xf32>
    %32 = vector.shape_cast %31 : vector<32xf32> to vector<32x1xf32>
    %cst_48 = arith.constant 6.400000e+01 : f32
    %33 = vector.broadcast %cst_48 : f32 to vector<32x1xf32>
    %34 = arith.divf %32, %33 : vector<32x1xf32>
    %cst_49 = arith.constant 9.99999997E-7 : f32
    %35 = vector.broadcast %cst_49 : f32 to vector<32x1xf32>
    %36 = arith.addf %34, %35 : vector<32x1xf32>
    %37 = math.rsqrt %36 : vector<32x1xf32>
    %38 = vector.broadcast %37 : vector<32x1xf32> to vector<32x64xf32>
    %39 = arith.mulf %29, %38 : vector<32x64xf32>
    %40 = vector.broadcast %0 : vector<32x1xf32> to vector<32x64xf32>
    %41 = arith.mulf %39, %40 : vector<32x64xf32>
    %42 = vector.broadcast %1 : vector<32x1xf32> to vector<32x64xf32>
    %43 = arith.addf %41, %42 : vector<32x64xf32>
    %44 = arith.truncf %43 : vector<32x64xf32> to vector<32x64xbf16>
    %cst_50 = arith.constant dense<0.000000e+00> : vector<32x64xf32>
    %45 = tpu.matmul %2, %44, %cst_50 {dimension_numbers = #tpu.dot_dimension_numbers<[1], [0], [0], [1], [0, 0, 1, 1], [], []>} : vector<32x32xbf16>, vector<32x64xbf16>, vector<32x64xf32> -> vector<32x64xf32>
    %46 = vector.broadcast %3 : vector<32x1xf32> to vector<32x64xf32>
    %47 = arith.addf %45, %46 : vector<32x64xf32>
    %cst_51 = arith.constant dense<0.000000e+00> : vector<64xf32>
    %48 = vector.multi_reduction <add>, %47, %cst_51 [0] : vector<32x64xf32> to vector<64xf32>
    %49 = vector.shape_cast %48 : vector<64xf32> to vector<1x64xf32>
    %cst_52 = arith.constant 3.200000e+01 : f32
    %50 = vector.broadcast %cst_52 : f32 to vector<1x64xf32>
    %51 = arith.divf %49, %50 : vector<1x64xf32>
    %52 = vector.broadcast %51 : vector<1x64xf32> to vector<32x64xf32>
    %53 = arith.subf %47, %52 : vector<32x64xf32>
    %54 = arith.mulf %53, %53 : vector<32x64xf32>
    %cst_53 = arith.constant dense<0.000000e+00> : vector<64xf32>
    %55 = vector.multi_reduction <add>, %54, %cst_53 [0] : vector<32x64xf32> to vector<64xf32>
    %56 = vector.shape_cast %55 : vector<64xf32> to vector<1x64xf32>
    %cst_54 = arith.constant 3.200000e+01 : f32
    %57 = vector.broadcast %cst_54 : f32 to vector<1x64xf32>
    %58 = arith.divf %56, %57 : vector<1x64xf32>
    %cst_55 = arith.constant 9.99999974E-6 : f32
    %59 = vector.broadcast %cst_55 : f32 to vector<1x64xf32>
    %60 = arith.addf %58, %59 : vector<1x64xf32>
    %61 = math.rsqrt %60 : vector<1x64xf32>
    %62 = vector.broadcast %61 : vector<1x64xf32> to vector<32x64xf32>
    %63 = arith.mulf %53, %62 : vector<32x64xf32>
    %64 = vector.broadcast %4 : vector<32x1xf32> to vector<32x64xf32>
    %65 = arith.mulf %63, %64 : vector<32x64xf32>
    %66 = vector.broadcast %5 : vector<32x1xf32> to vector<32x64xf32>
    %67 = arith.addf %65, %66 : vector<32x64xf32>
    %68 = arith.truncf %67 : vector<32x64xf32> to vector<32x64xbf16>
    %cst_56 = arith.constant dense<0.000000e+00> : vector<96x64xf32>
    %69 = tpu.matmul %6, %68, %cst_56 {dimension_numbers = #tpu.dot_dimension_numbers<[1], [0], [0], [1], [0, 0, 1, 1], [], []>} : vector<96x32xbf16>, vector<32x64xbf16>, vector<96x64xf32> -> vector<96x64xf32>
    %70 = vector.extract_strided_slice %69 {offsets = [0, 0], sizes = [32, 64], strides = [1, 1]} : vector<96x64xf32> to vector<32x64xf32>
    %71 = vector.shape_cast %70 : vector<32x64xf32> to vector<2x16x64xf32>
    %72 = vector.extract_strided_slice %69 {offsets = [32, 0], sizes = [32, 64], strides = [1, 1]} : vector<96x64xf32> to vector<32x64xf32>
    %73 = vector.shape_cast %72 : vector<32x64xf32> to vector<2x16x64xf32>
    %74 = vector.extract_strided_slice %69 {offsets = [64, 0], sizes = [32, 64], strides = [1, 1]} : vector<96x64xf32> to vector<32x64xf32>
    %75 = vector.shape_cast %74 : vector<32x64xf32> to vector<2x16x64xf32>
    %76 = tpu.transpose %71, [0, 2, 1] : vector<2x16x64xf32> -> vector<2x64x16xf32>
    %77 = arith.truncf %76 : vector<2x64x16xf32> to vector<2x64x16xbf16>
    %78 = arith.truncf %73 : vector<2x16x64xf32> to vector<2x16x64xbf16>
    "tpu.trace_start"() <{level = 10 : i32, message = "hqd,hdk->hqk"}> : () -> ()
    %cst_57 = arith.constant dense<0.000000e+00> : vector<2x64x64xf32>
    %79 = tpu.matmul %77, %78, %cst_57 {dimension_numbers = #tpu.dot_dimension_numbers<[2], [1], [1], [2], [0, 0, 0, 1, 1, 2], [0], [0]>} : vector<2x64x16xbf16>, vector<2x16x64xbf16>, vector<2x64x64xf32> -> vector<2x64x64xf32>
    "tpu.trace_stop"() : () -> ()
    %cst_58 = arith.constant dense<0xFF800000> : vector<2x64xf32>
    %80 = vector.multi_reduction <maximumf>, %79, %cst_58 [2] : vector<2x64x64xf32> to vector<2x64xf32>
    %81 = vector.shape_cast %80 : vector<2x64xf32> to vector<2x64x1xf32>
    %82 = vector.broadcast %81 : vector<2x64x1xf32> to vector<2x64x64xf32>
    %83 = arith.subf %79, %82 : vector<2x64x64xf32>
    %84 = math.exp %83 : vector<2x64x64xf32>
    %cst_59 = arith.constant dense<0.000000e+00> : vector<2x64xf32>
    %85 = vector.multi_reduction <add>, %84, %cst_59 [2] : vector<2x64x64xf32> to vector<2x64xf32>
    %86 = vector.shape_cast %85 : vector<2x64xf32> to vector<2x64x1xf32>
    %87 = tpu.reciprocal %86 {approx = true} : vector<2x64x1xf32> -> vector<2x64x1xf32>
    %88 = vector.broadcast %87 : vector<2x64x1xf32> to vector<2x64x64xf32>
    %89 = arith.mulf %84, %88 : vector<2x64x64xf32>
    %90 = arith.truncf %75 : vector<2x16x64xf32> to vector<2x16x64xbf16>
    %91 = arith.truncf %89 : vector<2x64x64xf32> to vector<2x64x64xbf16>
    "tpu.trace_start"() <{level = 10 : i32, message = "hdk,hqk->hdq"}> : () -> ()
    %cst_60 = arith.constant dense<0.000000e+00> : vector<2x16x64xf32>
    %92 = tpu.matmul %90, %91, %cst_60 {dimension_numbers = #tpu.dot_dimension_numbers<[2], [2], [1], [1], [0, 0, 0, 1, 1, 1], [0], [0]>} : vector<2x16x64xbf16>, vector<2x64x64xbf16>, vector<2x16x64xf32> -> vector<2x16x64xf32>
    "tpu.trace_stop"() : () -> ()
    %93 = vector.shape_cast %92 : vector<2x16x64xf32> to vector<32x64xf32>
    %94 = arith.truncf %93 : vector<32x64xf32> to vector<32x64xbf16>
    %cst_61 = arith.constant dense<0.000000e+00> : vector<32x64xf32>
    %95 = tpu.matmul %7, %94, %cst_61 {dimension_numbers = #tpu.dot_dimension_numbers<[1], [0], [0], [1], [0, 0, 1, 1], [], []>} : vector<32x32xbf16>, vector<32x64xbf16>, vector<32x64xf32> -> vector<32x64xf32>
    %96 = vector.broadcast %8 : vector<32x1xf32> to vector<32x64xf32>
    %97 = arith.addf %95, %96 : vector<32x64xf32>
    %98 = arith.addf %47, %97 : vector<32x64xf32>
    %cst_62 = arith.constant dense<0.000000e+00> : vector<64xf32>
    %99 = vector.multi_reduction <add>, %98, %cst_62 [0] : vector<32x64xf32> to vector<64xf32>
    %100 = vector.shape_cast %99 : vector<64xf32> to vector<1x64xf32>
    %cst_63 = arith.constant 3.200000e+01 : f32
    %101 = vector.broadcast %cst_63 : f32 to vector<1x64xf32>
    %102 = arith.divf %100, %101 : vector<1x64xf32>
    %103 = vector.broadcast %102 : vector<1x64xf32> to vector<32x64xf32>
    %104 = arith.subf %98, %103 : vector<32x64xf32>
    %105 = arith.mulf %104, %104 : vector<32x64xf32>
    %cst_64 = arith.constant dense<0.000000e+00> : vector<64xf32>
    %106 = vector.multi_reduction <add>, %105, %cst_64 [0] : vector<32x64xf32> to vector<64xf32>
    %107 = vector.shape_cast %106 : vector<64xf32> to vector<1x64xf32>
    %cst_65 = arith.constant 3.200000e+01 : f32
    %108 = vector.broadcast %cst_65 : f32 to vector<1x64xf32>
    %109 = arith.divf %107, %108 : vector<1x64xf32>
    %cst_66 = arith.constant 9.99999974E-6 : f32
    %110 = vector.broadcast %cst_66 : f32 to vector<1x64xf32>
    %111 = arith.addf %109, %110 : vector<1x64xf32>
    %112 = math.rsqrt %111 : vector<1x64xf32>
    %113 = vector.broadcast %112 : vector<1x64xf32> to vector<32x64xf32>
    %114 = arith.mulf %104, %113 : vector<32x64xf32>
    %115 = vector.broadcast %9 : vector<32x1xf32> to vector<32x64xf32>
    %116 = arith.mulf %114, %115 : vector<32x64xf32>
    %117 = vector.broadcast %10 : vector<32x1xf32> to vector<32x64xf32>
    %118 = arith.addf %116, %117 : vector<32x64xf32>
    %119 = arith.truncf %118 : vector<32x64xf32> to vector<32x64xbf16>
    %cst_67 = arith.constant dense<0.000000e+00> : vector<96x64xf32>
    %120 = tpu.matmul %11, %119, %cst_67 {dimension_numbers = #tpu.dot_dimension_numbers<[1], [0], [0], [1], [0, 0, 1, 1], [], []>} : vector<96x32xbf16>, vector<32x64xbf16>, vector<96x64xf32> -> vector<96x64xf32>
    %121 = vector.extract_strided_slice %120 {offsets = [0, 0], sizes = [32, 64], strides = [1, 1]} : vector<96x64xf32> to vector<32x64xf32>
    %122 = vector.shape_cast %121 : vector<32x64xf32> to vector<2x16x64xf32>
    %123 = vector.extract_strided_slice %120 {offsets = [32, 0], sizes = [32, 64], strides = [1, 1]} : vector<96x64xf32> to vector<32x64xf32>
    %124 = vector.shape_cast %123 : vector<32x64xf32> to vector<2x16x64xf32>
    %125 = vector.extract_strided_slice %120 {offsets = [64, 0], sizes = [32, 64], strides = [1, 1]} : vector<96x64xf32> to vector<32x64xf32>
    %126 = vector.shape_cast %125 : vector<32x64xf32> to vector<2x16x64xf32>
    %127 = tpu.transpose %122, [0, 2, 1] : vector<2x16x64xf32> -> vector<2x64x16xf32>
    %128 = arith.truncf %127 : vector<2x64x16xf32> to vector<2x64x16xbf16>
    %129 = arith.truncf %124 : vector<2x16x64xf32> to vector<2x16x64xbf16>
    "tpu.trace_start"() <{level = 10 : i32, message = "hqd,hdk->hqk"}> : () -> ()
    %cst_68 = arith.constant dense<0.000000e+00> : vector<2x64x64xf32>
    %130 = tpu.matmul %128, %129, %cst_68 {dimension_numbers = #tpu.dot_dimension_numbers<[2], [1], [1], [2], [0, 0, 0, 1, 1, 2], [0], [0]>} : vector<2x64x16xbf16>, vector<2x16x64xbf16>, vector<2x64x64xf32> -> vector<2x64x64xf32>
    "tpu.trace_stop"() : () -> ()
    %cst_69 = arith.constant dense<0xFF800000> : vector<2x64xf32>
    %131 = vector.multi_reduction <maximumf>, %130, %cst_69 [2] : vector<2x64x64xf32> to vector<2x64xf32>
    %132 = vector.shape_cast %131 : vector<2x64xf32> to vector<2x64x1xf32>
    %133 = vector.broadcast %132 : vector<2x64x1xf32> to vector<2x64x64xf32>
    %134 = arith.subf %130, %133 : vector<2x64x64xf32>
    %135 = math.exp %134 : vector<2x64x64xf32>
    %cst_70 = arith.constant dense<0.000000e+00> : vector<2x64xf32>
    %136 = vector.multi_reduction <add>, %135, %cst_70 [2] : vector<2x64x64xf32> to vector<2x64xf32>
    %137 = vector.shape_cast %136 : vector<2x64xf32> to vector<2x64x1xf32>
    %138 = tpu.reciprocal %137 {approx = true} : vector<2x64x1xf32> -> vector<2x64x1xf32>
    %139 = vector.broadcast %138 : vector<2x64x1xf32> to vector<2x64x64xf32>
    %140 = arith.mulf %135, %139 : vector<2x64x64xf32>
    %141 = arith.truncf %126 : vector<2x16x64xf32> to vector<2x16x64xbf16>
    %142 = arith.truncf %140 : vector<2x64x64xf32> to vector<2x64x64xbf16>
    "tpu.trace_start"() <{level = 10 : i32, message = "hdk,hqk->hdq"}> : () -> ()
    %cst_71 = arith.constant dense<0.000000e+00> : vector<2x16x64xf32>
    %143 = tpu.matmul %141, %142, %cst_71 {dimension_numbers = #tpu.dot_dimension_numbers<[2], [2], [1], [1], [0, 0, 0, 1, 1, 1], [0], [0]>} : vector<2x16x64xbf16>, vector<2x64x64xbf16>, vector<2x16x64xf32> -> vector<2x16x64xf32>
    "tpu.trace_stop"() : () -> ()
    %144 = vector.shape_cast %143 : vector<2x16x64xf32> to vector<32x64xf32>
    %145 = arith.truncf %144 : vector<32x64xf32> to vector<32x64xbf16>
    %cst_72 = arith.constant dense<0.000000e+00> : vector<32x64xf32>
    %146 = tpu.matmul %12, %145, %cst_72 {dimension_numbers = #tpu.dot_dimension_numbers<[1], [0], [0], [1], [0, 0, 1, 1], [], []>} : vector<32x32xbf16>, vector<32x64xbf16>, vector<32x64xf32> -> vector<32x64xf32>
    %147 = vector.broadcast %13 : vector<32x1xf32> to vector<32x64xf32>
    %148 = arith.addf %146, %147 : vector<32x64xf32>
    %149 = arith.addf %98, %148 : vector<32x64xf32>
    %cst_73 = arith.constant dense<0.000000e+00> : vector<64xf32>
    %150 = vector.multi_reduction <add>, %149, %cst_73 [0] : vector<32x64xf32> to vector<64xf32>
    %151 = vector.shape_cast %150 : vector<64xf32> to vector<1x64xf32>
    %cst_74 = arith.constant 3.200000e+01 : f32
    %152 = vector.broadcast %cst_74 : f32 to vector<1x64xf32>
    %153 = arith.divf %151, %152 : vector<1x64xf32>
    %154 = vector.broadcast %153 : vector<1x64xf32> to vector<32x64xf32>
    %155 = arith.subf %149, %154 : vector<32x64xf32>
    %156 = arith.mulf %155, %155 : vector<32x64xf32>
    %cst_75 = arith.constant dense<0.000000e+00> : vector<64xf32>
    %157 = vector.multi_reduction <add>, %156, %cst_75 [0] : vector<32x64xf32> to vector<64xf32>
    %158 = vector.shape_cast %157 : vector<64xf32> to vector<1x64xf32>
    %cst_76 = arith.constant 3.200000e+01 : f32
    %159 = vector.broadcast %cst_76 : f32 to vector<1x64xf32>
    %160 = arith.divf %158, %159 : vector<1x64xf32>
    %cst_77 = arith.constant 9.99999974E-6 : f32
    %161 = vector.broadcast %cst_77 : f32 to vector<1x64xf32>
    %162 = arith.addf %160, %161 : vector<1x64xf32>
    %163 = math.rsqrt %162 : vector<1x64xf32>
    %164 = vector.broadcast %163 : vector<1x64xf32> to vector<32x64xf32>
    %165 = arith.mulf %155, %164 : vector<32x64xf32>
    %166 = vector.broadcast %14 : vector<32x1xf32> to vector<32x64xf32>
    %167 = arith.mulf %165, %166 : vector<32x64xf32>
    %168 = vector.broadcast %15 : vector<32x1xf32> to vector<32x64xf32>
    %169 = arith.addf %167, %168 : vector<32x64xf32>
    %170 = arith.truncf %169 : vector<32x64xf32> to vector<32x64xbf16>
    %cst_78 = arith.constant dense<0.000000e+00> : vector<256x64xf32>
    %171 = tpu.matmul %16, %170, %cst_78 {dimension_numbers = #tpu.dot_dimension_numbers<[1], [0], [0], [1], [0, 0, 1, 1], [], []>} : vector<256x32xbf16>, vector<32x64xbf16>, vector<256x64xf32> -> vector<256x64xf32>
    %172 = vector.broadcast %17 : vector<256x1xf32> to vector<256x64xf32>
    %173 = arith.addf %171, %172 : vector<256x64xf32>
    %174 = vector.extract_strided_slice %173 {offsets = [0, 0], sizes = [128, 64], strides = [1, 1]} : vector<256x64xf32> to vector<128x64xf32>
    %175 = vector.extract_strided_slice %173 {offsets = [128, 0], sizes = [128, 64], strides = [1, 1]} : vector<256x64xf32> to vector<128x64xf32>
    %cst_79 = arith.constant 5.000000e-01 : f32
    %176 = vector.broadcast %cst_79 : f32 to vector<128x64xf32>
    %177 = arith.mulf %176, %175 : vector<128x64xf32>
    %cst_80 = arith.constant 0.707106769 : f32
    %178 = vector.broadcast %cst_80 : f32 to vector<128x64xf32>
    %179 = arith.mulf %175, %178 : vector<128x64xf32>
    %180 = math.erf %179 : vector<128x64xf32>
    %cst_81 = arith.constant 1.000000e+00 : f32
    %181 = vector.broadcast %cst_81 : f32 to vector<128x64xf32>
    %182 = arith.addf %181, %180 : vector<128x64xf32>
    %183 = arith.mulf %177, %182 : vector<128x64xf32>
    %184 = arith.mulf %174, %183 : vector<128x64xf32>
    %185 = arith.truncf %184 : vector<128x64xf32> to vector<128x64xbf16>
    %cst_82 = arith.constant dense<0.000000e+00> : vector<32x64xf32>
    %186 = tpu.matmul %18, %185, %cst_82 {dimension_numbers = #tpu.dot_dimension_numbers<[1], [0], [0], [1], [0, 0, 1, 1], [], []>} : vector<32x128xbf16>, vector<128x64xbf16>, vector<32x64xf32> -> vector<32x64xf32>
    %187 = vector.broadcast %19 : vector<32x1xf32> to vector<32x64xf32>
    %188 = arith.addf %186, %187 : vector<32x64xf32>
    %189 = arith.addf %149, %188 : vector<32x64xf32>
    %190 = arith.truncf %189 : vector<32x64xf32> to vector<32x64xbf16>
    %cst_83 = arith.constant dense<0.000000e+00> : vector<32x64xf32>
    %191 = tpu.matmul %20, %190, %cst_83 {dimension_numbers = #tpu.dot_dimension_numbers<[1], [0], [0], [1], [0, 0, 1, 1], [], []>} : vector<32x32xbf16>, vector<32x64xbf16>, vector<32x64xf32> -> vector<32x64xf32>
    %192 = vector.broadcast %21 : vector<32x1xf32> to vector<32x64xf32>
    %193 = arith.addf %191, %192 : vector<32x64xf32>
    %194 = arith.addf %193, %23 : vector<32x64xf32>
    %c0_84 = arith.constant 0 : index
    %c0_85 = arith.constant 0 : index
    %c0_86 = arith.constant 0 : index
    %195 = vector.load %arg24[%c0_84, %c0_85, %c0_86] : memref<1x32x64xf32, #tpu.memory_space<vmem>>, vector<1x32x64xf32>
    %196 = vector.shape_cast %195 : vector<1x32x64xf32> to vector<32x64xf32>
    %197 = vector.shape_cast %194 : vector<32x64xf32> to vector<1x32x64xf32>
    tpu.vector_store %arg24[%c0_84, %c0_85, %c0_86], %197 {strides = array<i32>} : memref<1x32x64xf32, #tpu.memory_space<vmem>>, vector<1x32x64xf32>,
    return
  }
  func.func @transform_0(%arg0: i32) -> (i32, i32, i32) {
    %c0_i32 = arith.constant 0 : i32
    %c0_i32_0 = arith.constant 0 : i32
    %c0_i32_1 = arith.constant 0 : i32
    return %arg0, %c0_i32, %c0_i32_0 : i32, i32, i32
  }
  func.func @transform_1(%arg0: i32) -> (i32, i32) {
    %c0_i32 = arith.constant 0 : i32
    %c0_i32_0 = arith.constant 0 : i32
    %c0_i32_1 = arith.constant 0 : i32
    return %c0_i32, %c0_i32_0 : i32, i32
  }
  func.func @transform_2(%arg0: i32) -> (i32, i32) {
    %c0_i32 = arith.constant 0 : i32
    %c0_i32_0 = arith.constant 0 : i32
    %c0_i32_1 = arith.constant 0 : i32
    return %c0_i32, %c0_i32_0 : i32, i32
  }
  func.func @transform_3(%arg0: i32) -> (i32, i32) {
    %c0_i32 = arith.constant 0 : i32
    %c0_i32_0 = arith.constant 0 : i32
    %c0_i32_1 = arith.constant 0 : i32
    return %c0_i32, %c0_i32_0 : i32, i32
  }
  func.func @transform_4(%arg0: i32) -> (i32, i32) {
    %c0_i32 = arith.constant 0 : i32
    %c0_i32_0 = arith.constant 0 : i32
    %c0_i32_1 = arith.constant 0 : i32
    return %c0_i32, %c0_i32_0 : i32, i32
  }
  func.func @transform_5(%arg0: i32) -> (i32, i32) {
    %c0_i32 = arith.constant 0 : i32
    %c0_i32_0 = arith.constant 0 : i32
    %c0_i32_1 = arith.constant 0 : i32
    return %c0_i32, %c0_i32_0 : i32, i32
  }
  func.func @transform_6(%arg0: i32) -> (i32, i32) {
    %c0_i32 = arith.constant 0 : i32
    %c0_i32_0 = arith.constant 0 : i32
    %c0_i32_1 = arith.constant 0 : i32
    return %c0_i32, %c0_i32_0 : i32, i32
  }
  func.func @transform_7(%arg0: i32) -> (i32, i32) {
    %c0_i32 = arith.constant 0 : i32
    %c0_i32_0 = arith.constant 0 : i32
    %c0_i32_1 = arith.constant 0 : i32
    return %c0_i32, %c0_i32_0 : i32, i32
  }
  func.func @transform_8(%arg0: i32) -> (i32, i32) {
    %c0_i32 = arith.constant 0 : i32
    %c0_i32_0 = arith.constant 0 : i32
    %c0_i32_1 = arith.constant 0 : i32
    return %c0_i32, %c0_i32_0 : i32, i32
  }
  func.func @transform_9(%arg0: i32) -> (i32, i32) {
    %c0_i32 = arith.constant 0 : i32
    %c0_i32_0 = arith.constant 0 : i32
    %c0_i32_1 = arith.constant 0 : i32
    return %c0_i32, %c0_i32_0 : i32, i32
  }
  func.func @transform_10(%arg0: i32) -> (i32, i32) {
    %c0_i32 = arith.constant 0 : i32
    %c0_i32_0 = arith.constant 0 : i32
    %c0_i32_1 = arith.constant 0 : i32
    return %c0_i32, %c0_i32_0 : i32, i32
  }
  func.func @transform_11(%arg0: i32) -> (i32, i32) {
    %c0_i32 = arith.constant 0 : i32
    %c0_i32_0 = arith.constant 0 : i32
    %c0_i32_1 = arith.constant 0 : i32
    return %c0_i32, %c0_i32_0 : i32, i32
  }
  func.func @transform_12(%arg0: i32) -> (i32, i32) {
    %c0_i32 = arith.constant 0 : i32
    %c0_i32_0 = arith.constant 0 : i32
    %c0_i32_1 = arith.constant 0 : i32
    return %c0_i32, %c0_i32_0 : i32, i32
  }
  func.func @transform_13(%arg0: i32) -> (i32, i32) {
    %c0_i32 = arith.constant 0 : i32
    %c0_i32_0 = arith.constant 0 : i32
    %c0_i32_1 = arith.constant 0 : i32
    return %c0_i32, %c0_i32_0 : i32, i32
  }
  func.func @transform_14(%arg0: i32) -> (i32, i32) {
    %c0_i32 = arith.constant 0 : i32
    %c0_i32_0 = arith.constant 0 : i32
    %c0_i32_1 = arith.constant 0 : i32
    return %c0_i32, %c0_i32_0 : i32, i32
  }
  func.func @transform_15(%arg0: i32) -> (i32, i32) {
    %c0_i32 = arith.constant 0 : i32
    %c0_i32_0 = arith.constant 0 : i32
    %c0_i32_1 = arith.constant 0 : i32
    return %c0_i32, %c0_i32_0 : i32, i32
  }
  func.func @transform_16(%arg0: i32) -> (i32, i32) {
    %c0_i32 = arith.constant 0 : i32
    %c0_i32_0 = arith.constant 0 : i32
    %c0_i32_1 = arith.constant 0 : i32
    return %c0_i32, %c0_i32_0 : i32, i32
  }
  func.func @transform_17(%arg0: i32) -> (i32, i32) {
    %c0_i32 = arith.constant 0 : i32
    %c0_i32_0 = arith.constant 0 : i32
    %c0_i32_1 = arith.constant 0 : i32
    return %c0_i32, %c0_i32_0 : i32, i32
  }
  func.func @transform_18(%arg0: i32) -> (i32, i32) {
    %c0_i32 = arith.constant 0 : i32
    %c0_i32_0 = arith.constant 0 : i32
    %c0_i32_1 = arith.constant 0 : i32
    return %c0_i32, %c0_i32_0 : i32, i32
  }
  func.func @transform_19(%arg0: i32) -> (i32, i32) {
    %c0_i32 = arith.constant 0 : i32
    %c0_i32_0 = arith.constant 0 : i32
    %c0_i32_1 = arith.constant 0 : i32
    return %c0_i32, %c0_i32_0 : i32, i32
  }
  func.func @transform_20(%arg0: i32) -> (i32, i32) {
    %c0_i32 = arith.constant 0 : i32
    %c0_i32_0 = arith.constant 0 : i32
    %c0_i32_1 = arith.constant 0 : i32
    return %c0_i32, %c0_i32_0 : i32, i32
  }
  func.func @transform_21(%arg0: i32) -> (i32, i32) {
    %c0_i32 = arith.constant 0 : i32
    %c0_i32_0 = arith.constant 0 : i32
    %c0_i32_1 = arith.constant 0 : i32
    return %c0_i32, %c0_i32_0 : i32, i32
  }
  func.func @transform_22(%arg0: i32) -> (i32, i32) {
    %c0_i32 = arith.constant 0 : i32
    %c0_i32_0 = arith.constant 0 : i32
    %c0_i32_1 = arith.constant 0 : i32
    return %c0_i32, %c0_i32_0 : i32, i32
  }
  func.func @transform_23(%arg0: i32) -> (i32, i32, i32) {
    %c0_i32 = arith.constant 0 : i32
    %c0_i32_0 = arith.constant 0 : i32
    %c0_i32_1 = arith.constant 0 : i32
    return %arg0, %c0_i32, %c0_i32_0 : i32, i32, i32
  }
}

</mosaic_0001>

<llo_original>
// kernel: tpu_custom_call.1
$region0: #{tpu_custom_call.1}
  #allocation0 [shape = 'u32[]', space=smem, size = 0x4, offset = 0x4, fixed_abs, tag = 'smem constant byte address 0x4 - core index']
  #allocation1 [shape = 'u32[72,128]{1,0:T(1,128)}', space=vmem, size = 0x9000, scoped, tag = 'internal scratch']
  %s0 = inlined_call_operand.vmem [shape: f32[2,32,64], index: 0, kind: input, shape index: {}]
  %s1 = inlined_call_operand.vmem [shape: f32[32,1], index: 1, kind: input, shape index: {}]
  %s2 = inlined_call_operand.vmem [shape: f32[32,1], index: 2, kind: input, shape index: {}]
  %s3 = inlined_call_operand.vmem [shape: bf16[32,32], index: 3, kind: input, shape index: {}]
  %s4 = inlined_call_operand.vmem [shape: f32[32,1], index: 4, kind: input, shape index: {}]
  %s5 = inlined_call_operand.vmem [shape: f32[32,1], index: 5, kind: input, shape index: {}]
  %s6 = inlined_call_operand.vmem [shape: f32[32,1], index: 6, kind: input, shape index: {}]
  %s7 = inlined_call_operand.vmem [shape: bf16[96,32], index: 7, kind: input, shape index: {}]
  %s8 = inlined_call_operand.vmem [shape: bf16[32,32], index: 8, kind: input, shape index: {}]
  %s9 = inlined_call_operand.vmem [shape: f32[32,1], index: 9, kind: input, shape index: {}]
  %s10 = inlined_call_operand.vmem [shape: f32[32,1], index: 10, kind: input, shape index: {}]
  %s11 = inlined_call_operand.vmem [shape: f32[32,1], index: 11, kind: input, shape index: {}]
  %s12 = inlined_call_operand.vmem [shape: bf16[96,32], index: 12, kind: input, shape index: {}]
  %s13 = inlined_call_operand.vmem [shape: bf16[32,32], index: 13, kind: input, shape index: {}]
  %s14 = inlined_call_operand.vmem [shape: f32[32,1], index: 14, kind: input, shape index: {}]
  %s15 = inlined_call_operand.vmem [shape: f32[32,1], index: 15, kind: input, shape index: {}]
  %s16 = inlined_call_operand.vmem [shape: f32[32,1], index: 16, kind: input, shape index: {}]
  %s17 = inlined_call_operand.vmem [shape: bf16[256,32], index: 17, kind: input, shape index: {}]
  %s18 = inlined_call_operand.vmem [shape: f32[256,1], index: 18, kind: input, shape index: {}]
  %s19 = inlined_call_operand.vmem [shape: bf16[32,128], index: 19, kind: input, shape index: {}]
  %s20 = inlined_call_operand.vmem [shape: f32[32,1], index: 20, kind: input, shape index: {}]
  %s21 = inlined_call_operand.vmem [shape: bf16[32,32], index: 21, kind: input, shape index: {}]
  %s22 = inlined_call_operand.vmem [shape: f32[32,1], index: 22, kind: input, shape index: {}]
  %s23 = inlined_call_operand.hbm [shape: f32[2,32,64], index: 23, kind: output, shape index: {}]
  %s24 = sld [smem:[#allocation0]]
  $region125: #{tpu_custom_call.1} parent=0
    _
  %s26 = ssub.s32 1, %s24
  %s27 = scalar_select 0, %s26, %s24
  $region1: #{tpu_custom_call.1} parent=0
    #allocation2 [shape = 'u8[32768]{0}', space=vmem, size = 0x8000, scoped, tag = 'output window, operand 0']
    #allocation3 [shape = 's32[2]{0}', space=sflag, size = 0x8, scoped, tag = 'scoped memory for tpu_custom_call.1']
    %28 = vsyncpa [#allocation3], 0
    %s29 = scalar_lea.sflag [#allocation3], 1
    %30 = vsyncpa %s29, 0
    loop: start=0, step=1, limit=4
    $region2: #{tpu_custom_call.1} parent=1 // loop_pre_header
      _
    $region3: #{tpu_custom_call.1} parent=1 // loop_header
      %s32 = sphi 0, %s36
      %p33 = scmp.ge.s32.totalorder %s32, 4
      %s42 = sphi 0, %s44
      %s45 = sphi 0, %s42
      %s46 = sphi 0, %s45
      %s62 = sphi 0, %s46
      %s66 = sphi 0, %s66
      %s68 = sphi 0, %s66
      %s69 = sphi 0, %s68
      %s83 = sphi 0, %s69
      %s87 = sphi 0, %s87
      %s89 = sphi 0, %s87
      %s90 = sphi 0, %s89
      %s104 = sphi 0, %s90
      %s108 = sphi 0, %s108
      %s110 = sphi 0, %s108
      %s111 = sphi 0, %s110
      %s125 = sphi 0, %s111
      %s129 = sphi 0, %s129
      %s131 = sphi 0, %s129
      %s132 = sphi 0, %s131
      %s146 = sphi 0, %s132
      %s150 = sphi 0, %s150
      %s152 = sphi 0, %s150
      %s153 = sphi 0, %s152
      %s167 = sphi 0, %s153
      %s171 = sphi 0, %s171
      %s173 = sphi 0, %s171
      %s174 = sphi 0, %s173
      %s188 = sphi 0, %s174
      %s192 = sphi 0, %s192
      %s194 = sphi 0, %s192
      %s195 = sphi 0, %s194
      %s209 = sphi 0, %s195
      %s213 = sphi 0, %s213
      %s215 = sphi 0, %s213
      %s216 = sphi 0, %s215
      %s230 = sphi 0, %s216
      %s234 = sphi 0, %s234
      %s236 = sphi 0, %s234
      %s237 = sphi 0, %s236
      %s251 = sphi 0, %s237
      %s255 = sphi 0, %s255
      %s257 = sphi 0, %s255
      %s258 = sphi 0, %s257
      %s272 = sphi 0, %s258
      %s276 = sphi 0, %s276
      %s278 = sphi 0, %s276
      %s279 = sphi 0, %s278
      %s293 = sphi 0, %s279
      %s297 = sphi 0, %s297
      %s299 = sphi 0, %s297
      %s300 = sphi 0, %s299
      %s314 = sphi 0, %s300
      %s318 = sphi 0, %s318
      %s320 = sphi 0, %s318
      %s321 = sphi 0, %s320
      %s335 = sphi 0, %s321
      %s339 = sphi 0, %s339
      %s341 = sphi 0, %s339
      %s342 = sphi 0, %s341
      %s356 = sphi 0, %s342
      %s360 = sphi 0, %s360
      %s362 = sphi 0, %s360
      %s363 = sphi 0, %s362
      %s377 = sphi 0, %s363
      %s381 = sphi 0, %s381
      %s383 = sphi 0, %s381
      %s384 = sphi 0, %s383
      %s398 = sphi 0, %s384
      %s402 = sphi 0, %s402
      %s404 = sphi 0, %s402
      %s405 = sphi 0, %s404
      %s419 = sphi 0, %s405
      %s423 = sphi 0, %s423
      %s425 = sphi 0, %s423
      %s426 = sphi 0, %s425
      %s440 = sphi 0, %s426
      %s444 = sphi 0, %s444
      %s446 = sphi 0, %s444
      %s447 = sphi 0, %s446
      %s461 = sphi 0, %s447
      %s465 = sphi 0, %s465
      %s467 = sphi 0, %s465
      %s468 = sphi 0, %s467
      %s482 = sphi 0, %s468
      %s486 = sphi 0, %s486
      %s488 = sphi 0, %s486
      %s489 = sphi 0, %s488
      %s503 = sphi 0, %s489
      %s507 = sphi 0, %s507
      %s509 = sphi 0, %s507
      %s510 = sphi 0, %s509
      %s524 = sphi 0, %s510
      %s530 = sphi 0, %s532
      %s533 = sphi 0, %s530
      %s534 = sphi 0, %s533
      %s550 = sphi 0, %s534
    $region4: #{tpu_custom_call.1} parent=1 // loop_header_branch
      %35 = sbr.rel (%p33) target = $region8
    $region5: #{tpu_custom_call.1} parent=1 // loop_body
      %s37 = ssub.s32 %s32, 1
      %s38 = ssub.s32 %s32, 2
      %s39 = sadd.s32 %s32, 1
      %s40 = ssub.s32 %s32, %s39
      %p41 = scmp.eq.s32.totalorder %s40, 0
      %s43 = sadd.s32 %s42, 1
      %s44 = scalar_select %p41, %s42, %s43
      %p47 = pneg %p41
      %p48 = scmp.eq.s32.totalorder %s32, 1
      %p49 = por %p47, %p48
      %p50 = scmp.ne.s32.totalorder %s42, %s45
      %p51 = scmp.eq.s32.totalorder %s32, 0
      %p52 = por %p50, %p51
      %p53 = scmp.ne.s32.totalorder %s42, %s45
      %p54 = scmp.eq.s32.totalorder %s37, 1
      %p55 = por %p53, %p54
      %p56 = scmp.ne.s32.totalorder %s45, %s46
      %p57 = scmp.eq.s32.totalorder %s37, 0
      %p58 = por %p56, %p57
      %p59 = scmp.ne.s32.totalorder %s45, %s46
      %p60 = scmp.eq.s32.totalorder %s38, 1
      %p61 = por %p59, %p60
      %p63 = scmp.ne.s32.totalorder %s46, %s62
      %p64 = scmp.eq.s32.totalorder %s38, 0
      %p65 = por %p63, %p64
      %s67 = sadd.s32 %s66, 1
      %p70 = scmp.eq.s32.totalorder %s32, 1
      %p71 = scmp.ne.s32.totalorder %s66, %s68
      %p72 = scmp.eq.s32.totalorder %s32, 0
      %p73 = por %p71, %p72
      %p74 = scmp.ne.s32.totalorder %s66, %s68
      %p75 = scmp.eq.s32.totalorder %s37, 1
      %p76 = por %p74, %p75
      %p77 = scmp.ne.s32.totalorder %s68, %s69
      %p78 = scmp.eq.s32.totalorder %s37, 0
      %p79 = por %p77, %p78
      %p80 = scmp.ne.s32.totalorder %s68, %s69
      %p81 = scmp.eq.s32.totalorder %s38, 1
      %p82 = por %p80, %p81
      %p84 = scmp.ne.s32.totalorder %s69, %s83
      %p85 = scmp.eq.s32.totalorder %s38, 0
      %p86 = por %p84, %p85
      %s88 = sadd.s32 %s87, 1
      %p91 = scmp.eq.s32.totalorder %s32, 1
      %p92 = scmp.ne.s32.totalorder %s87, %s89
      %p93 = scmp.eq.s32.totalorder %s32, 0
      %p94 = por %p92, %p93
      %p95 = scmp.ne.s32.totalorder %s87, %s89
      %p96 = scmp.eq.s32.totalorder %s37, 1
      %p97 = por %p95, %p96
      %p98 = scmp.ne.s32.totalorder %s89, %s90
      %p99 = scmp.eq.s32.totalorder %s37, 0
      %p100 = por %p98, %p99
      %p101 = scmp.ne.s32.totalorder %s89, %s90
      %p102 = scmp.eq.s32.totalorder %s38, 1
      %p103 = por %p101, %p102
      %p105 = scmp.ne.s32.totalorder %s90, %s104
      %p106 = scmp.eq.s32.totalorder %s38, 0
      %p107 = por %p105, %p106
      %s109 = sadd.s32 %s108, 1
      %p112 = scmp.eq.s32.totalorder %s32, 1
      %p113 = scmp.ne.s32.totalorder %s108, %s110
      %p114 = scmp.eq.s32.totalorder %s32, 0
      %p115 = por %p113, %p114
      %p116 = scmp.ne.s32.totalorder %s108, %s110
      %p117 = scmp.eq.s32.totalorder %s37, 1
      %p118 = por %p116, %p117
      %p119 = scmp.ne.s32.totalorder %s110, %s111
      %p120 = scmp.eq.s32.totalorder %s37, 0
      %p121 = por %p119, %p120
      %p122 = scmp.ne.s32.totalorder %s110, %s111
      %p123 = scmp.eq.s32.totalorder %s38, 1
      %p124 = por %p122, %p123
      %p126 = scmp.ne.s32.totalorder %s111, %s125
      %p127 = scmp.eq.s32.totalorder %s38, 0
      %p128 = por %p126, %p127
      %s130 = sadd.s32 %s129, 1
      %p133 = scmp.eq.s32.totalorder %s32, 1
      %p134 = scmp.ne.s32.totalorder %s129, %s131
      %p135 = scmp.eq.s32.totalorder %s32, 0
      %p136 = por %p134, %p135
      %p137 = scmp.ne.s32.totalorder %s129, %s131
      %p138 = scmp.eq.s32.totalorder %s37, 1
      %p139 = por %p137, %p138
      %p140 = scmp.ne.s32.totalorder %s131, %s132
      %p141 = scmp.eq.s32.totalorder %s37, 0
      %p142 = por %p140, %p141
      %p143 = scmp.ne.s32.totalorder %s131, %s132
      %p144 = scmp.eq.s32.totalorder %s38, 1
      %p145 = por %p143, %p144
      %p147 = scmp.ne.s32.totalorder %s132, %s146
      %p148 = scmp.eq.s32.totalorder %s38, 0
      %p149 = por %p147, %p148
      %s151 = sadd.s32 %s150, 1
      %p154 = scmp.eq.s32.totalorder %s32, 1
      %p155 = scmp.ne.s32.totalorder %s150, %s152
      %p156 = scmp.eq.s32.totalorder %s32, 0
      %p157 = por %p155, %p156
      %p158 = scmp.ne.s32.totalorder %s150, %s152
      %p159 = scmp.eq.s32.totalorder %s37, 1
      %p160 = por %p158, %p159
      %p161 = scmp.ne.s32.totalorder %s152, %s153
      %p162 = scmp.eq.s32.totalorder %s37, 0
      %p163 = por %p161, %p162
      %p164 = scmp.ne.s32.totalorder %s152, %s153
      %p165 = scmp.eq.s32.totalorder %s38, 1
      %p166 = por %p164, %p165
      %p168 = scmp.ne.s32.totalorder %s153, %s167
      %p169 = scmp.eq.s32.totalorder %s38, 0
      %p170 = por %p168, %p169
      %s172 = sadd.s32 %s171, 1
      %p175 = scmp.eq.s32.totalorder %s32, 1
      %p176 = scmp.ne.s32.totalorder %s171, %s173
      %p177 = scmp.eq.s32.totalorder %s32, 0
      %p178 = por %p176, %p177
      %p179 = scmp.ne.s32.totalorder %s171, %s173
      %p180 = scmp.eq.s32.totalorder %s37, 1
      %p181 = por %p179, %p180
      %p182 = scmp.ne.s32.totalorder %s173, %s174
      %p183 = scmp.eq.s32.totalorder %s37, 0
      %p184 = por %p182, %p183
      %p185 = scmp.ne.s32.totalorder %s173, %s174
      %p186 = scmp.eq.s32.totalorder %s38, 1
      %p187 = por %p185, %p186
      %p189 = scmp.ne.s32.totalorder %s174, %s188
      %p190 = scmp.eq.s32.totalorder %s38, 0
      %p191 = por %p189, %p190
      %s193 = sadd.s32 %s192, 1
      %p196 = scmp.eq.s32.totalorder %s32, 1
      %p197 = scmp.ne.s32.totalorder %s192, %s194
      %p198 = scmp.eq.s32.totalorder %s32, 0
      %p199 = por %p197, %p198
      %p200 = scmp.ne.s32.totalorder %s192, %s194
      %p201 = scmp.eq.s32.totalorder %s37, 1
      %p202 = por %p200, %p201
      %p203 = scmp.ne.s32.totalorder %s194, %s195
      %p204 = scmp.eq.s32.totalorder %s37, 0
      %p205 = por %p203, %p204
      %p206 = scmp.ne.s32.totalorder %s194, %s195
      %p207 = scmp.eq.s32.totalorder %s38, 1
      %p208 = por %p206, %p207
      %p210 = scmp.ne.s32.totalorder %s195, %s209
      %p211 = scmp.eq.s32.totalorder %s38, 0
      %p212 = por %p210, %p211
      %s214 = sadd.s32 %s213, 1
      %p217 = scmp.eq.s32.totalorder %s32, 1
      %p218 = scmp.ne.s32.totalorder %s213, %s215
      %p219 = scmp.eq.s32.totalorder %s32, 0
      %p220 = por %p218, %p219
      %p221 = scmp.ne.s32.totalorder %s213, %s215
      %p222 = scmp.eq.s32.totalorder %s37, 1
      %p223 = por %p221, %p222
      %p224 = scmp.ne.s32.totalorder %s215, %s216
      %p225 = scmp.eq.s32.totalorder %s37, 0
      %p226 = por %p224, %p225
      %p227 = scmp.ne.s32.totalorder %s215, %s216
      %p228 = scmp.eq.s32.totalorder %s38, 1
      %p229 = por %p227, %p228
      %p231 = scmp.ne.s32.totalorder %s216, %s230
      %p232 = scmp.eq.s32.totalorder %s38, 0
      %p233 = por %p231, %p232
      %s235 = sadd.s32 %s234, 1
      %p238 = scmp.eq.s32.totalorder %s32, 1
      %p239 = scmp.ne.s32.totalorder %s234, %s236
      %p240 = scmp.eq.s32.totalorder %s32, 0
      %p241 = por %p239, %p240
      %p242 = scmp.ne.s32.totalorder %s234, %s236
      %p243 = scmp.eq.s32.totalorder %s37, 1
      %p244 = por %p242, %p243
      %p245 = scmp.ne.s32.totalorder %s236, %s237
      %p246 = scmp.eq.s32.totalorder %s37, 0
      %p247 = por %p245, %p246
      %p248 = scmp.ne.s32.totalorder %s236, %s237
      %p249 = scmp.eq.s32.totalorder %s38, 1
      %p250 = por %p248, %p249
      %p252 = scmp.ne.s32.totalorder %s237, %s251
      %p253 = scmp.eq.s32.totalorder %s38, 0
      %p254 = por %p252, %p253
      %s256 = sadd.s32 %s255, 1
      %p259 = scmp.eq.s32.totalorder %s32, 1
      %p260 = scmp.ne.s32.totalorder %s255, %s257
      %p261 = scmp.eq.s32.totalorder %s32, 0
      %p262 = por %p260, %p261
      %p263 = scmp.ne.s32.totalorder %s255, %s257
      %p264 = scmp.eq.s32.totalorder %s37, 1
      %p265 = por %p263, %p264
      %p266 = scmp.ne.s32.totalorder %s257, %s258
      %p267 = scmp.eq.s32.totalorder %s37, 0
      %p268 = por %p266, %p267
      %p269 = scmp.ne.s32.totalorder %s257, %s258
      %p270 = scmp.eq.s32.totalorder %s38, 1
      %p271 = por %p269, %p270
      %p273 = scmp.ne.s32.totalorder %s258, %s272
      %p274 = scmp.eq.s32.totalorder %s38, 0
      %p275 = por %p273, %p274
      %s277 = sadd.s32 %s276, 1
      %p280 = scmp.eq.s32.totalorder %s32, 1
      %p281 = scmp.ne.s32.totalorder %s276, %s278
      %p282 = scmp.eq.s32.totalorder %s32, 0
      %p283 = por %p281, %p282
      %p284 = scmp.ne.s32.totalorder %s276, %s278
      %p285 = scmp.eq.s32.totalorder %s37, 1
      %p286 = por %p284, %p285
      %p287 = scmp.ne.s32.totalorder %s278, %s279
      %p288 = scmp.eq.s32.totalorder %s37, 0
      %p289 = por %p287, %p288
      %p290 = scmp.ne.s32.totalorder %s278, %s279
      %p291 = scmp.eq.s32.totalorder %s38, 1
      %p292 = por %p290, %p291
      %p294 = scmp.ne.s32.totalorder %s279, %s293
      %p295 = scmp.eq.s32.totalorder %s38, 0
      %p296 = por %p294, %p295
      %s298 = sadd.s32 %s297, 1
      %p301 = scmp.eq.s32.totalorder %s32, 1
      %p302 = scmp.ne.s32.totalorder %s297, %s299
      %p303 = scmp.eq.s32.totalorder %s32, 0
      %p304 = por %p302, %p303
      %p305 = scmp.ne.s32.totalorder %s297, %s299
      %p306 = scmp.eq.s32.totalorder %s37, 1
      %p307 = por %p305, %p306
      %p308 = scmp.ne.s32.totalorder %s299, %s300
      %p309 = scmp.eq.s32.totalorder %s37, 0
      %p310 = por %p308, %p309
      %p311 = scmp.ne.s32.totalorder %s299, %s300
      %p312 = scmp.eq.s32.totalorder %s38, 1
      %p313 = por %p311, %p312
      %p315 = scmp.ne.s32.totalorder %s300, %s314
      %p316 = scmp.eq.s32.totalorder %s38, 0
      %p317 = por %p315, %p316
      %s319 = sadd.s32 %s318, 1
      %p322 = scmp.eq.s32.totalorder %s32, 1
      %p323 = scmp.ne.s32.totalorder %s318, %s320
      %p324 = scmp.eq.s32.totalorder %s32, 0
      %p325 = por %p323, %p324
      %p326 = scmp.ne.s32.totalorder %s318, %s320
      %p327 = scmp.eq.s32.totalorder %s37, 1
      %p328 = por %p326, %p327
      %p329 = scmp.ne.s32.totalorder %s320, %s321
      %p330 = scmp.eq.s32.totalorder %s37, 0
      %p331 = por %p329, %p330
      %p332 = scmp.ne.s32.totalorder %s320, %s321
      %p333 = scmp.eq.s32.totalorder %s38, 1
      %p334 = por %p332, %p333
      %p336 = scmp.ne.s32.totalorder %s321, %s335
      %p337 = scmp.eq.s32.totalorder %s38, 0
      %p338 = por %p336, %p337
      %s340 = sadd.s32 %s339, 1
      %p343 = scmp.eq.s32.totalorder %s32, 1
      %p344 = scmp.ne.s32.totalorder %s339, %s341
      %p345 = scmp.eq.s32.totalorder %s32, 0
      %p346 = por %p344, %p345
      %p347 = scmp.ne.s32.totalorder %s339, %s341
      %p348 = scmp.eq.s32.totalorder %s37, 1
      %p349 = por %p347, %p348
      %p350 = scmp.ne.s32.totalorder %s341, %s342
      %p351 = scmp.eq.s32.totalorder %s37, 0
      %p352 = por %p350, %p351
      %p353 = scmp.ne.s32.totalorder %s341, %s342
      %p354 = scmp.eq.s32.totalorder %s38, 1
      %p355 = por %p353, %p354
      %p357 = scmp.ne.s32.totalorder %s342, %s356
      %p358 = scmp.eq.s32.totalorder %s38, 0
      %p359 = por %p357, %p358
      %s361 = sadd.s32 %s360, 1
      %p364 = scmp.eq.s32.totalorder %s32, 1
      %p365 = scmp.ne.s32.totalorder %s360, %s362
      %p366 = scmp.eq.s32.totalorder %s32, 0
      %p367 = por %p365, %p366
      %p368 = scmp.ne.s32.totalorder %s360, %s362
      %p369 = scmp.eq.s32.totalorder %s37, 1
      %p370 = por %p368, %p369
      %p371 = scmp.ne.s32.totalorder %s362, %s363
      %p372 = scmp.eq.s32.totalorder %s37, 0
      %p373 = por %p371, %p372
      %p374 = scmp.ne.s32.totalorder %s362, %s363
      %p375 = scmp.eq.s32.totalorder %s38, 1
      %p376 = por %p374, %p375
      %p378 = scmp.ne.s32.totalorder %s363, %s377
      %p379 = scmp.eq.s32.totalorder %s38, 0
      %p380 = por %p378, %p379
      %s382 = sadd.s32 %s381, 1
      %p385 = scmp.eq.s32.totalorder %s32, 1
      %p386 = scmp.ne.s32.totalorder %s381, %s383
      %p387 = scmp.eq.s32.totalorder %s32, 0
      %p388 = por %p386, %p387
      %p389 = scmp.ne.s32.totalorder %s381, %s383
      %p390 = scmp.eq.s32.totalorder %s37, 1
      %p391 = por %p389, %p390
      %p392 = scmp.ne.s32.totalorder %s383, %s384
      %p393 = scmp.eq.s32.totalorder %s37, 0
      %p394 = por %p392, %p393
      %p395 = scmp.ne.s32.totalorder %s383, %s384
      %p396 = scmp.eq.s32.totalorder %s38, 1
      %p397 = por %p395, %p396
      %p399 = scmp.ne.s32.totalorder %s384, %s398
      %p400 = scmp.eq.s32.totalorder %s38, 0
      %p401 = por %p399, %p400
      %s403 = sadd.s32 %s402, 1
      %p406 = scmp.eq.s32.totalorder %s32, 1
      %p407 = scmp.ne.s32.totalorder %s402, %s404
      %p408 = scmp.eq.s32.totalorder %s32, 0
      %p409 = por %p407, %p408
      %p410 = scmp.ne.s32.totalorder %s402, %s404
      %p411 = scmp.eq.s32.totalorder %s37, 1
      %p412 = por %p410, %p411
      %p413 = scmp.ne.s32.totalorder %s404, %s405
      %p414 = scmp.eq.s32.totalorder %s37, 0
      %p415 = por %p413, %p414
      %p416 = scmp.ne.s32.totalorder %s404, %s405
      %p417 = scmp.eq.s32.totalorder %s38, 1
      %p418 = por %p416, %p417
      %p420 = scmp.ne.s32.totalorder %s405, %s419
      %p421 = scmp.eq.s32.totalorder %s38, 0
      %p422 = por %p420, %p421
      %s424 = sadd.s32 %s423, 1
      %p427 = scmp.eq.s32.totalorder %s32, 1
      %p428 = scmp.ne.s32.totalorder %s423, %s425
      %p429 = scmp.eq.s32.totalorder %s32, 0
      %p430 = por %p428, %p429
      %p431 = scmp.ne.s32.totalorder %s423, %s425
      %p432 = scmp.eq.s32.totalorder %s37, 1
      %p433 = por %p431, %p432
      %p434 = scmp.ne.s32.totalorder %s425, %s426
      %p435 = scmp.eq.s32.totalorder %s37, 0
      %p436 = por %p434, %p435
      %p437 = scmp.ne.s32.totalorder %s425, %s426
      %p438 = scmp.eq.s32.totalorder %s38, 1
      %p439 = por %p437, %p438
      %p441 = scmp.ne.s32.totalorder %s426, %s440
      %p442 = scmp.eq.s32.totalorder %s38, 0
      %p443 = por %p441, %p442
      %s445 = sadd.s32 %s444, 1
      %p448 = scmp.eq.s32.totalorder %s32, 1
      %p449 = scmp.ne.s32.totalorder %s444, %s446
      %p450 = scmp.eq.s32.totalorder %s32, 0
      %p451 = por %p449, %p450
      %p452 = scmp.ne.s32.totalorder %s444, %s446
      %p453 = scmp.eq.s32.totalorder %s37, 1
      %p454 = por %p452, %p453
      %p455 = scmp.ne.s32.totalorder %s446, %s447
      %p456 = scmp.eq.s32.totalorder %s37, 0
      %p457 = por %p455, %p456
      %p458 = scmp.ne.s32.totalorder %s446, %s447
      %p459 = scmp.eq.s32.totalorder %s38, 1
      %p460 = por %p458, %p459
      %p462 = scmp.ne.s32.totalorder %s447, %s461
      %p463 = scmp.eq.s32.totalorder %s38, 0
      %p464 = por %p462, %p463
      %s466 = sadd.s32 %s465, 1
      %p469 = scmp.eq.s32.totalorder %s32, 1
      %p470 = scmp.ne.s32.totalorder %s465, %s467
      %p471 = scmp.eq.s32.totalorder %s32, 0
      %p472 = por %p470, %p471
      %p473 = scmp.ne.s32.totalorder %s465, %s467
      %p474 = scmp.eq.s32.totalorder %s37, 1
      %p475 = por %p473, %p474
      %p476 = scmp.ne.s32.totalorder %s467, %s468
      %p477 = scmp.eq.s32.totalorder %s37, 0
      %p478 = por %p476, %p477
      %p479 = scmp.ne.s32.totalorder %s467, %s468
      %p480 = scmp.eq.s32.totalorder %s38, 1
      %p481 = por %p479, %p480
      %p483 = scmp.ne.s32.totalorder %s468, %s482
      %p484 = scmp.eq.s32.totalorder %s38, 0
      %p485 = por %p483, %p484
      %s487 = sadd.s32 %s486, 1
      %p490 = scmp.eq.s32.totalorder %s32, 1
      %p491 = scmp.ne.s32.totalorder %s486, %s488
      %p492 = scmp.eq.s32.totalorder %s32, 0
      %p493 = por %p491, %p492
      %p494 = scmp.ne.s32.totalorder %s486, %s488
      %p495 = scmp.eq.s32.totalorder %s37, 1
      %p496 = por %p494, %p495
      %p497 = scmp.ne.s32.totalorder %s488, %s489
      %p498 = scmp.eq.s32.totalorder %s37, 0
      %p499 = por %p497, %p498
      %p500 = scmp.ne.s32.totalorder %s488, %s489
      %p501 = scmp.eq.s32.totalorder %s38, 1
      %p502 = por %p500, %p501
      %p504 = scmp.ne.s32.totalorder %s489, %s503
      %p505 = scmp.eq.s32.totalorder %s38, 0
      %p506 = por %p504, %p505
      %s508 = sadd.s32 %s507, 1
      %p511 = scmp.eq.s32.totalorder %s32, 1
      %p512 = scmp.ne.s32.totalorder %s507, %s509
      %p513 = scmp.eq.s32.totalorder %s32, 0
      %p514 = por %p512, %p513
      %p515 = scmp.ne.s32.totalorder %s507, %s509
      %p516 = scmp.eq.s32.totalorder %s37, 1
      %p517 = por %p515, %p516
      %p518 = scmp.ne.s32.totalorder %s509, %s510
      %p519 = scmp.eq.s32.totalorder %s37, 0
      %p520 = por %p518, %p519
      %p521 = scmp.ne.s32.totalorder %s509, %s510
      %p522 = scmp.eq.s32.totalorder %s38, 1
      %p523 = por %p521, %p522
      %p525 = scmp.ne.s32.totalorder %s510, %s524
      %p526 = scmp.eq.s32.totalorder %s38, 0
      %p527 = por %p525, %p526
      %s528 = ssub.s32 %s32, %s39
      %p529 = scmp.eq.s32.totalorder %s528, 0
      %s531 = sadd.s32 %s530, 1
      %s532 = scalar_select %p529, %s530, %s531
      %p535 = pneg %p529
      %p536 = scmp.eq.s32.totalorder %s32, 1
      %p537 = por %p535, %p536
      %p538 = scmp.ne.s32.totalorder %s530, %s533
      %p539 = scmp.eq.s32.totalorder %s32, 0
      %p540 = por %p538, %p539
      %p541 = scmp.ne.s32.totalorder %s530, %s533
      %p542 = scmp.eq.s32.totalorder %s37, 1
      %p543 = por %p541, %p542
      %p544 = scmp.ne.s32.totalorder %s533, %s534
      %p545 = scmp.eq.s32.totalorder %s37, 0
      %p546 = por %p544, %p545
      %p547 = scmp.ne.s32.totalorder %s533, %s534
      %p548 = scmp.eq.s32.totalorder %s38, 1
      %p549 = por %p547, %p548
      %p551 = scmp.ne.s32.totalorder %s534, %s550
      %p552 = scmp.eq.s32.totalorder %s38, 0
      %p553 = por %p551, %p552
      %p554 = scmp.le.s32.totalorder 1, %s32
      %p555 = scmp.lt.s32.totalorder %s32, 3
      %p556 = pnand %p554, %p555
      %p557 = pneg %p556
      // Predicated region
      $region9: #{tpu_custom_call.1} parent=5 // pred_check
        _
      $region10: #{tpu_custom_call.1} parent=5 // pred_check_branch
        %559 = sbr.rel (%p556) target = $region12
      $region11: #{tpu_custom_call.1} parent=5 // pred_region
        %s560 = ssub.s32 %s32, 1
        // Predicated region
        $region13: #{tpu_custom_call.1} parent=11 // pred_check
          %p561 = pneg %p79
        $region14: #{tpu_custom_call.1} parent=11 // pred_check_branch
          %563 = sbr.rel (%p561) target = $region16
        $region15: #{tpu_custom_call.1} parent=11 // pred_region
          _
        $region16: #{tpu_custom_call.1} parent=11 // pred_fallthru
          _
        // Predicated region
        $region17: #{tpu_custom_call.1} parent=11 // pred_check
          %p564 = pneg %p100
        $region18: #{tpu_custom_call.1} parent=11 // pred_check_branch
          %566 = sbr.rel (%p564) target = $region20
        $region19: #{tpu_custom_call.1} parent=11 // pred_region
          _
        $region20: #{tpu_custom_call.1} parent=11 // pred_fallthru
          _
        // Predicated region
        $region21: #{tpu_custom_call.1} parent=11 // pred_check
          %p567 = pneg %p121
        $region22: #{tpu_custom_call.1} parent=11 // pred_check_branch
          %569 = sbr.rel (%p567) target = $region24
        $region23: #{tpu_custom_call.1} parent=11 // pred_region
          _
        $region24: #{tpu_custom_call.1} parent=11 // pred_fallthru
          _
        // Predicated region
        $region25: #{tpu_custom_call.1} parent=11 // pred_check
          %p570 = pneg %p142
        $region26: #{tpu_custom_call.1} parent=11 // pred_check_branch
          %572 = sbr.rel (%p570) target = $region28
        $region27: #{tpu_custom_call.1} parent=11 // pred_region
          _
        $region28: #{tpu_custom_call.1} parent=11 // pred_fallthru
          _
        // Predicated region
        $region29: #{tpu_custom_call.1} parent=11 // pred_check
          %p573 = pneg %p163
        $region30: #{tpu_custom_call.1} parent=11 // pred_check_branch
          %575 = sbr.rel (%p573) target = $region32
        $region31: #{tpu_custom_call.1} parent=11 // pred_region
          _
        $region32: #{tpu_custom_call.1} parent=11 // pred_fallthru
          _
        // Predicated region
        $region33: #{tpu_custom_call.1} parent=11 // pred_check
          %p576 = pneg %p184
        $region34: #{tpu_custom_call.1} parent=11 // pred_check_branch
          %578 = sbr.rel (%p576) target = $region36
        $region35: #{tpu_custom_call.1} parent=11 // pred_region
          _
        $region36: #{tpu_custom_call.1} parent=11 // pred_fallthru
          _
        // Predicated region
        $region37: #{tpu_custom_call.1} parent=11 // pred_check
          %p579 = pneg %p205
        $region38: #{tpu_custom_call.1} parent=11 // pred_check_branch
          %581 = sbr.rel (%p579) target = $region40
        $region39: #{tpu_custom_call.1} parent=11 // pred_region
          _
        $region40: #{tpu_custom_call.1} parent=11 // pred_fallthru
          _
        // Predicated region
        $region41: #{tpu_custom_call.1} parent=11 // pred_check
          %p582 = pneg %p226
        $region42: #{tpu_custom_call.1} parent=11 // pred_check_branch
          %584 = sbr.rel (%p582) target = $region44
        $region43: #{tpu_custom_call.1} parent=11 // pred_region
          _
        $region44: #{tpu_custom_call.1} parent=11 // pred_fallthru
          _
        // Predicated region
        $region45: #{tpu_custom_call.1} parent=11 // pred_check
          %p585 = pneg %p247
        $region46: #{tpu_custom_call.1} parent=11 // pred_check_branch
          %587 = sbr.rel (%p585) target = $region48
        $region47: #{tpu_custom_call.1} parent=11 // pred_region
          _
        $region48: #{tpu_custom_call.1} parent=11 // pred_fallthru
          _
        // Predicated region
        $region49: #{tpu_custom_call.1} parent=11 // pred_check
          %p588 = pneg %p268
        $region50: #{tpu_custom_call.1} parent=11 // pred_check_branch
          %590 = sbr.rel (%p588) target = $region52
        $region51: #{tpu_custom_call.1} parent=11 // pred_region
          _
        $region52: #{tpu_custom_call.1} parent=11 // pred_fallthru
          _
        // Predicated region
        $region53: #{tpu_custom_call.1} parent=11 // pred_check
          %p591 = pneg %p289
        $region54: #{tpu_custom_call.1} parent=11 // pred_check_branch
          %593 = sbr.rel (%p591) target = $region56
        $region55: #{tpu_custom_call.1} parent=11 // pred_region
          _
        $region56: #{tpu_custom_call.1} parent=11 // pred_fallthru
          _
        // Predicated region
        $region57: #{tpu_custom_call.1} parent=11 // pred_check
          %p594 = pneg %p310
        $region58: #{tpu_custom_call.1} parent=11 // pred_check_branch
          %596 = sbr.rel (%p594) target = $region60
        $region59: #{tpu_custom_call.1} parent=11 // pred_region
          _
        $region60: #{tpu_custom_call.1} parent=11 // pred_fallthru
          _
        // Predicated region
        $region61: #{tpu_custom_call.1} parent=11 // pred_check
          %p597 = pneg %p331
        $region62: #{tpu_custom_call.1} parent=11 // pred_check_branch
          %599 = sbr.rel (%p597) target = $region64
        $region63: #{tpu_custom_call.1} parent=11 // pred_region
          _
        $region64: #{tpu_custom_call.1} parent=11 // pred_fallthru
          _
        // Predicated region
        $region65: #{tpu_custom_call.1} parent=11 // pred_check
          %p600 = pneg %p352
        $region66: #{tpu_custom_call.1} parent=11 // pred_check_branch
          %602 = sbr.rel (%p600) target = $region68
        $region67: #{tpu_custom_call.1} parent=11 // pred_region
          _
        $region68: #{tpu_custom_call.1} parent=11 // pred_fallthru
          _
        // Predicated region
        $region69: #{tpu_custom_call.1} parent=11 // pred_check
          %p603 = pneg %p373
        $region70: #{tpu_custom_call.1} parent=11 // pred_check_branch
          %605 = sbr.rel (%p603) target = $region72
        $region71: #{tpu_custom_call.1} parent=11 // pred_region
          _
        $region72: #{tpu_custom_call.1} parent=11 // pred_fallthru
          _
        // Predicated region
        $region73: #{tpu_custom_call.1} parent=11 // pred_check
          %p606 = pneg %p394
        $region74: #{tpu_custom_call.1} parent=11 // pred_check_branch
          %608 = sbr.rel (%p606) target = $region76
        $region75: #{tpu_custom_call.1} parent=11 // pred_region
          _
        $region76: #{tpu_custom_call.1} parent=11 // pred_fallthru
          _
        // Predicated region
        $region77: #{tpu_custom_call.1} parent=11 // pred_check
          %p609 = pneg %p415
        $region78: #{tpu_custom_call.1} parent=11 // pred_check_branch
          %611 = sbr.rel (%p609) target = $region80
        $region79: #{tpu_custom_call.1} parent=11 // pred_region
          _
        $region80: #{tpu_custom_call.1} parent=11 // pred_fallthru
          _
        // Predicated region
        $region81: #{tpu_custom_call.1} parent=11 // pred_check
          %p612 = pneg %p436
        $region82: #{tpu_custom_call.1} parent=11 // pred_check_branch
          %614 = sbr.rel (%p612) target = $region84
        $region83: #{tpu_custom_call.1} parent=11 // pred_region
          _
        $region84: #{tpu_custom_call.1} parent=11 // pred_fallthru
          _
        // Predicated region
        $region85: #{tpu_custom_call.1} parent=11 // pred_check
          %p615 = pneg %p457
        $region86: #{tpu_custom_call.1} parent=11 // pred_check_branch
          %617 = sbr.rel (%p615) target = $region88
        $region87: #{tpu_custom_call.1} parent=11 // pred_region
          _
        $region88: #{tpu_custom_call.1} parent=11 // pred_fallthru
          _
        // Predicated region
        $region89: #{tpu_custom_call.1} parent=11 // pred_check
          %p618 = pneg %p478
        $region90: #{tpu_custom_call.1} parent=11 // pred_check_branch
          %620 = sbr.rel (%p618) target = $region92
        $region91: #{tpu_custom_call.1} parent=11 // pred_region
          _
        $region92: #{tpu_custom_call.1} parent=11 // pred_fallthru
          _
        // Predicated region
        $region93: #{tpu_custom_call.1} parent=11 // pred_check
          %p621 = pneg %p499
        $region94: #{tpu_custom_call.1} parent=11 // pred_check_branch
          %623 = sbr.rel (%p621) target = $region96
        $region95: #{tpu_custom_call.1} parent=11 // pred_region
          _
        $region96: #{tpu_custom_call.1} parent=11 // pred_fallthru
          _
        // Predicated region
        $region97: #{tpu_custom_call.1} parent=11 // pred_check
          %p624 = pneg %p520
        $region98: #{tpu_custom_call.1} parent=11 // pred_check_branch
          %626 = sbr.rel (%p624) target = $region100
        $region99: #{tpu_custom_call.1} parent=11 // pred_region
          _
        $region100: #{tpu_custom_call.1} parent=11 // pred_fallthru
          _
      $region12: #{tpu_custom_call.1} parent=5 // pred_fallthru
        _
      %p627 = scmp.lt.s32.totalorder %s32, 2
      // Predicated region
      $region101: #{tpu_custom_call.1} parent=5 // pred_check
        %p628 = pneg %p627
      $region102: #{tpu_custom_call.1} parent=5 // pred_check_branch
        %630 = sbr.rel (%p628) target = $region104
      $region103: #{tpu_custom_call.1} parent=5 // pred_region
        // Predicated region
        $region105: #{tpu_custom_call.1} parent=103 // pred_check
          %p631 = pneg %p52
        $region106: #{tpu_custom_call.1} parent=103 // pred_check_branch
          %633 = sbr.rel (%p631) target = $region108
        $region107: #{tpu_custom_call.1} parent=103 // pred_region
          %p634 = scmp.lt.s32.totalorder %s32, 1
          %s635 = scalar_select %p634, %s32, 1
          %s636 = smul.addr %s635, 4
          %s637 = smul.addr %s636, 8
          %s638 = scalar_lea.vmem %s0, %s637
        $region108: #{tpu_custom_call.1} parent=103 // pred_fallthru
          _
      $region104: #{tpu_custom_call.1} parent=5 // pred_fallthru
        _
      %p639 = scmp.le.s32.totalorder 1, %s32
      %p640 = scmp.lt.s32.totalorder %s32, 3
      %p641 = pnand %p639, %p640
      %p642 = pneg %p641
      // Predicated region
      $region109: #{tpu_custom_call.1} parent=5 // pred_check
        _
      $region110: #{tpu_custom_call.1} parent=5 // pred_check_branch
        %644 = sbr.rel (%p641) target = $region112
      $region111: #{tpu_custom_call.1} parent=5 // pred_region
        %s645 = ssub.s32 %s32, 1
        %p646 = scmp.lt.s32.totalorder %s37, 1
        %s647 = scalar_select %p646, %s37, 1
        %s648 = smul.addr %s647, 4
        %s649 = smul.addr %s648, 8
        %s650 = scalar_lea.vmem %s0, %s649
        %p651 = pneg %p58
        %p652 = pneg %p55
        %p653 = pneg %p79
        %p654 = pneg %p76
        %p655 = pneg %p100
        %p656 = pneg %p97
        %p657 = pneg %p121
        %p658 = pneg %p118
        %p659 = pneg %p142
        %p660 = pneg %p139
        %p661 = pneg %p163
        %p662 = pneg %p160
        %p663 = pneg %p184
        %p664 = pneg %p181
        %p665 = pneg %p205
        %p666 = pneg %p202
        %p667 = pneg %p226
        %p668 = pneg %p223
        %p669 = pneg %p247
        %p670 = pneg %p244
        %p671 = pneg %p268
        %p672 = pneg %p265
        %p673 = pneg %p289
        %p674 = pneg %p286
        %p675 = pneg %p310
        %p676 = pneg %p307
        %p677 = pneg %p331
        %p678 = pneg %p328
        %p679 = pneg %p352
        %p680 = pneg %p349
        %p681 = pneg %p373
        %p682 = pneg %p370
        %p683 = pneg %p394
        %p684 = pneg %p391
        %p685 = pneg %p415
        %p686 = pneg %p412
        %p687 = pneg %p436
        %p688 = pneg %p433
        %p689 = pneg %p457
        %p690 = pneg %p454
        %p691 = pneg %p478
        %p692 = pneg %p475
        %p693 = pneg %p499
        %p694 = pneg %p496
        %p695 = pneg %p520
        %p696 = pneg %p517
        %p697 = pneg %p546
        %p698 = pneg %p543
        %s699 = sand.u32 %s533, 1
        %s700 = scalar_lea.sflag [#allocation3], %s699
        %s701 = sand.u32 %s533, 1
        %s702 = smul.addr %s701, 32
        %s703 = scalar_lea.vmem [#allocation2], %s702
        %p704 = scmp.lt.s32.totalorder %s37, 1
        %s705 = scalar_select %p704, %s37, 1
        %s706 = smul.addr %s705, 4
        %s707 = smul.addr %s706, 8
        %s708 = scalar_lea.vmem %s0, %s707
        %v710 = vld [vmem:[%s1] sm:$0xff]
        %v711 = vld [vmem:[%s1 + $0x8] sm:$0xff]
        %v712 = vld [vmem:[%s1 + $0x10] sm:$0xff]
        %v713 = vld [vmem:[%s1 + $0x18] sm:$0xff]
        %v714 = vld [vmem:[%s2] sm:$0xff]
        %v715 = vld [vmem:[%s2 + $0x8] sm:$0xff]
        %v716 = vld [vmem:[%s2 + $0x10] sm:$0xff]
        %v717 = vld [vmem:[%s2 + $0x18] sm:$0xff]
        %v718 = vld [vmem:[%s3] sm:$0xf]
        %v719 = vld [vmem:[%s3 + $0x4] sm:$0xf]
        %v720 = vld [vmem:[%s3 + $0x8] sm:$0xf]
        %v721 = vld [vmem:[%s3 + $0xc] sm:$0xf]
        %v722 = vld [vmem:[%s4] sm:$0xff]
        %v723 = vld [vmem:[%s4 + $0x8] sm:$0xff]
        %v724 = vld [vmem:[%s4 + $0x10] sm:$0xff]
        %v725 = vld [vmem:[%s4 + $0x18] sm:$0xff]
        %v726 = vld [vmem:[%s5] sm:$0xff]
        %v727 = vld [vmem:[%s5 + $0x8] sm:$0xff]
        %v728 = vld [vmem:[%s5 + $0x10] sm:$0xff]
        %v729 = vld [vmem:[%s5 + $0x18] sm:$0xff]
        %v730 = vld [vmem:[%s6] sm:$0xff]
        %v731 = vld [vmem:[%s6 + $0x8] sm:$0xff]
        %v732 = vld [vmem:[%s6 + $0x10] sm:$0xff]
        %v733 = vld [vmem:[%s6 + $0x18] sm:$0xff]
        %v734 = vld [vmem:[%s7] sm:$0xf]
        %v735 = vld [vmem:[%s7 + $0x4] sm:$0xf]
        %v736 = vld [vmem:[%s7 + $0x8] sm:$0xf]
        %v737 = vld [vmem:[%s7 + $0xc] sm:$0xf]
        %v738 = vld [vmem:[%s7 + $0x10] sm:$0xf]
        %v739 = vld [vmem:[%s7 + $0x14] sm:$0xf]
        %v740 = vld [vmem:[%s7 + $0x18] sm:$0xf]
        %v741 = vld [vmem:[%s7 + $0x1c] sm:$0xf]
        %v742 = vld [vmem:[%s7 + $0x20] sm:$0xf]
        %v743 = vld [vmem:[%s7 + $0x24] sm:$0xf]
        %v744 = vld [vmem:[%s7 + $0x28] sm:$0xf]
        %v745 = vld [vmem:[%s7 + $0x2c] sm:$0xf]
        %v746 = vld [vmem:[%s8] sm:$0xf]
        %v747 = vld [vmem:[%s8 + $0x4] sm:$0xf]
        %v748 = vld [vmem:[%s8 + $0x8] sm:$0xf]
        %v749 = vld [vmem:[%s8 + $0xc] sm:$0xf]
        %v750 = vld [vmem:[%s9] sm:$0xff]
        %v751 = vld [vmem:[%s9 + $0x8] sm:$0xff]
        %v752 = vld [vmem:[%s9 + $0x10] sm:$0xff]
        %v753 = vld [vmem:[%s9 + $0x18] sm:$0xff]
        %v754 = vld [vmem:[%s10] sm:$0xff]
        %v755 = vld [vmem:[%s10 + $0x8] sm:$0xff]
        %v756 = vld [vmem:[%s10 + $0x10] sm:$0xff]
        %v757 = vld [vmem:[%s10 + $0x18] sm:$0xff]
        %v758 = vld [vmem:[%s11] sm:$0xff]
        %v759 = vld [vmem:[%s11 + $0x8] sm:$0xff]
        %v760 = vld [vmem:[%s11 + $0x10] sm:$0xff]
        %v761 = vld [vmem:[%s11 + $0x18] sm:$0xff]
        %v762 = vld [vmem:[%s12] sm:$0xf]
        %v763 = vld [vmem:[%s12 + $0x4] sm:$0xf]
        %v764 = vld [vmem:[%s12 + $0x8] sm:$0xf]
        %v765 = vld [vmem:[%s12 + $0xc] sm:$0xf]
        %v766 = vld [vmem:[%s12 + $0x10] sm:$0xf]
        %v767 = vld [vmem:[%s12 + $0x14] sm:$0xf]
        %v768 = vld [vmem:[%s12 + $0x18] sm:$0xf]
        %v769 = vld [vmem:[%s12 + $0x1c] sm:$0xf]
        %v770 = vld [vmem:[%s12 + $0x20] sm:$0xf]
        %v771 = vld [vmem:[%s12 + $0x24] sm:$0xf]
        %v772 = vld [vmem:[%s12 + $0x28] sm:$0xf]
        %v773 = vld [vmem:[%s12 + $0x2c] sm:$0xf]
        %v774 = vld [vmem:[%s13] sm:$0xf]
        %v775 = vld [vmem:[%s13 + $0x4] sm:$0xf]
        %v776 = vld [vmem:[%s13 + $0x8] sm:$0xf]
        %v777 = vld [vmem:[%s13 + $0xc] sm:$0xf]
        %v778 = vld [vmem:[%s14] sm:$0xff]
        %v779 = vld [vmem:[%s14 + $0x8] sm:$0xff]
        %v780 = vld [vmem:[%s14 + $0x10] sm:$0xff]
        %v781 = vld [vmem:[%s14 + $0x18] sm:$0xff]
        %v782 = vld [vmem:[%s15] sm:$0xff]
        %v783 = vld [vmem:[%s15 + $0x8] sm:$0xff]
        %v784 = vld [vmem:[%s15 + $0x10] sm:$0xff]
        %v785 = vld [vmem:[%s15 + $0x18] sm:$0xff]
        %v786 = vld [vmem:[%s16] sm:$0xff]
        %v787 = vld [vmem:[%s16 + $0x8] sm:$0xff]
        %v788 = vld [vmem:[%s16 + $0x10] sm:$0xff]
        %v789 = vld [vmem:[%s16 + $0x18] sm:$0xff]
        %v790 = vld [vmem:[%s17] sm:$0xf]
        %v791 = vld [vmem:[%s17 + $0x4] sm:$0xf]
        %v792 = vld [vmem:[%s17 + $0x8] sm:$0xf]
        %v793 = vld [vmem:[%s17 + $0xc] sm:$0xf]
        %v794 = vld [vmem:[%s17 + $0x10] sm:$0xf]
        %v795 = vld [vmem:[%s17 + $0x14] sm:$0xf]
        %v796 = vld [vmem:[%s17 + $0x18] sm:$0xf]
        %v797 = vld [vmem:[%s17 + $0x1c] sm:$0xf]
        %v798 = vld [vmem:[%s17 + $0x20] sm:$0xf]
        %v799 = vld [vmem:[%s17 + $0x24] sm:$0xf]
        %v800 = vld [vmem:[%s17 + $0x28] sm:$0xf]
        %v801 = vld [vmem:[%s17 + $0x2c] sm:$0xf]
        %v802 = vld [vmem:[%s17 + $0x30] sm:$0xf]
        %v803 = vld [vmem:[%s17 + $0x34] sm:$0xf]
        %v804 = vld [vmem:[%s17 + $0x38] sm:$0xf]
        %v805 = vld [vmem:[%s17 + $0x3c] sm:$0xf]
        %v806 = vld [vmem:[%s17 + $0x40] sm:$0xf]
        %v807 = vld [vmem:[%s17 + $0x44] sm:$0xf]
        %v808 = vld [vmem:[%s17 + $0x48] sm:$0xf]
        %v809 = vld [vmem:[%s17 + $0x4c] sm:$0xf]
        %v810 = vld [vmem:[%s17 + $0x50] sm:$0xf]
        %v811 = vld [vmem:[%s17 + $0x54] sm:$0xf]
        %v812 = vld [vmem:[%s17 + $0x58] sm:$0xf]
        %v813 = vld [vmem:[%s17 + $0x5c] sm:$0xf]
        %v814 = vld [vmem:[%s17 + $0x60] sm:$0xf]
        %v815 = vld [vmem:[%s17 + $0x64] sm:$0xf]
        %v816 = vld [vmem:[%s17 + $0x68] sm:$0xf]
        %v817 = vld [vmem:[%s17 + $0x6c] sm:$0xf]
        %v818 = vld [vmem:[%s17 + $0x70] sm:$0xf]
        %v819 = vld [vmem:[%s17 + $0x74] sm:$0xf]
        %v820 = vld [vmem:[%s17 + $0x78] sm:$0xf]
        %v821 = vld [vmem:[%s17 + $0x7c] sm:$0xf]
        %v822 = vld [vmem:[%s18] sm:$0xff]
        %v823 = vld [vmem:[%s18 + $0x8] sm:$0xff]
        %v824 = vld [vmem:[%s18 + $0x10] sm:$0xff]
        %v825 = vld [vmem:[%s18 + $0x18] sm:$0xff]
        %v826 = vld [vmem:[%s18 + $0x20] sm:$0xff]
        %v827 = vld [vmem:[%s18 + $0x28] sm:$0xff]
        %v828 = vld [vmem:[%s18 + $0x30] sm:$0xff]
        %v829 = vld [vmem:[%s18 + $0x38] sm:$0xff]
        %v830 = vld [vmem:[%s18 + $0x40] sm:$0xff]
        %v831 = vld [vmem:[%s18 + $0x48] sm:$0xff]
        %v832 = vld [vmem:[%s18 + $0x50] sm:$0xff]
        %v833 = vld [vmem:[%s18 + $0x58] sm:$0xff]
        %v834 = vld [vmem:[%s18 + $0x60] sm:$0xff]
        %v835 = vld [vmem:[%s18 + $0x68] sm:$0xff]
        %v836 = vld [vmem:[%s18 + $0x70] sm:$0xff]
        %v837 = vld [vmem:[%s18 + $0x78] sm:$0xff]
        %v838 = vld [vmem:[%s18 + $0x80] sm:$0xff]
        %v839 = vld [vmem:[%s18 + $0x88] sm:$0xff]
        %v840 = vld [vmem:[%s18 + $0x90] sm:$0xff]
        %v841 = vld [vmem:[%s18 + $0x98] sm:$0xff]
        %v842 = vld [vmem:[%s18 + $0xa0] sm:$0xff]
        %v843 = vld [vmem:[%s18 + $0xa8] sm:$0xff]
        %v844 = vld [vmem:[%s18 + $0xb0] sm:$0xff]
        %v845 = vld [vmem:[%s18 + $0xb8] sm:$0xff]
        %v846 = vld [vmem:[%s18 + $0xc0] sm:$0xff]
        %v847 = vld [vmem:[%s18 + $0xc8] sm:$0xff]
        %v848 = vld [vmem:[%s18 + $0xd0] sm:$0xff]
        %v849 = vld [vmem:[%s18 + $0xd8] sm:$0xff]
        %v850 = vld [vmem:[%s18 + $0xe0] sm:$0xff]
        %v851 = vld [vmem:[%s18 + $0xe8] sm:$0xff]
        %v852 = vld [vmem:[%s18 + $0xf0] sm:$0xff]
        %v853 = vld [vmem:[%s18 + $0xf8] sm:$0xff]
        %v854 = vld [vmem:[%s19] sm:$0xf]
        %v855 = vld [vmem:[%s19 + $0x4] sm:$0xf]
        %v856 = vld [vmem:[%s19 + $0x8] sm:$0xf]
        %v857 = vld [vmem:[%s19 + $0xc] sm:$0xf]
        %v858 = vld [vmem:[%s20] sm:$0xff]
        %v859 = vld [vmem:[%s20 + $0x8] sm:$0xff]
        %v860 = vld [vmem:[%s20 + $0x10] sm:$0xff]
        %v861 = vld [vmem:[%s20 + $0x18] sm:$0xff]
        %v862 = vld [vmem:[%s21] sm:$0xf]
        %v863 = vld [vmem:[%s21 + $0x4] sm:$0xf]
        %v864 = vld [vmem:[%s21 + $0x8] sm:$0xf]
        %v865 = vld [vmem:[%s21 + $0xc] sm:$0xf]
        %v866 = vld [vmem:[%s22] sm:$0xff]
        %v867 = vld [vmem:[%s22 + $0x8] sm:$0xff]
        %v868 = vld [vmem:[%s22 + $0x10] sm:$0xff]
        %v869 = vld [vmem:[%s22 + $0x18] sm:$0xff]
        %v870 = vld [vmem:[%s708] sm:$0xff]
        %v871 = vld [vmem:[%s708 + $0x8] sm:$0xff]
        %v872 = vld [vmem:[%s708 + $0x10] sm:$0xff]
        %v873 = vld [vmem:[%s708 + $0x18] sm:$0xff]
        %vm874 = vcmask 523264
        %v875 = vsel %vm874, %v870, 0.0
        %876 = vadd.xlane.f32.xlu0 %v875
        %v877 = vpop.xlane.xlu0 %876
        %v878 = vsel %vm874, %v871, 0.0
        %879 = vadd.xlane.f32.xlu0 %v878
        %v880 = vpop.xlane.xlu0 %879
        %v881 = vsel %vm874, %v872, 0.0
        %882 = vadd.xlane.f32.xlu0 %v881
        %v883 = vpop.xlane.xlu0 %882
        %v884 = vsel %vm874, %v873, 0.0
        %885 = vadd.xlane.f32.xlu0 %v884
        %v886 = vpop.xlane.xlu0 %885
        %v887 = vrcp.pop 64.0
        %v888 = vmul.f32 64.0, %v887
        %v889 = vsub.f32 1.0, %v888
        %v890 = vmul.f32 %v887, %v889
        %v891 = vadd.f32 %v887, %v890
        %vm892 = vweird.f32 %v887
        %v893 = vsel %vm892, %v887, %v891
        %v894 = vmul.f32 %v877, %v893
        %v895 = vmul.f32 %v880, %v893
        %v896 = vmul.f32 %v883, %v893
        %v897 = vmul.f32 %v886, %v893
        %v898 = vsub.f32 %v870, %v894
        %v899 = vsub.f32 %v871, %v895
        %v900 = vsub.f32 %v872, %v896
        %v901 = vsub.f32 %v873, %v897
        %v902 = vmul.f32 %v898, %v898
        %v903 = vmul.f32 %v899, %v899
        %v904 = vmul.f32 %v900, %v900
        %v905 = vmul.f32 %v901, %v901
        %v906 = vsel %vm874, %v902, 0.0
        %907 = vadd.xlane.f32.xlu0 %v906
        %v908 = vpop.xlane.xlu0 %907
        %v909 = vsel %vm874, %v903, 0.0
        %910 = vadd.xlane.f32.xlu0 %v909
        %v911 = vpop.xlane.xlu0 %910
        %v912 = vsel %vm874, %v904, 0.0
        %913 = vadd.xlane.f32.xlu0 %v912
        %v914 = vpop.xlane.xlu0 %913
        %v915 = vsel %vm874, %v905, 0.0
        %916 = vadd.xlane.f32.xlu0 %v915
        %v917 = vpop.xlane.xlu0 %916
        %v918 = vmul.f32 %v908, %v893
        %v919 = vmul.f32 %v911, %v893
        %v920 = vmul.f32 %v914, %v893
        %v921 = vmul.f32 %v917, %v893
        %v922 = vadd.f32 %v918, 1e-06
        %v923 = vadd.f32 %v919, 1e-06
        %v924 = vadd.f32 %v920, 1e-06
        %v925 = vadd.f32 %v921, 1e-06
        %v926 = vrsqrt.pop %v922
        %v927 = vmul.f32 %v926, %v922
        %v928 = vmul.f32 %v927, %v926
        %v929 = vmul.f32 0.5, %v928
        %v930 = vsub.f32 1.5, %v929
        %v931 = vmul.f32 %v926, %v930
        %vm932 = vweird.f32 %v922
        %vm933 = vweird.f32 %v926
        %vm934 = vmor %vm932, %vm933
        %v935 = vsel %vm934, %v926, %v931
        %v936 = vrsqrt.pop %v923
        %v937 = vmul.f32 %v936, %v923
        %v938 = vmul.f32 %v937, %v936
        %v939 = vmul.f32 0.5, %v938
        %v940 = vsub.f32 1.5, %v939
        %v941 = vmul.f32 %v936, %v940
        %vm942 = vweird.f32 %v923
        %vm943 = vweird.f32 %v936
        %vm944 = vmor %vm942, %vm943
        %v945 = vsel %vm944, %v936, %v941
        %v946 = vrsqrt.pop %v924
        %v947 = vmul.f32 %v946, %v924
        %v948 = vmul.f32 %v947, %v946
        %v949 = vmul.f32 0.5, %v948
        %v950 = vsub.f32 1.5, %v949
        %v951 = vmul.f32 %v946, %v950
        %vm952 = vweird.f32 %v924
        %vm953 = vweird.f32 %v946
        %vm954 = vmor %vm952, %vm953
        %v955 = vsel %vm954, %v946, %v951
        %v956 = vrsqrt.pop %v925
        %v957 = vmul.f32 %v956, %v925
        %v958 = vmul.f32 %v957, %v956
        %v959 = vmul.f32 0.5, %v958
        %v960 = vsub.f32 1.5, %v959
        %v961 = vmul.f32 %v956, %v960
        %vm962 = vweird.f32 %v925
        %vm963 = vweird.f32 %v956
        %vm964 = vmor %vm962, %vm963
        %v965 = vsel %vm964, %v956, %v961
        %v966 = vmul.f32 %v898, %v935
        %v967 = vmul.f32 %v899, %v945
        %v968 = vmul.f32 %v900, %v955
        %v969 = vmul.f32 %v901, %v965
        %971 = vset.pattern.permute.xlu0 0
        %972 = vperm.xlu0 %971, %v710
        %v973 = vpop.permute.xlu0 %972
        %976 = vset.pattern.permute.xlu0 0
        %977 = vperm.xlu0 %976, %v711
        %v978 = vpop.permute.xlu0 %977
        %981 = vset.pattern.permute.xlu0 0
        %982 = vperm.xlu0 %981, %v712
        %v983 = vpop.permute.xlu0 %982
        %986 = vset.pattern.permute.xlu0 0
        %987 = vperm.xlu0 %986, %v713
        %v988 = vpop.permute.xlu0 %987
        %v990 = vmul.f32 %v966, %v973
        %v991 = vmul.f32 %v967, %v978
        %v992 = vmul.f32 %v968, %v983
        %v993 = vmul.f32 %v969, %v988
        %995 = vset.pattern.permute.xlu0 0
        %996 = vperm.xlu0 %995, %v714
        %v997 = vpop.permute.xlu0 %996
        %1000 = vset.pattern.permute.xlu0 0
        %1001 = vperm.xlu0 %1000, %v715
        %v1002 = vpop.permute.xlu0 %1001
        %1005 = vset.pattern.permute.xlu0 0
        %1006 = vperm.xlu0 %1005, %v716
        %v1007 = vpop.permute.xlu0 %1006
        %1010 = vset.pattern.permute.xlu0 0
        %1011 = vperm.xlu0 %1010, %v717
        %v1012 = vpop.permute.xlu0 %1011
        %v1014 = vadd.f32 %v990, %v997
        %v1015 = vadd.f32 %v991, %v1002
        %v1016 = vadd.f32 %v992, %v1007
        %v1017 = vadd.f32 %v993, %v1012
        %v1018 = vpack.c.bf16 %v1015, %v1014
        %v1019 = vpack.c.bf16 %v1017, %v1016
        %1021 = vset.pattern.permute.xlu0 0
        %1022 = vperm.xlu0 %1021, %v722
        %v1023 = vpop.permute.xlu0 %1022
        %1026 = vset.pattern.permute.xlu0 0
        %1027 = vperm.xlu0 %1026, %v723
        %v1028 = vpop.permute.xlu0 %1027
        %1031 = vset.pattern.permute.xlu0 0
        %1032 = vperm.xlu0 %1031, %v724
        %v1033 = vpop.permute.xlu0 %1032
        %1036 = vset.pattern.permute.xlu0 0
        %1037 = vperm.xlu0 %1036, %v725
        %v1038 = vpop.permute.xlu0 %1037
        %v1044 = vunpack.c.l.b16 %v718
        %v1045 = vunpack.c.l.b16 %v719
        %v1046 = vunpack.c.l.b16 %v720
        %v1047 = vunpack.c.l.b16 %v721
        %v1048 = vpack.c.b16 %v1045, %v1044
        %v1049 = vpack.c.b16 %v1047, %v1046
        %vm1050 = vcmask 261120
        %v1052 = vsel %vm1050, %v1048, 0
        %v1055 = vsel %vm1050, %v1049, 0
        %1057 = vmatpush.bf16.msra.mxu0 0
        %1058 = vmatpush.bf16.msra.mxu0 0
        %1059 = vmatpush.bf16.msra.mxu0 0
        %1060 = vmatpush.bf16.msra.mxu0 0
        %1061 = vmatpush.bf16.msra.mxu0 0
        %1062 = vmatpush.bf16.msra.mxu0 0
        %1063 = vmatpush.bf16.msra.mxu0 %v1019
        %1064 = vmatpush.bf16.msra.mxu0 %v1018
        %1065 = vmatmul.bf16.gmra.mxu0 %v1052
        %v1066 = vpop.f32.mrf.mxu0
        %v1067 = vadd.f32 %v1023, %v1066
        %v1068 = vpop.f32.mrf.mxu0
        %v1069 = vadd.f32 %v1028, %v1068
        %1070 = vmatmul.bf16.gmra.mxu0 %v1055
        %v1071 = vpop.f32.mrf.mxu0
        %v1072 = vadd.f32 %v1033, %v1071
        %v1073 = vpop.f32.mrf.mxu0
        %v1074 = vadd.f32 %v1038, %v1073
        %1075 = vdwg.mxu0
        %v1076 = vsel %vm874, %v1067, 0.0
        %v1077 = vsel %vm874, %v1069, 0.0
        %v1078 = vadd.f32 %v1076, %v1077
        %v1079 = vsel %vm874, %v1072, 0.0
        %v1080 = vadd.f32 %v1078, %v1079
        %v1081 = vsel %vm874, %v1074, 0.0
        %v1082 = vadd.f32 %v1080, %v1081
        %v1083 = vrot.slane %v1082, 4
        %v1084 = vadd.f32 %v1082, %v1083
        %v1085 = vrot.slane %v1084, 2
        %v1086 = vadd.f32 %v1084, %v1085
        %v1087 = vrot.slane %v1086, 1
        %v1088 = vadd.f32 %v1086, %v1087
        %v1089 = vrcp.pop 32.0
        %v1090 = vmul.f32 32.0, %v1089
        %v1091 = vsub.f32 1.0, %v1090
        %v1092 = vmul.f32 %v1089, %v1091
        %v1093 = vadd.f32 %v1089, %v1092
        %vm1094 = vweird.f32 %v1089
        %v1095 = vsel %vm1094, %v1089, %v1093
        %v1096 = vmul.f32 %v1088, %v1095
        %v1097 = vsub.f32 %v1067, %v1096
        %v1098 = vsub.f32 %v1069, %v1096
        %v1099 = vsub.f32 %v1072, %v1096
        %v1100 = vsub.f32 %v1074, %v1096
        %v1101 = vmul.f32 %v1097, %v1097
        %v1102 = vmul.f32 %v1098, %v1098
        %v1103 = vmul.f32 %v1099, %v1099
        %v1104 = vmul.f32 %v1100, %v1100
        %v1105 = vsel %vm874, %v1101, 0.0
        %v1106 = vsel %vm874, %v1102, 0.0
        %v1107 = vadd.f32 %v1105, %v1106
        %v1108 = vsel %vm874, %v1103, 0.0
        %v1109 = vadd.f32 %v1107, %v1108
        %v1110 = vsel %vm874, %v1104, 0.0
        %v1111 = vadd.f32 %v1109, %v1110
        %v1112 = vrot.slane %v1111, 4
        %v1113 = vadd.f32 %v1111, %v1112
        %v1114 = vrot.slane %v1113, 2
        %v1115 = vadd.f32 %v1113, %v1114
        %v1116 = vrot.slane %v1115, 1
        %v1117 = vadd.f32 %v1115, %v1116
        %v1118 = vmul.f32 %v1117, %v1095
        %v1119 = vadd.f32 %v1118, 1e-05
        %v1120 = vrsqrt.pop %v1119
        %v1121 = vmul.f32 %v1120, %v1119
        %v1122 = vmul.f32 %v1121, %v1120
        %v1123 = vmul.f32 0.5, %v1122
        %v1124 = vsub.f32 1.5, %v1123
        %v1125 = vmul.f32 %v1120, %v1124
        %vm1126 = vweird.f32 %v1119
        %vm1127 = vweird.f32 %v1120
        %vm1128 = vmor %vm1126, %vm1127
        %v1129 = vsel %vm1128, %v1120, %v1125
        %v1130 = vmul.f32 %v1097, %v1129
        %v1131 = vmul.f32 %v1098, %v1129
        %v1132 = vmul.f32 %v1099, %v1129
        %v1133 = vmul.f32 %v1100, %v1129
        %1135 = vset.pattern.permute.xlu0 0
        %1136 = vperm.xlu0 %1135, %v726
        %v1137 = vpop.permute.xlu0 %1136
        %1140 = vset.pattern.permute.xlu0 0
        %1141 = vperm.xlu0 %1140, %v727
        %v1142 = vpop.permute.xlu0 %1141
        %1145 = vset.pattern.permute.xlu0 0
        %1146 = vperm.xlu0 %1145, %v728
        %v1147 = vpop.permute.xlu0 %1146
        %1150 = vset.pattern.permute.xlu0 0
        %1151 = vperm.xlu0 %1150, %v729
        %v1152 = vpop.permute.xlu0 %1151
        %v1154 = vmul.f32 %v1130, %v1137
        %v1155 = vmul.f32 %v1131, %v1142
        %v1156 = vmul.f32 %v1132, %v1147
        %v1157 = vmul.f32 %v1133, %v1152
        %1159 = vset.pattern.permute.xlu0 0
        %1160 = vperm.xlu0 %1159, %v730
        %v1161 = vpop.permute.xlu0 %1160
        %1164 = vset.pattern.permute.xlu0 0
        %1165 = vperm.xlu0 %1164, %v731
        %v1166 = vpop.permute.xlu0 %1165
        %1169 = vset.pattern.permute.xlu0 0
        %1170 = vperm.xlu0 %1169, %v732
        %v1171 = vpop.permute.xlu0 %1170
        %1174 = vset.pattern.permute.xlu0 0
        %1175 = vperm.xlu0 %1174, %v733
        %v1176 = vpop.permute.xlu0 %1175
        %v1178 = vadd.f32 %v1154, %v1161
        %v1179 = vadd.f32 %v1155, %v1166
        %v1180 = vadd.f32 %v1156, %v1171
        %v1181 = vadd.f32 %v1157, %v1176
        %v1182 = vpack.c.bf16 %v1179, %v1178
        %v1183 = vpack.c.bf16 %v1181, %v1180
        %v1196 = vunpack.c.l.b16 %v734
        %v1197 = vunpack.c.l.b16 %v735
        %v1198 = vunpack.c.l.b16 %v736
        %v1199 = vunpack.c.l.b16 %v737
        %v1200 = vunpack.c.l.b16 %v738
        %v1201 = vunpack.c.l.b16 %v739
        %v1202 = vunpack.c.l.b16 %v740
        %v1203 = vunpack.c.l.b16 %v741
        %v1204 = vunpack.c.l.b16 %v742
        %v1205 = vunpack.c.l.b16 %v743
        %v1206 = vunpack.c.l.b16 %v744
        %v1207 = vunpack.c.l.b16 %v745
        %v1208 = vpack.c.b16 %v1197, %v1196
        %v1209 = vpack.c.b16 %v1199, %v1198
        %v1210 = vpack.c.b16 %v1201, %v1200
        %v1211 = vpack.c.b16 %v1203, %v1202
        %v1212 = vpack.c.b16 %v1205, %v1204
        %v1213 = vpack.c.b16 %v1207, %v1206
        %v1215 = vsel %vm1050, %v1208, 0
        %v1218 = vsel %vm1050, %v1209, 0
        %v1221 = vsel %vm1050, %v1210, 0
        %v1224 = vsel %vm1050, %v1211, 0
        %v1227 = vsel %vm1050, %v1212, 0
        %v1230 = vsel %vm1050, %v1213, 0
        %1232 = vmatpush.bf16.msra.mxu0 0
        %1233 = vmatpush.bf16.msra.mxu0 0
        %1234 = vmatpush.bf16.msra.mxu0 0
        %1235 = vmatpush.bf16.msra.mxu0 0
        %1236 = vmatpush.bf16.msra.mxu0 0
        %1237 = vmatpush.bf16.msra.mxu0 0
        %1238 = vmatpush.bf16.msra.mxu0 %v1183
        %1239 = vmatpush.bf16.msra.mxu0 %v1182
        %1240 = vmatmul.bf16.gmra.mxu0 %v1215
        %v1241 = vpop.f32.mrf.mxu0
        %v1242 = vadd.f32 0.0, %v1241
        %v1243 = vpop.f32.mrf.mxu0
        %v1244 = vadd.f32 0.0, %v1243
        %1245 = vmatmul.bf16.gmra.mxu0 %v1218
        %v1246 = vpop.f32.mrf.mxu0
        %v1247 = vadd.f32 0.0, %v1246
        %v1248 = vpop.f32.mrf.mxu0
        %v1249 = vadd.f32 0.0, %v1248
        %1250 = vmatmul.bf16.gmra.mxu0 %v1221
        %v1251 = vpop.f32.mrf.mxu0
        %v1252 = vadd.f32 0.0, %v1251
        %v1253 = vpop.f32.mrf.mxu0
        %v1254 = vadd.f32 0.0, %v1253
        %1255 = vmatmul.bf16.gmra.mxu0 %v1224
        %v1256 = vpop.f32.mrf.mxu0
        %v1257 = vadd.f32 0.0, %v1256
        %v1258 = vpop.f32.mrf.mxu0
        %v1259 = vadd.f32 0.0, %v1258
        %1260 = vmatmul.bf16.gmra.mxu0 %v1227
        %v1261 = vpop.f32.mrf.mxu0
        %v1262 = vadd.f32 0.0, %v1261
        %v1263 = vpop.f32.mrf.mxu0
        %v1264 = vadd.f32 0.0, %v1263
        %1265 = vmatmul.bf16.gmra.mxu0 %v1230
        %v1266 = vpop.f32.mrf.mxu0
        %v1267 = vadd.f32 0.0, %v1266
        %v1268 = vpop.f32.mrf.mxu0
        %v1269 = vadd.f32 0.0, %v1268
        %1270 = vdwg.mxu0
        %1271 = vxpose.xlu0.b32.start [1/16] %v1242, 128
        %1272 = vxpose.xlu0.b32.cont [2/16] %v1244, 128
        %1273 = vxpose.xlu0.b32.cont [3/16] 0.0, 128
        %1274 = vxpose.xlu0.b32.cont [4/16] 0.0, 128
        %1275 = vxpose.xlu0.b32.cont [5/16] 0.0, 128
        %1276 = vxpose.xlu0.b32.cont [6/16] 0.0, 128
        %1277 = vxpose.xlu0.b32.cont [7/16] 0.0, 128
        %1278 = vxpose.xlu0.b32.cont [8/16] 0.0, 128
        %1279 = vxpose.xlu0.b32.cont [9/16] 0.0, 128
        %1280 = vxpose.xlu0.b32.cont [10/16] 0.0, 128
        %1281 = vxpose.xlu0.b32.cont [11/16] 0.0, 128
        %1282 = vxpose.xlu0.b32.cont [12/16] 0.0, 128
        %1283 = vxpose.xlu0.b32.cont [13/16] 0.0, 128
        %1284 = vxpose.xlu0.b32.cont [14/16] 0.0, 128
        %1285 = vxpose.xlu0.b32.cont [15/16] 0.0, 128
        %1286 = vxpose.xlu0.b32.end [16/16] 0.0, 128
        %v1287 = vpop.trf.xlu0
        %v1288 = vpop.trf.xlu0
        %v1289 = vpop.trf.xlu0
        %v1290 = vpop.trf.xlu0
        %v1291 = vpop.trf.xlu0
        %v1292 = vpop.trf.xlu0
        %v1293 = vpop.trf.xlu0
        %v1294 = vpop.trf.xlu0
        %v1295 = vpop.trf.xlu0
        %v1296 = vpop.trf.xlu0
        %v1297 = vpop.trf.xlu0
        %v1298 = vpop.trf.xlu0
        %v1299 = vpop.trf.xlu0
        %v1300 = vpop.trf.xlu0
        %v1301 = vpop.trf.xlu0
        %v1302 = vpop.trf.xlu0
        %1303 = vxpose.xlu0.b32.start [1/16] %v1247, 128
        %1304 = vxpose.xlu0.b32.cont [2/16] %v1249, 128
        %1305 = vxpose.xlu0.b32.cont [3/16] 0.0, 128
        %1306 = vxpose.xlu0.b32.cont [4/16] 0.0, 128
        %1307 = vxpose.xlu0.b32.cont [5/16] 0.0, 128
        %1308 = vxpose.xlu0.b32.cont [6/16] 0.0, 128
        %1309 = vxpose.xlu0.b32.cont [7/16] 0.0, 128
        %1310 = vxpose.xlu0.b32.cont [8/16] 0.0, 128
        %1311 = vxpose.xlu0.b32.cont [9/16] 0.0, 128
        %1312 = vxpose.xlu0.b32.cont [10/16] 0.0, 128
        %1313 = vxpose.xlu0.b32.cont [11/16] 0.0, 128
        %1314 = vxpose.xlu0.b32.cont [12/16] 0.0, 128
        %1315 = vxpose.xlu0.b32.cont [13/16] 0.0, 128
        %1316 = vxpose.xlu0.b32.cont [14/16] 0.0, 128
        %1317 = vxpose.xlu0.b32.cont [15/16] 0.0, 128
        %1318 = vxpose.xlu0.b32.end [16/16] 0.0, 128
        %v1319 = vpop.trf.xlu0
        %v1320 = vpop.trf.xlu0
        %v1321 = vpop.trf.xlu0
        %v1322 = vpop.trf.xlu0
        %v1323 = vpop.trf.xlu0
        %v1324 = vpop.trf.xlu0
        %v1325 = vpop.trf.xlu0
        %v1326 = vpop.trf.xlu0
        %v1327 = vpop.trf.xlu0
        %v1328 = vpop.trf.xlu0
        %v1329 = vpop.trf.xlu0
        %v1330 = vpop.trf.xlu0
        %v1331 = vpop.trf.xlu0
        %v1332 = vpop.trf.xlu0
        %v1333 = vpop.trf.xlu0
        %v1334 = vpop.trf.xlu0
        %v1335 = vpack.c.bf16 %v1287, %v1287
        %v1336 = vpack.c.bf16 %v1288, %v1288
        %v1337 = vpack.c.bf16 %v1289, %v1289
        %v1338 = vpack.c.bf16 %v1290, %v1290
        %v1339 = vpack.c.bf16 %v1291, %v1291
        %v1340 = vpack.c.bf16 %v1292, %v1292
        %v1341 = vpack.c.bf16 %v1293, %v1293
        %v1342 = vpack.c.bf16 %v1294, %v1294
        %v1343 = vpack.c.bf16 %v1319, %v1319
        %v1344 = vpack.c.bf16 %v1320, %v1320
        %v1345 = vpack.c.bf16 %v1321, %v1321
        %v1346 = vpack.c.bf16 %v1322, %v1322
        %v1347 = vpack.c.bf16 %v1323, %v1323
        %v1348 = vpack.c.bf16 %v1324, %v1324
        %v1349 = vpack.c.bf16 %v1325, %v1325
        %v1350 = vpack.c.bf16 %v1326, %v1326
        %v1351 = vpack.c.bf16 %v1252, %v1252
        %v1352 = vpack.c.bf16 %v1254, %v1254
        %v1353 = vpack.c.bf16 %v1257, %v1257
        %v1354 = vpack.c.bf16 %v1259, %v1259
        %v1363 = vunpack.c.l.b16 %v1335
        %v1364 = vunpack.c.l.b16 %v1336
        %v1365 = vunpack.c.l.b16 %v1337
        %v1366 = vunpack.c.l.b16 %v1338
        %v1367 = vunpack.c.l.b16 %v1339
        %v1368 = vunpack.c.l.b16 %v1340
        %v1369 = vunpack.c.l.b16 %v1341
        %v1370 = vunpack.c.l.b16 %v1342
        %v1371 = vpack.c.b16 %v1364, %v1363
        %v1372 = vpack.c.b16 %v1366, %v1365
        %v1373 = vpack.c.b16 %v1368, %v1367
        %v1374 = vpack.c.b16 %v1370, %v1369
        %v1377 = vunpack.c.l.b16 %v1351
        %v1378 = vunpack.c.l.b16 %v1352
        %v1379 = vpack.c.b16 %v1378, %v1377
        %vm1381 = vcmask 130048
        %v1383 = vsel %vm1381, %v1371, 0
        %v1386 = vsel %vm1381, %v1372, 0
        %v1389 = vsel %vm1381, %v1373, 0
        %v1392 = vsel %vm1381, %v1374, 0
        %1394 = vmatpush.bf16.msra.mxu0 0
        %1395 = vmatpush.bf16.msra.mxu0 0
        %1396 = vmatpush.bf16.msra.mxu0 0
        %1397 = vmatpush.bf16.msra.mxu0 0
        %1398 = vmatpush.bf16.msra.mxu0 0
        %1399 = vmatpush.bf16.msra.mxu0 0
        %1400 = vmatpush.bf16.msra.mxu0 0
        %1401 = vmatpush.bf16.msra.mxu0 %v1379
        %1402 = vmatmul.bf16.gmra.mxu0 %v1383
        %v1403 = vpop.f32.mrf.mxu0
        %v1404 = vadd.f32 0.0, %v1403
        %v1405 = vpop.f32.mrf.mxu0
        %v1406 = vadd.f32 0.0, %v1405
        %1407 = vmatmul.bf16.gmra.mxu0 %v1386
        %v1408 = vpop.f32.mrf.mxu0
        %v1409 = vadd.f32 0.0, %v1408
        %v1410 = vpop.f32.mrf.mxu0
        %v1411 = vadd.f32 0.0, %v1410
        %1412 = vmatmul.bf16.gmra.mxu0 %v1389
        %v1413 = vpop.f32.mrf.mxu0
        %v1414 = vadd.f32 0.0, %v1413
        %v1415 = vpop.f32.mrf.mxu0
        %v1416 = vadd.f32 0.0, %v1415
        %1417 = vmatmul.bf16.gmra.mxu0 %v1392
        %v1418 = vpop.f32.mrf.mxu0
        %v1419 = vadd.f32 0.0, %v1418
        %v1420 = vpop.f32.mrf.mxu0
        %v1421 = vadd.f32 0.0, %v1420
        %1422 = vdwg.mxu0
        %v1431 = vunpack.c.l.b16 %v1343
        %v1432 = vunpack.c.l.b16 %v1344
        %v1433 = vunpack.c.l.b16 %v1345
        %v1434 = vunpack.c.l.b16 %v1346
        %v1435 = vunpack.c.l.b16 %v1347
        %v1436 = vunpack.c.l.b16 %v1348
        %v1437 = vunpack.c.l.b16 %v1349
        %v1438 = vunpack.c.l.b16 %v1350
        %v1439 = vpack.c.b16 %v1432, %v1431
        %v1440 = vpack.c.b16 %v1434, %v1433
        %v1441 = vpack.c.b16 %v1436, %v1435
        %v1442 = vpack.c.b16 %v1438, %v1437
        %v1445 = vunpack.c.l.b16 %v1353
        %v1446 = vunpack.c.l.b16 %v1354
        %v1447 = vpack.c.b16 %v1446, %v1445
        %v1450 = vsel %vm1381, %v1439, 0
        %v1453 = vsel %vm1381, %v1440, 0
        %v1456 = vsel %vm1381, %v1441, 0
        %v1459 = vsel %vm1381, %v1442, 0
        %1461 = vmatpush.bf16.msra.mxu0 0
        %1462 = vmatpush.bf16.msra.mxu0 0
        %1463 = vmatpush.bf16.msra.mxu0 0
        %1464 = vmatpush.bf16.msra.mxu0 0
        %1465 = vmatpush.bf16.msra.mxu0 0
        %1466 = vmatpush.bf16.msra.mxu0 0
        %1467 = vmatpush.bf16.msra.mxu0 0
        %1468 = vmatpush.bf16.msra.mxu0 %v1447
        %1469 = vmatmul.bf16.gmra.mxu0 %v1450
        %v1470 = vpop.f32.mrf.mxu0
        %v1471 = vadd.f32 0.0, %v1470
        %v1472 = vpop.f32.mrf.mxu0
        %v1473 = vadd.f32 0.0, %v1472
        %1474 = vmatmul.bf16.gmra.mxu0 %v1453
        %v1475 = vpop.f32.mrf.mxu0
        %v1476 = vadd.f32 0.0, %v1475
        %v1477 = vpop.f32.mrf.mxu0
        %v1478 = vadd.f32 0.0, %v1477
        %1479 = vmatmul.bf16.gmra.mxu0 %v1456
        %v1480 = vpop.f32.mrf.mxu0
        %v1481 = vadd.f32 0.0, %v1480
        %v1482 = vpop.f32.mrf.mxu0
        %v1483 = vadd.f32 0.0, %v1482
        %1484 = vmatmul.bf16.gmra.mxu0 %v1459
        %v1485 = vpop.f32.mrf.mxu0
        %v1486 = vadd.f32 0.0, %v1485
        %v1487 = vpop.f32.mrf.mxu0
        %v1488 = vadd.f32 0.0, %v1487
        %1489 = vdwg.mxu0
        %v1490 = vsel %vm874, %v1404, -inf
        %1491 = vmax.xlane.f32.xlu0 %v1490
        %v1492 = vpop.xlane.xlu0 %1491
        %v1493 = vsel %vm874, %v1406, -inf
        %1494 = vmax.xlane.f32.xlu0 %v1493
        %v1495 = vpop.xlane.xlu0 %1494
        %v1496 = vsel %vm874, %v1409, -inf
        %1497 = vmax.xlane.f32.xlu0 %v1496
        %v1498 = vpop.xlane.xlu0 %1497
        %v1499 = vsel %vm874, %v1411, -inf
        %1500 = vmax.xlane.f32.xlu0 %v1499
        %v1501 = vpop.xlane.xlu0 %1500
        %v1502 = vsel %vm874, %v1414, -inf
        %1503 = vmax.xlane.f32.xlu0 %v1502
        %v1504 = vpop.xlane.xlu0 %1503
        %v1505 = vsel %vm874, %v1416, -inf
        %1506 = vmax.xlane.f32.xlu0 %v1505
        %v1507 = vpop.xlane.xlu0 %1506
        %v1508 = vsel %vm874, %v1419, -inf
        %1509 = vmax.xlane.f32.xlu0 %v1508
        %v1510 = vpop.xlane.xlu0 %1509
        %v1511 = vsel %vm874, %v1421, -inf
        %1512 = vmax.xlane.f32.xlu0 %v1511
        %v1513 = vpop.xlane.xlu0 %1512
        %v1514 = vsel %vm874, %v1471, -inf
        %1515 = vmax.xlane.f32.xlu0 %v1514
        %v1516 = vpop.xlane.xlu0 %1515
        %v1517 = vsel %vm874, %v1473, -inf
        %1518 = vmax.xlane.f32.xlu0 %v1517
        %v1519 = vpop.xlane.xlu0 %1518
        %v1520 = vsel %vm874, %v1476, -inf
        %1521 = vmax.xlane.f32.xlu0 %v1520
        %v1522 = vpop.xlane.xlu0 %1521
        %v1523 = vsel %vm874, %v1478, -inf
        %1524 = vmax.xlane.f32.xlu0 %v1523
        %v1525 = vpop.xlane.xlu0 %1524
        %v1526 = vsel %vm874, %v1481, -inf
        %1527 = vmax.xlane.f32.xlu0 %v1526
        %v1528 = vpop.xlane.xlu0 %1527
        %v1529 = vsel %vm874, %v1483, -inf
        %1530 = vmax.xlane.f32.xlu0 %v1529
        %v1531 = vpop.xlane.xlu0 %1530
        %v1532 = vsel %vm874, %v1486, -inf
        %1533 = vmax.xlane.f32.xlu0 %v1532
        %v1534 = vpop.xlane.xlu0 %1533
        %v1535 = vsel %vm874, %v1488, -inf
        %1536 = vmax.xlane.f32.xlu0 %v1535
        %v1537 = vpop.xlane.xlu0 %1536
        %v1538 = vsub.f32 %v1404, %v1492
        %v1539 = vsub.f32 %v1406, %v1495
        %v1540 = vsub.f32 %v1409, %v1498
        %v1541 = vsub.f32 %v1411, %v1501
        %v1542 = vsub.f32 %v1414, %v1504
        %v1543 = vsub.f32 %v1416, %v1507
        %v1544 = vsub.f32 %v1419, %v1510
        %v1545 = vsub.f32 %v1421, %v1513
        %v1546 = vsub.f32 %v1471, %v1516
        %v1547 = vsub.f32 %v1473, %v1519
        %v1548 = vsub.f32 %v1476, %v1522
        %v1549 = vsub.f32 %v1478, %v1525
        %v1550 = vsub.f32 %v1481, %v1528
        %v1551 = vsub.f32 %v1483, %v1531
        %v1552 = vsub.f32 %v1486, %v1534
        %v1553 = vsub.f32 %v1488, %v1537
        %v1554 = vmul.f32 %v1538, 1.442695
        %v1555 = vpow.pop %v1554
        %v1556 = vmul.f32 %v1539, 1.442695
        %v1557 = vpow.pop %v1556
        %v1558 = vmul.f32 %v1540, 1.442695
        %v1559 = vpow.pop %v1558
        %v1560 = vmul.f32 %v1541, 1.442695
        %v1561 = vpow.pop %v1560
        %v1562 = vmul.f32 %v1542, 1.442695
        %v1563 = vpow.pop %v1562
        %v1564 = vmul.f32 %v1543, 1.442695
        %v1565 = vpow.pop %v1564
        %v1566 = vmul.f32 %v1544, 1.442695
        %v1567 = vpow.pop %v1566
        %v1568 = vmul.f32 %v1545, 1.442695
        %v1569 = vpow.pop %v1568
        %v1570 = vmul.f32 %v1546, 1.442695
        %v1571 = vpow.pop %v1570
        %v1572 = vmul.f32 %v1547, 1.442695
        %v1573 = vpow.pop %v1572
        %v1574 = vmul.f32 %v1548, 1.442695
        %v1575 = vpow.pop %v1574
        %v1576 = vmul.f32 %v1549, 1.442695
        %v1577 = vpow.pop %v1576
        %v1578 = vmul.f32 %v1550, 1.442695
        %v1579 = vpow.pop %v1578
        %v1580 = vmul.f32 %v1551, 1.442695
        %v1581 = vpow.pop %v1580
        %v1582 = vmul.f32 %v1552, 1.442695
        %v1583 = vpow.pop %v1582
        %v1584 = vmul.f32 %v1553, 1.442695
        %v1585 = vpow.pop %v1584
        %v1586 = vsel %vm874, %v1555, 0.0
        %1587 = vadd.xlane.f32.xlu0 %v1586
        %v1588 = vpop.xlane.xlu0 %1587
        %v1589 = vsel %vm874, %v1557, 0.0
        %1590 = vadd.xlane.f32.xlu0 %v1589
        %v1591 = vpop.xlane.xlu0 %1590
        %v1592 = vsel %vm874, %v1559, 0.0
        %1593 = vadd.xlane.f32.xlu0 %v1592
        %v1594 = vpop.xlane.xlu0 %1593
        %v1595 = vsel %vm874, %v1561, 0.0
        %1596 = vadd.xlane.f32.xlu0 %v1595
        %v1597 = vpop.xlane.xlu0 %1596
        %v1598 = vsel %vm874, %v1563, 0.0
        %1599 = vadd.xlane.f32.xlu0 %v1598
        %v1600 = vpop.xlane.xlu0 %1599
        %v1601 = vsel %vm874, %v1565, 0.0
        %1602 = vadd.xlane.f32.xlu0 %v1601
        %v1603 = vpop.xlane.xlu0 %1602
        %v1604 = vsel %vm874, %v1567, 0.0
        %1605 = vadd.xlane.f32.xlu0 %v1604
        %v1606 = vpop.xlane.xlu0 %1605
        %v1607 = vsel %vm874, %v1569, 0.0
        %1608 = vadd.xlane.f32.xlu0 %v1607
        %v1609 = vpop.xlane.xlu0 %1608
        %v1610 = vsel %vm874, %v1571, 0.0
        %1611 = vadd.xlane.f32.xlu0 %v1610
        %v1612 = vpop.xlane.xlu0 %1611
        %v1613 = vsel %vm874, %v1573, 0.0
        %1614 = vadd.xlane.f32.xlu0 %v1613
        %v1615 = vpop.xlane.xlu0 %1614
        %v1616 = vsel %vm874, %v1575, 0.0
        %1617 = vadd.xlane.f32.xlu0 %v1616
        %v1618 = vpop.xlane.xlu0 %1617
        %v1619 = vsel %vm874, %v1577, 0.0
        %1620 = vadd.xlane.f32.xlu0 %v1619
        %v1621 = vpop.xlane.xlu0 %1620
        %v1622 = vsel %vm874, %v1579, 0.0
        %1623 = vadd.xlane.f32.xlu0 %v1622
        %v1624 = vpop.xlane.xlu0 %1623
        %v1625 = vsel %vm874, %v1581, 0.0
        %1626 = vadd.xlane.f32.xlu0 %v1625
        %v1627 = vpop.xlane.xlu0 %1626
        %v1628 = vsel %vm874, %v1583, 0.0
        %1629 = vadd.xlane.f32.xlu0 %v1628
        %v1630 = vpop.xlane.xlu0 %1629
        %v1631 = vsel %vm874, %v1585, 0.0
        %1632 = vadd.xlane.f32.xlu0 %v1631
        %v1633 = vpop.xlane.xlu0 %1632
        %v1634 = vrcp.pop %v1588
        %v1635 = vrcp.pop %v1591
        %v1636 = vrcp.pop %v1594
        %v1637 = vrcp.pop %v1597
        %v1638 = vrcp.pop %v1600
        %v1639 = vrcp.pop %v1603
        %v1640 = vrcp.pop %v1606
        %v1641 = vrcp.pop %v1609
        %v1642 = vrcp.pop %v1612
        %v1643 = vrcp.pop %v1615
        %v1644 = vrcp.pop %v1618
        %v1645 = vrcp.pop %v1621
        %v1646 = vrcp.pop %v1624
        %v1647 = vrcp.pop %v1627
        %v1648 = vrcp.pop %v1630
        %v1649 = vrcp.pop %v1633
        %v1650 = vmul.f32 %v1555, %v1634
        %v1651 = vmul.f32 %v1557, %v1635
        %v1652 = vmul.f32 %v1559, %v1636
        %v1653 = vmul.f32 %v1561, %v1637
        %v1654 = vmul.f32 %v1563, %v1638
        %v1655 = vmul.f32 %v1565, %v1639
        %v1656 = vmul.f32 %v1567, %v1640
        %v1657 = vmul.f32 %v1569, %v1641
        %v1658 = vmul.f32 %v1571, %v1642
        %v1659 = vmul.f32 %v1573, %v1643
        %v1660 = vmul.f32 %v1575, %v1644
        %v1661 = vmul.f32 %v1577, %v1645
        %v1662 = vmul.f32 %v1579, %v1646
        %v1663 = vmul.f32 %v1581, %v1647
        %v1664 = vmul.f32 %v1583, %v1648
        %v1665 = vmul.f32 %v1585, %v1649
        %v1666 = vpack.c.bf16 %v1262, %v1262
        %v1667 = vpack.c.bf16 %v1264, %v1264
        %v1668 = vpack.c.bf16 %v1267, %v1267
        %v1669 = vpack.c.bf16 %v1269, %v1269
        %v1670 = vpack.c.bf16 %v1650, %v1650
        %v1671 = vpack.c.bf16 %v1651, %v1651
        %v1672 = vpack.c.bf16 %v1652, %v1652
        %v1673 = vpack.c.bf16 %v1653, %v1653
        %v1674 = vpack.c.bf16 %v1654, %v1654
        %v1675 = vpack.c.bf16 %v1655, %v1655
        %v1676 = vpack.c.bf16 %v1656, %v1656
        %v1677 = vpack.c.bf16 %v1657, %v1657
        %v1678 = vpack.c.bf16 %v1658, %v1658
        %v1679 = vpack.c.bf16 %v1659, %v1659
        %v1680 = vpack.c.bf16 %v1660, %v1660
        %v1681 = vpack.c.bf16 %v1661, %v1661
        %v1682 = vpack.c.bf16 %v1662, %v1662
        %v1683 = vpack.c.bf16 %v1663, %v1663
        %v1684 = vpack.c.bf16 %v1664, %v1664
        %v1685 = vpack.c.bf16 %v1665, %v1665
        %v1688 = vunpack.c.l.b16 %v1666
        %v1689 = vunpack.c.l.b16 %v1667
        %v1690 = vpack.c.b16 %v1689, %v1688
        %v1699 = vunpack.c.l.b16 %v1670
        %v1700 = vunpack.c.l.b16 %v1671
        %v1701 = vunpack.c.l.b16 %v1672
        %v1702 = vunpack.c.l.b16 %v1673
        %v1703 = vunpack.c.l.b16 %v1674
        %v1704 = vunpack.c.l.b16 %v1675
        %v1705 = vunpack.c.l.b16 %v1676
        %v1706 = vunpack.c.l.b16 %v1677
        %v1707 = vpack.c.b16 %v1700, %v1699
        %v1708 = vpack.c.b16 %v1702, %v1701
        %v1709 = vpack.c.b16 %v1704, %v1703
        %v1710 = vpack.c.b16 %v1706, %v1705
        %v1712 = vsel %vm874, %v1690, 0
        %v1715 = vsel %vm874, %v1707, 0
        %v1718 = vsel %vm874, %v1708, 0
        %v1721 = vsel %vm874, %v1709, 0
        %v1724 = vsel %vm874, %v1710, 0
        %1726 = vmatpush.bf16.xpose.msra.mxu0 0
        %1727 = vmatpush.bf16.xpose.msra.mxu0 0
        %1728 = vmatpush.bf16.xpose.msra.mxu0 0
        %1729 = vmatpush.bf16.xpose.msra.mxu0 0
        %1730 = vmatpush.bf16.xpose.msra.mxu0 %v1724
        %1731 = vmatpush.bf16.xpose.msra.mxu0 %v1721
        %1732 = vmatpush.bf16.xpose.msra.mxu0 %v1718
        %1733 = vmatpush.bf16.xpose.msra.mxu0 %v1715
        %1734 = vmatmul.bf16.gmra.mxu0 %v1712
        %v1735 = vpop.f32.mrf.mxu0
        %v1736 = vadd.f32 0.0, %v1735
        %v1737 = vpop.f32.mrf.mxu0
        %v1738 = vadd.f32 0.0, %v1737
        %1739 = vdwg.mxu0
        %v1742 = vunpack.c.l.b16 %v1668
        %v1743 = vunpack.c.l.b16 %v1669
        %v1744 = vpack.c.b16 %v1743, %v1742
        %v1753 = vunpack.c.l.b16 %v1678
        %v1754 = vunpack.c.l.b16 %v1679
        %v1755 = vunpack.c.l.b16 %v1680
        %v1756 = vunpack.c.l.b16 %v1681
        %v1757 = vunpack.c.l.b16 %v1682
        %v1758 = vunpack.c.l.b16 %v1683
        %v1759 = vunpack.c.l.b16 %v1684
        %v1760 = vunpack.c.l.b16 %v1685
        %v1761 = vpack.c.b16 %v1754, %v1753
        %v1762 = vpack.c.b16 %v1756, %v1755
        %v1763 = vpack.c.b16 %v1758, %v1757
        %v1764 = vpack.c.b16 %v1760, %v1759
        %v1766 = vsel %vm874, %v1744, 0
        %v1769 = vsel %vm874, %v1761, 0
        %v1772 = vsel %vm874, %v1762, 0
        %v1775 = vsel %vm874, %v1763, 0
        %v1778 = vsel %vm874, %v1764, 0
        %1780 = vmatpush.bf16.xpose.msra.mxu0 0
        %1781 = vmatpush.bf16.xpose.msra.mxu0 0
        %1782 = vmatpush.bf16.xpose.msra.mxu0 0
        %1783 = vmatpush.bf16.xpose.msra.mxu0 0
        %1784 = vmatpush.bf16.xpose.msra.mxu0 %v1778
        %1785 = vmatpush.bf16.xpose.msra.mxu0 %v1775
        %1786 = vmatpush.bf16.xpose.msra.mxu0 %v1772
        %1787 = vmatpush.bf16.xpose.msra.mxu0 %v1769
        %1788 = vmatmul.bf16.gmra.mxu0 %v1766
        %v1789 = vpop.f32.mrf.mxu0
        %v1790 = vadd.f32 0.0, %v1789
        %v1791 = vpop.f32.mrf.mxu0
        %v1792 = vadd.f32 0.0, %v1791
        %1793 = vdwg.mxu0
        %v1794 = vpack.c.bf16 %v1738, %v1736
        %v1795 = vpack.c.bf16 %v1792, %v1790
        %1797 = vset.pattern.permute.xlu0 0
        %1798 = vperm.xlu0 %1797, %v750
        %v1799 = vpop.permute.xlu0 %1798
        %1802 = vset.pattern.permute.xlu0 0
        %1803 = vperm.xlu0 %1802, %v751
        %v1804 = vpop.permute.xlu0 %1803
        %1807 = vset.pattern.permute.xlu0 0
        %1808 = vperm.xlu0 %1807, %v752
        %v1809 = vpop.permute.xlu0 %1808
        %1812 = vset.pattern.permute.xlu0 0
        %1813 = vperm.xlu0 %1812, %v753
        %v1814 = vpop.permute.xlu0 %1813
        %v1820 = vunpack.c.l.b16 %v746
        %v1821 = vunpack.c.l.b16 %v747
        %v1822 = vunpack.c.l.b16 %v748
        %v1823 = vunpack.c.l.b16 %v749
        %v1824 = vpack.c.b16 %v1821, %v1820
        %v1825 = vpack.c.b16 %v1823, %v1822
        %v1827 = vsel %vm1050, %v1824, 0
        %v1830 = vsel %vm1050, %v1825, 0
        %1832 = vmatpush.bf16.msra.mxu0 0
        %1833 = vmatpush.bf16.msra.mxu0 0
        %1834 = vmatpush.bf16.msra.mxu0 0
        %1835 = vmatpush.bf16.msra.mxu0 0
        %1836 = vmatpush.bf16.msra.mxu0 0
        %1837 = vmatpush.bf16.msra.mxu0 0
        %1838 = vmatpush.bf16.msra.mxu0 %v1795
        %1839 = vmatpush.bf16.msra.mxu0 %v1794
        %1840 = vmatmul.bf16.gmra.mxu0 %v1827
        %v1841 = vpop.f32.mrf.mxu0
        %v1842 = vadd.f32 %v1799, %v1841
        %v1843 = vpop.f32.mrf.mxu0
        %v1844 = vadd.f32 %v1804, %v1843
        %1845 = vmatmul.bf16.gmra.mxu0 %v1830
        %v1846 = vpop.f32.mrf.mxu0
        %v1847 = vadd.f32 %v1809, %v1846
        %v1848 = vpop.f32.mrf.mxu0
        %v1849 = vadd.f32 %v1814, %v1848
        %1850 = vdwg.mxu0
        %v1851 = vadd.f32 %v1067, %v1842
        %v1852 = vadd.f32 %v1069, %v1844
        %v1853 = vadd.f32 %v1072, %v1847
        %v1854 = vadd.f32 %v1074, %v1849
        %v1855 = vsel %vm874, %v1851, 0.0
        %v1856 = vsel %vm874, %v1852, 0.0
        %v1857 = vadd.f32 %v1855, %v1856
        %v1858 = vsel %vm874, %v1853, 0.0
        %v1859 = vadd.f32 %v1857, %v1858
        %v1860 = vsel %vm874, %v1854, 0.0
        %v1861 = vadd.f32 %v1859, %v1860
        %v1862 = vrot.slane %v1861, 4
        %v1863 = vadd.f32 %v1861, %v1862
        %v1864 = vrot.slane %v1863, 2
        %v1865 = vadd.f32 %v1863, %v1864
        %v1866 = vrot.slane %v1865, 1
        %v1867 = vadd.f32 %v1865, %v1866
        %v1868 = vmul.f32 %v1867, %v1095
        %v1869 = vsub.f32 %v1851, %v1868
        %v1870 = vsub.f32 %v1852, %v1868
        %v1871 = vsub.f32 %v1853, %v1868
        %v1872 = vsub.f32 %v1854, %v1868
        %v1873 = vmul.f32 %v1869, %v1869
        %v1874 = vmul.f32 %v1870, %v1870
        %v1875 = vmul.f32 %v1871, %v1871
        %v1876 = vmul.f32 %v1872, %v1872
        %v1877 = vsel %vm874, %v1873, 0.0
        %v1878 = vsel %vm874, %v1874, 0.0
        %v1879 = vadd.f32 %v1877, %v1878
        %v1880 = vsel %vm874, %v1875, 0.0
        %v1881 = vadd.f32 %v1879, %v1880
        %v1882 = vsel %vm874, %v1876, 0.0
        %v1883 = vadd.f32 %v1881, %v1882
        %v1884 = vrot.slane %v1883, 4
        %v1885 = vadd.f32 %v1883, %v1884
        %v1886 = vrot.slane %v1885, 2
        %v1887 = vadd.f32 %v1885, %v1886
        %v1888 = vrot.slane %v1887, 1
        %v1889 = vadd.f32 %v1887, %v1888
        %v1890 = vmul.f32 %v1889, %v1095
        %v1891 = vadd.f32 %v1890, 1e-05
        %v1892 = vrsqrt.pop %v1891
        %v1893 = vmul.f32 %v1892, %v1891
        %v1894 = vmul.f32 %v1893, %v1892
        %v1895 = vmul.f32 0.5, %v1894
        %v1896 = vsub.f32 1.5, %v1895
        %v1897 = vmul.f32 %v1892, %v1896
        %vm1898 = vweird.f32 %v1891
        %vm1899 = vweird.f32 %v1892
        %vm1900 = vmor %vm1898, %vm1899
        %v1901 = vsel %vm1900, %v1892, %v1897
        %v1902 = vmul.f32 %v1869, %v1901
        %v1903 = vmul.f32 %v1870, %v1901
        %v1904 = vmul.f32 %v1871, %v1901
        %v1905 = vmul.f32 %v1872, %v1901
        %1907 = vset.pattern.permute.xlu0 0
        %1908 = vperm.xlu0 %1907, %v754
        %v1909 = vpop.permute.xlu0 %1908
        %1912 = vset.pattern.permute.xlu0 0
        %1913 = vperm.xlu0 %1912, %v755
        %v1914 = vpop.permute.xlu0 %1913
        %1917 = vset.pattern.permute.xlu0 0
        %1918 = vperm.xlu0 %1917, %v756
        %v1919 = vpop.permute.xlu0 %1918
        %1922 = vset.pattern.permute.xlu0 0
        %1923 = vperm.xlu0 %1922, %v757
        %v1924 = vpop.permute.xlu0 %1923
        %v1926 = vmul.f32 %v1902, %v1909
        %v1927 = vmul.f32 %v1903, %v1914
        %v1928 = vmul.f32 %v1904, %v1919
        %v1929 = vmul.f32 %v1905, %v1924
        %1931 = vset.pattern.permute.xlu0 0
        %1932 = vperm.xlu0 %1931, %v758
        %v1933 = vpop.permute.xlu0 %1932
        %1936 = vset.pattern.permute.xlu0 0
        %1937 = vperm.xlu0 %1936, %v759
        %v1938 = vpop.permute.xlu0 %1937
        %1941 = vset.pattern.permute.xlu0 0
        %1942 = vperm.xlu0 %1941, %v760
        %v1943 = vpop.permute.xlu0 %1942
        %1946 = vset.pattern.permute.xlu0 0
        %1947 = vperm.xlu0 %1946, %v761
        %v1948 = vpop.permute.xlu0 %1947
        %v1950 = vadd.f32 %v1926, %v1933
        %v1951 = vadd.f32 %v1927, %v1938
        %v1952 = vadd.f32 %v1928, %v1943
        %v1953 = vadd.f32 %v1929, %v1948
        %v1954 = vpack.c.bf16 %v1951, %v1950
        %v1955 = vpack.c.bf16 %v1953, %v1952
        %v1968 = vunpack.c.l.b16 %v762
        %v1969 = vunpack.c.l.b16 %v763
        %v1970 = vunpack.c.l.b16 %v764
        %v1971 = vunpack.c.l.b16 %v765
        %v1972 = vunpack.c.l.b16 %v766
        %v1973 = vunpack.c.l.b16 %v767
        %v1974 = vunpack.c.l.b16 %v768
        %v1975 = vunpack.c.l.b16 %v769
        %v1976 = vunpack.c.l.b16 %v770
        %v1977 = vunpack.c.l.b16 %v771
        %v1978 = vunpack.c.l.b16 %v772
        %v1979 = vunpack.c.l.b16 %v773
        %v1980 = vpack.c.b16 %v1969, %v1968
        %v1981 = vpack.c.b16 %v1971, %v1970
        %v1982 = vpack.c.b16 %v1973, %v1972
        %v1983 = vpack.c.b16 %v1975, %v1974
        %v1984 = vpack.c.b16 %v1977, %v1976
        %v1985 = vpack.c.b16 %v1979, %v1978
        %v1987 = vsel %vm1050, %v1980, 0
        %v1990 = vsel %vm1050, %v1981, 0
        %v1993 = vsel %vm1050, %v1982, 0
        %v1996 = vsel %vm1050, %v1983, 0
        %v1999 = vsel %vm1050, %v1984, 0
        %v2002 = vsel %vm1050, %v1985, 0
        %2004 = vmatpush.bf16.msra.mxu0 0
        %2005 = vmatpush.bf16.msra.mxu0 0
        %2006 = vmatpush.bf16.msra.mxu0 0
        %2007 = vmatpush.bf16.msra.mxu0 0
        %2008 = vmatpush.bf16.msra.mxu0 0
        %2009 = vmatpush.bf16.msra.mxu0 0
        %2010 = vmatpush.bf16.msra.mxu0 %v1955
        %2011 = vmatpush.bf16.msra.mxu0 %v1954
        %2012 = vmatmul.bf16.gmra.mxu0 %v1987
        %v2013 = vpop.f32.mrf.mxu0
        %v2014 = vadd.f32 0.0, %v2013
        %v2015 = vpop.f32.mrf.mxu0
        %v2016 = vadd.f32 0.0, %v2015
        %2017 = vmatmul.bf16.gmra.mxu0 %v1990
        %v2018 = vpop.f32.mrf.mxu0
        %v2019 = vadd.f32 0.0, %v2018
        %v2020 = vpop.f32.mrf.mxu0
        %v2021 = vadd.f32 0.0, %v2020
        %2022 = vmatmul.bf16.gmra.mxu0 %v1993
        %v2023 = vpop.f32.mrf.mxu0
        %v2024 = vadd.f32 0.0, %v2023
        %v2025 = vpop.f32.mrf.mxu0
        %v2026 = vadd.f32 0.0, %v2025
        %2027 = vmatmul.bf16.gmra.mxu0 %v1996
        %v2028 = vpop.f32.mrf.mxu0
        %v2029 = vadd.f32 0.0, %v2028
        %v2030 = vpop.f32.mrf.mxu0
        %v2031 = vadd.f32 0.0, %v2030
        %2032 = vmatmul.bf16.gmra.mxu0 %v1999
        %v2033 = vpop.f32.mrf.mxu0
        %v2034 = vadd.f32 0.0, %v2033
        %v2035 = vpop.f32.mrf.mxu0
        %v2036 = vadd.f32 0.0, %v2035
        %2037 = vmatmul.bf16.gmra.mxu0 %v2002
        %v2038 = vpop.f32.mrf.mxu0
        %v2039 = vadd.f32 0.0, %v2038
        %v2040 = vpop.f32.mrf.mxu0
        %v2041 = vadd.f32 0.0, %v2040
        %2042 = vdwg.mxu0
        %2043 = vxpose.xlu0.b32.start [1/16] %v2014, 128
        %2044 = vxpose.xlu0.b32.cont [2/16] %v2016, 128
        %2045 = vxpose.xlu0.b32.cont [3/16] 0.0, 128
        %2046 = vxpose.xlu0.b32.cont [4/16] 0.0, 128
        %2047 = vxpose.xlu0.b32.cont [5/16] 0.0, 128
        %2048 = vxpose.xlu0.b32.cont [6/16] 0.0, 128
        %2049 = vxpose.xlu0.b32.cont [7/16] 0.0, 128
        %2050 = vxpose.xlu0.b32.cont [8/16] 0.0, 128
        %2051 = vxpose.xlu0.b32.cont [9/16] 0.0, 128
        %2052 = vxpose.xlu0.b32.cont [10/16] 0.0, 128
        %2053 = vxpose.xlu0.b32.cont [11/16] 0.0, 128
        %2054 = vxpose.xlu0.b32.cont [12/16] 0.0, 128
        %2055 = vxpose.xlu0.b32.cont [13/16] 0.0, 128
        %2056 = vxpose.xlu0.b32.cont [14/16] 0.0, 128
        %2057 = vxpose.xlu0.b32.cont [15/16] 0.0, 128
        %2058 = vxpose.xlu0.b32.end [16/16] 0.0, 128
        %v2059 = vpop.trf.xlu0
        %v2060 = vpop.trf.xlu0
        %v2061 = vpop.trf.xlu0
        %v2062 = vpop.trf.xlu0
        %v2063 = vpop.trf.xlu0
        %v2064 = vpop.trf.xlu0
        %v2065 = vpop.trf.xlu0
        %v2066 = vpop.trf.xlu0
        %v2067 = vpop.trf.xlu0
        %v2068 = vpop.trf.xlu0
        %v2069 = vpop.trf.xlu0
        %v2070 = vpop.trf.xlu0
        %v2071 = vpop.trf.xlu0
        %v2072 = vpop.trf.xlu0
        %v2073 = vpop.trf.xlu0
        %v2074 = vpop.trf.xlu0
        %2075 = vxpose.xlu0.b32.start [1/16] %v2019, 128
        %2076 = vxpose.xlu0.b32.cont [2/16] %v2021, 128
        %2077 = vxpose.xlu0.b32.cont [3/16] 0.0, 128
        %2078 = vxpose.xlu0.b32.cont [4/16] 0.0, 128
        %2079 = vxpose.xlu0.b32.cont [5/16] 0.0, 128
        %2080 = vxpose.xlu0.b32.cont [6/16] 0.0, 128
        %2081 = vxpose.xlu0.b32.cont [7/16] 0.0, 128
        %2082 = vxpose.xlu0.b32.cont [8/16] 0.0, 128
        %2083 = vxpose.xlu0.b32.cont [9/16] 0.0, 128
        %2084 = vxpose.xlu0.b32.cont [10/16] 0.0, 128
        %2085 = vxpose.xlu0.b32.cont [11/16] 0.0, 128
        %2086 = vxpose.xlu0.b32.cont [12/16] 0.0, 128
        %2087 = vxpose.xlu0.b32.cont [13/16] 0.0, 128
        %2088 = vxpose.xlu0.b32.cont [14/16] 0.0, 128
        %2089 = vxpose.xlu0.b32.cont [15/16] 0.0, 128
        %2090 = vxpose.xlu0.b32.end [16/16] 0.0, 128
        %v2091 = vpop.trf.xlu0
        %v2092 = vpop.trf.xlu0
        %v2093 = vpop.trf.xlu0
        %v2094 = vpop.trf.xlu0
        %v2095 = vpop.trf.xlu0
        %v2096 = vpop.trf.xlu0
        %v2097 = vpop.trf.xlu0
        %v2098 = vpop.trf.xlu0
        %v2099 = vpop.trf.xlu0
        %v2100 = vpop.trf.xlu0
        %v2101 = vpop.trf.xlu0
        %v2102 = vpop.trf.xlu0
        %v2103 = vpop.trf.xlu0
        %v2104 = vpop.trf.xlu0
        %v2105 = vpop.trf.xlu0
        %v2106 = vpop.trf.xlu0
        %v2107 = vpack.c.bf16 %v2059, %v2059
        %v2108 = vpack.c.bf16 %v2060, %v2060
        %v2109 = vpack.c.bf16 %v2061, %v2061
        %v2110 = vpack.c.bf16 %v2062, %v2062
        %v2111 = vpack.c.bf16 %v2063, %v2063
        %v2112 = vpack.c.bf16 %v2064, %v2064
        %v2113 = vpack.c.bf16 %v2065, %v2065
        %v2114 = vpack.c.bf16 %v2066, %v2066
        %v2115 = vpack.c.bf16 %v2091, %v2091
        %v2116 = vpack.c.bf16 %v2092, %v2092
        %v2117 = vpack.c.bf16 %v2093, %v2093
        %v2118 = vpack.c.bf16 %v2094, %v2094
        %v2119 = vpack.c.bf16 %v2095, %v2095
        %v2120 = vpack.c.bf16 %v2096, %v2096
        %v2121 = vpack.c.bf16 %v2097, %v2097
        %v2122 = vpack.c.bf16 %v2098, %v2098
        %v2123 = vpack.c.bf16 %v2024, %v2024
        %v2124 = vpack.c.bf16 %v2026, %v2026
        %v2125 = vpack.c.bf16 %v2029, %v2029
        %v2126 = vpack.c.bf16 %v2031, %v2031
        %v2135 = vunpack.c.l.b16 %v2107
        %v2136 = vunpack.c.l.b16 %v2108
        %v2137 = vunpack.c.l.b16 %v2109
        %v2138 = vunpack.c.l.b16 %v2110
        %v2139 = vunpack.c.l.b16 %v2111
        %v2140 = vunpack.c.l.b16 %v2112
        %v2141 = vunpack.c.l.b16 %v2113
        %v2142 = vunpack.c.l.b16 %v2114
        %v2143 = vpack.c.b16 %v2136, %v2135
        %v2144 = vpack.c.b16 %v2138, %v2137
        %v2145 = vpack.c.b16 %v2140, %v2139
        %v2146 = vpack.c.b16 %v2142, %v2141
        %v2149 = vunpack.c.l.b16 %v2123
        %v2150 = vunpack.c.l.b16 %v2124
        %v2151 = vpack.c.b16 %v2150, %v2149
        %v2154 = vsel %vm1381, %v2143, 0
        %v2157 = vsel %vm1381, %v2144, 0
        %v2160 = vsel %vm1381, %v2145, 0
        %v2163 = vsel %vm1381, %v2146, 0
        %2165 = vmatpush.bf16.msra.mxu0 0
        %2166 = vmatpush.bf16.msra.mxu0 0
        %2167 = vmatpush.bf16.msra.mxu0 0
        %2168 = vmatpush.bf16.msra.mxu0 0
        %2169 = vmatpush.bf16.msra.mxu0 0
        %2170 = vmatpush.bf16.msra.mxu0 0
        %2171 = vmatpush.bf16.msra.mxu0 0
        %2172 = vmatpush.bf16.msra.mxu0 %v2151
        %2173 = vmatmul.bf16.gmra.mxu0 %v2154
        %v2174 = vpop.f32.mrf.mxu0
        %v2175 = vadd.f32 0.0, %v2174
        %v2176 = vpop.f32.mrf.mxu0
        %v2177 = vadd.f32 0.0, %v2176
        %2178 = vmatmul.bf16.gmra.mxu0 %v2157
        %v2179 = vpop.f32.mrf.mxu0
        %v2180 = vadd.f32 0.0, %v2179
        %v2181 = vpop.f32.mrf.mxu0
        %v2182 = vadd.f32 0.0, %v2181
        %2183 = vmatmul.bf16.gmra.mxu0 %v2160
        %v2184 = vpop.f32.mrf.mxu0
        %v2185 = vadd.f32 0.0, %v2184
        %v2186 = vpop.f32.mrf.mxu0
        %v2187 = vadd.f32 0.0, %v2186
        %2188 = vmatmul.bf16.gmra.mxu0 %v2163
        %v2189 = vpop.f32.mrf.mxu0
        %v2190 = vadd.f32 0.0, %v2189
        %v2191 = vpop.f32.mrf.mxu0
        %v2192 = vadd.f32 0.0, %v2191
        %2193 = vdwg.mxu0
        %v2202 = vunpack.c.l.b16 %v2115
        %v2203 = vunpack.c.l.b16 %v2116
        %v2204 = vunpack.c.l.b16 %v2117
        %v2205 = vunpack.c.l.b16 %v2118
        %v2206 = vunpack.c.l.b16 %v2119
        %v2207 = vunpack.c.l.b16 %v2120
        %v2208 = vunpack.c.l.b16 %v2121
        %v2209 = vunpack.c.l.b16 %v2122
        %v2210 = vpack.c.b16 %v2203, %v2202
        %v2211 = vpack.c.b16 %v2205, %v2204
        %v2212 = vpack.c.b16 %v2207, %v2206
        %v2213 = vpack.c.b16 %v2209, %v2208
        %v2216 = vunpack.c.l.b16 %v2125
        %v2217 = vunpack.c.l.b16 %v2126
        %v2218 = vpack.c.b16 %v2217, %v2216
        %v2221 = vsel %vm1381, %v2210, 0
        %v2224 = vsel %vm1381, %v2211, 0
        %v2227 = vsel %vm1381, %v2212, 0
        %v2230 = vsel %vm1381, %v2213, 0
        %2232 = vmatpush.bf16.msra.mxu0 0
        %2233 = vmatpush.bf16.msra.mxu0 0
        %2234 = vmatpush.bf16.msra.mxu0 0
        %2235 = vmatpush.bf16.msra.mxu0 0
        %2236 = vmatpush.bf16.msra.mxu0 0
        %2237 = vmatpush.bf16.msra.mxu0 0
        %2238 = vmatpush.bf16.msra.mxu0 0
        %2239 = vmatpush.bf16.msra.mxu0 %v2218
        %2240 = vmatmul.bf16.gmra.mxu0 %v2221
        %v2241 = vpop.f32.mrf.mxu0
        %v2242 = vadd.f32 0.0, %v2241
        %v2243 = vpop.f32.mrf.mxu0
        %v2244 = vadd.f32 0.0, %v2243
        %2245 = vmatmul.bf16.gmra.mxu0 %v2224
        %v2246 = vpop.f32.mrf.mxu0
        %v2247 = vadd.f32 0.0, %v2246
        %v2248 = vpop.f32.mrf.mxu0
        %v2249 = vadd.f32 0.0, %v2248
        %2250 = vmatmul.bf16.gmra.mxu0 %v2227
        %v2251 = vpop.f32.mrf.mxu0
        %v2252 = vadd.f32 0.0, %v2251
        %v2253 = vpop.f32.mrf.mxu0
        %v2254 = vadd.f32 0.0, %v2253
        %2255 = vmatmul.bf16.gmra.mxu0 %v2230
        %v2256 = vpop.f32.mrf.mxu0
        %v2257 = vadd.f32 0.0, %v2256
        %v2258 = vpop.f32.mrf.mxu0
        %v2259 = vadd.f32 0.0, %v2258
        %2260 = vdwg.mxu0
        %v2261 = vsel %vm874, %v2175, -inf
        %2262 = vmax.xlane.f32.xlu0 %v2261
        %v2263 = vpop.xlane.xlu0 %2262
        %v2264 = vsel %vm874, %v2177, -inf
        %2265 = vmax.xlane.f32.xlu0 %v2264
        %v2266 = vpop.xlane.xlu0 %2265
        %v2267 = vsel %vm874, %v2180, -inf
        %2268 = vmax.xlane.f32.xlu0 %v2267
        %v2269 = vpop.xlane.xlu0 %2268
        %v2270 = vsel %vm874, %v2182, -inf
        %2271 = vmax.xlane.f32.xlu0 %v2270
        %v2272 = vpop.xlane.xlu0 %2271
        %v2273 = vsel %vm874, %v2185, -inf
        %2274 = vmax.xlane.f32.xlu0 %v2273
        %v2275 = vpop.xlane.xlu0 %2274
        %v2276 = vsel %vm874, %v2187, -inf
        %2277 = vmax.xlane.f32.xlu0 %v2276
        %v2278 = vpop.xlane.xlu0 %2277
        %v2279 = vsel %vm874, %v2190, -inf
        %2280 = vmax.xlane.f32.xlu0 %v2279
        %v2281 = vpop.xlane.xlu0 %2280
        %v2282 = vsel %vm874, %v2192, -inf
        %2283 = vmax.xlane.f32.xlu0 %v2282
        %v2284 = vpop.xlane.xlu0 %2283
        %v2285 = vsel %vm874, %v2242, -inf
        %2286 = vmax.xlane.f32.xlu0 %v2285
        %v2287 = vpop.xlane.xlu0 %2286
        %v2288 = vsel %vm874, %v2244, -inf
        %2289 = vmax.xlane.f32.xlu0 %v2288
        %v2290 = vpop.xlane.xlu0 %2289
        %v2291 = vsel %vm874, %v2247, -inf
        %2292 = vmax.xlane.f32.xlu0 %v2291
        %v2293 = vpop.xlane.xlu0 %2292
        %v2294 = vsel %vm874, %v2249, -inf
        %2295 = vmax.xlane.f32.xlu0 %v2294
        %v2296 = vpop.xlane.xlu0 %2295
        %v2297 = vsel %vm874, %v2252, -inf
        %2298 = vmax.xlane.f32.xlu0 %v2297
        %v2299 = vpop.xlane.xlu0 %2298
        %v2300 = vsel %vm874, %v2254, -inf
        %2301 = vmax.xlane.f32.xlu0 %v2300
        %v2302 = vpop.xlane.xlu0 %2301
        %v2303 = vsel %vm874, %v2257, -inf
        %2304 = vmax.xlane.f32.xlu0 %v2303
        %v2305 = vpop.xlane.xlu0 %2304
        %v2306 = vsel %vm874, %v2259, -inf
        %2307 = vmax.xlane.f32.xlu0 %v2306
        %v2308 = vpop.xlane.xlu0 %2307
        %v2309 = vsub.f32 %v2175, %v2263
        %v2310 = vsub.f32 %v2177, %v2266
        %v2311 = vsub.f32 %v2180, %v2269
        %v2312 = vsub.f32 %v2182, %v2272
        %v2313 = vsub.f32 %v2185, %v2275
        %v2314 = vsub.f32 %v2187, %v2278
        %v2315 = vsub.f32 %v2190, %v2281
        %v2316 = vsub.f32 %v2192, %v2284
        %v2317 = vsub.f32 %v2242, %v2287
        %v2318 = vsub.f32 %v2244, %v2290
        %v2319 = vsub.f32 %v2247, %v2293
        %v2320 = vsub.f32 %v2249, %v2296
        %v2321 = vsub.f32 %v2252, %v2299
        %v2322 = vsub.f32 %v2254, %v2302
        %v2323 = vsub.f32 %v2257, %v2305
        %v2324 = vsub.f32 %v2259, %v2308
        %v2325 = vmul.f32 %v2309, 1.442695
        %v2326 = vpow.pop %v2325
        %v2327 = vmul.f32 %v2310, 1.442695
        %v2328 = vpow.pop %v2327
        %v2329 = vmul.f32 %v2311, 1.442695
        %v2330 = vpow.pop %v2329
        %v2331 = vmul.f32 %v2312, 1.442695
        %v2332 = vpow.pop %v2331
        %v2333 = vmul.f32 %v2313, 1.442695
        %v2334 = vpow.pop %v2333
        %v2335 = vmul.f32 %v2314, 1.442695
        %v2336 = vpow.pop %v2335
        %v2337 = vmul.f32 %v2315, 1.442695
        %v2338 = vpow.pop %v2337
        %v2339 = vmul.f32 %v2316, 1.442695
        %v2340 = vpow.pop %v2339
        %v2341 = vmul.f32 %v2317, 1.442695
        %v2342 = vpow.pop %v2341
        %v2343 = vmul.f32 %v2318, 1.442695
        %v2344 = vpow.pop %v2343
        %v2345 = vmul.f32 %v2319, 1.442695
        %v2346 = vpow.pop %v2345
        %v2347 = vmul.f32 %v2320, 1.442695
        %v2348 = vpow.pop %v2347
        %v2349 = vmul.f32 %v2321, 1.442695
        %v2350 = vpow.pop %v2349
        %v2351 = vmul.f32 %v2322, 1.442695
        %v2352 = vpow.pop %v2351
        %v2353 = vmul.f32 %v2323, 1.442695
        %v2354 = vpow.pop %v2353
        %v2355 = vmul.f32 %v2324, 1.442695
        %v2356 = vpow.pop %v2355
        %v2357 = vsel %vm874, %v2326, 0.0
        %2358 = vadd.xlane.f32.xlu0 %v2357
        %v2359 = vpop.xlane.xlu0 %2358
        %v2360 = vsel %vm874, %v2328, 0.0
        %2361 = vadd.xlane.f32.xlu0 %v2360
        %v2362 = vpop.xlane.xlu0 %2361
        %v2363 = vsel %vm874, %v2330, 0.0
        %2364 = vadd.xlane.f32.xlu0 %v2363
        %v2365 = vpop.xlane.xlu0 %2364
        %v2366 = vsel %vm874, %v2332, 0.0
        %2367 = vadd.xlane.f32.xlu0 %v2366
        %v2368 = vpop.xlane.xlu0 %2367
        %v2369 = vsel %vm874, %v2334, 0.0
        %2370 = vadd.xlane.f32.xlu0 %v2369
        %v2371 = vpop.xlane.xlu0 %2370
        %v2372 = vsel %vm874, %v2336, 0.0
        %2373 = vadd.xlane.f32.xlu0 %v2372
        %v2374 = vpop.xlane.xlu0 %2373
        %v2375 = vsel %vm874, %v2338, 0.0
        %2376 = vadd.xlane.f32.xlu0 %v2375
        %v2377 = vpop.xlane.xlu0 %2376
        %v2378 = vsel %vm874, %v2340, 0.0
        %2379 = vadd.xlane.f32.xlu0 %v2378
        %v2380 = vpop.xlane.xlu0 %2379
        %v2381 = vsel %vm874, %v2342, 0.0
        %2382 = vadd.xlane.f32.xlu0 %v2381
        %v2383 = vpop.xlane.xlu0 %2382
        %v2384 = vsel %vm874, %v2344, 0.0
        %2385 = vadd.xlane.f32.xlu0 %v2384
        %v2386 = vpop.xlane.xlu0 %2385
        %v2387 = vsel %vm874, %v2346, 0.0
        %2388 = vadd.xlane.f32.xlu0 %v2387
        %v2389 = vpop.xlane.xlu0 %2388
        %v2390 = vsel %vm874, %v2348, 0.0
        %2391 = vadd.xlane.f32.xlu0 %v2390
        %v2392 = vpop.xlane.xlu0 %2391
        %v2393 = vsel %vm874, %v2350, 0.0
        %2394 = vadd.xlane.f32.xlu0 %v2393
        %v2395 = vpop.xlane.xlu0 %2394
        %v2396 = vsel %vm874, %v2352, 0.0
        %2397 = vadd.xlane.f32.xlu0 %v2396
        %v2398 = vpop.xlane.xlu0 %2397
        %v2399 = vsel %vm874, %v2354, 0.0
        %2400 = vadd.xlane.f32.xlu0 %v2399
        %v2401 = vpop.xlane.xlu0 %2400
        %v2402 = vsel %vm874, %v2356, 0.0
        %2403 = vadd.xlane.f32.xlu0 %v2402
        %v2404 = vpop.xlane.xlu0 %2403
        %v2405 = vrcp.pop %v2359
        %v2406 = vrcp.pop %v2362
        %v2407 = vrcp.pop %v2365
        %v2408 = vrcp.pop %v2368
        %v2409 = vrcp.pop %v2371
        %v2410 = vrcp.pop %v2374
        %v2411 = vrcp.pop %v2377
        %v2412 = vrcp.pop %v2380
        %v2413 = vrcp.pop %v2383
        %v2414 = vrcp.pop %v2386
        %v2415 = vrcp.pop %v2389
        %v2416 = vrcp.pop %v2392
        %v2417 = vrcp.pop %v2395
        %v2418 = vrcp.pop %v2398
        %v2419 = vrcp.pop %v2401
        %v2420 = vrcp.pop %v2404
        %v2421 = vmul.f32 %v2326, %v2405
        %v2422 = vmul.f32 %v2328, %v2406
        %v2423 = vmul.f32 %v2330, %v2407
        %v2424 = vmul.f32 %v2332, %v2408
        %v2425 = vmul.f32 %v2334, %v2409
        %v2426 = vmul.f32 %v2336, %v2410
        %v2427 = vmul.f32 %v2338, %v2411
        %v2428 = vmul.f32 %v2340, %v2412
        %v2429 = vmul.f32 %v2342, %v2413
        %v2430 = vmul.f32 %v2344, %v2414
        %v2431 = vmul.f32 %v2346, %v2415
        %v2432 = vmul.f32 %v2348, %v2416
        %v2433 = vmul.f32 %v2350, %v2417
        %v2434 = vmul.f32 %v2352, %v2418
        %v2435 = vmul.f32 %v2354, %v2419
        %v2436 = vmul.f32 %v2356, %v2420
        %v2437 = vpack.c.bf16 %v2034, %v2034
        %v2438 = vpack.c.bf16 %v2036, %v2036
        %v2439 = vpack.c.bf16 %v2039, %v2039
        %v2440 = vpack.c.bf16 %v2041, %v2041
        %v2441 = vpack.c.bf16 %v2421, %v2421
        %v2442 = vpack.c.bf16 %v2422, %v2422
        %v2443 = vpack.c.bf16 %v2423, %v2423
        %v2444 = vpack.c.bf16 %v2424, %v2424
        %v2445 = vpack.c.bf16 %v2425, %v2425
        %v2446 = vpack.c.bf16 %v2426, %v2426
        %v2447 = vpack.c.bf16 %v2427, %v2427
        %v2448 = vpack.c.bf16 %v2428, %v2428
        %v2449 = vpack.c.bf16 %v2429, %v2429
        %v2450 = vpack.c.bf16 %v2430, %v2430
        %v2451 = vpack.c.bf16 %v2431, %v2431
        %v2452 = vpack.c.bf16 %v2432, %v2432
        %v2453 = vpack.c.bf16 %v2433, %v2433
        %v2454 = vpack.c.bf16 %v2434, %v2434
        %v2455 = vpack.c.bf16 %v2435, %v2435
        %v2456 = vpack.c.bf16 %v2436, %v2436
        %v2459 = vunpack.c.l.b16 %v2437
        %v2460 = vunpack.c.l.b16 %v2438
        %v2461 = vpack.c.b16 %v2460, %v2459
        %v2470 = vunpack.c.l.b16 %v2441
        %v2471 = vunpack.c.l.b16 %v2442
        %v2472 = vunpack.c.l.b16 %v2443
        %v2473 = vunpack.c.l.b16 %v2444
        %v2474 = vunpack.c.l.b16 %v2445
        %v2475 = vunpack.c.l.b16 %v2446
        %v2476 = vunpack.c.l.b16 %v2447
        %v2477 = vunpack.c.l.b16 %v2448
        %v2478 = vpack.c.b16 %v2471, %v2470
        %v2479 = vpack.c.b16 %v2473, %v2472
        %v2480 = vpack.c.b16 %v2475, %v2474
        %v2481 = vpack.c.b16 %v2477, %v2476
        %v2483 = vsel %vm874, %v2461, 0
        %v2486 = vsel %vm874, %v2478, 0
        %v2489 = vsel %vm874, %v2479, 0
        %v2492 = vsel %vm874, %v2480, 0
        %v2495 = vsel %vm874, %v2481, 0
        %2497 = vmatpush.bf16.xpose.msra.mxu0 0
        %2498 = vmatpush.bf16.xpose.msra.mxu0 0
        %2499 = vmatpush.bf16.xpose.msra.mxu0 0
        %2500 = vmatpush.bf16.xpose.msra.mxu0 0
        %2501 = vmatpush.bf16.xpose.msra.mxu0 %v2495
        %2502 = vmatpush.bf16.xpose.msra.mxu0 %v2492
        %2503 = vmatpush.bf16.xpose.msra.mxu0 %v2489
        %2504 = vmatpush.bf16.xpose.msra.mxu0 %v2486
        %2505 = vmatmul.bf16.gmra.mxu0 %v2483
        %v2506 = vpop.f32.mrf.mxu0
        %v2507 = vadd.f32 0.0, %v2506
        %v2508 = vpop.f32.mrf.mxu0
        %v2509 = vadd.f32 0.0, %v2508
        %2510 = vdwg.mxu0
        %v2513 = vunpack.c.l.b16 %v2439
        %v2514 = vunpack.c.l.b16 %v2440
        %v2515 = vpack.c.b16 %v2514, %v2513
        %v2524 = vunpack.c.l.b16 %v2449
        %v2525 = vunpack.c.l.b16 %v2450
        %v2526 = vunpack.c.l.b16 %v2451
        %v2527 = vunpack.c.l.b16 %v2452
        %v2528 = vunpack.c.l.b16 %v2453
        %v2529 = vunpack.c.l.b16 %v2454
        %v2530 = vunpack.c.l.b16 %v2455
        %v2531 = vunpack.c.l.b16 %v2456
        %v2532 = vpack.c.b16 %v2525, %v2524
        %v2533 = vpack.c.b16 %v2527, %v2526
        %v2534 = vpack.c.b16 %v2529, %v2528
        %v2535 = vpack.c.b16 %v2531, %v2530
        %v2537 = vsel %vm874, %v2515, 0
        %v2540 = vsel %vm874, %v2532, 0
        %v2543 = vsel %vm874, %v2533, 0
        %v2546 = vsel %vm874, %v2534, 0
        %v2549 = vsel %vm874, %v2535, 0
        %2551 = vmatpush.bf16.xpose.msra.mxu0 0
        %2552 = vmatpush.bf16.xpose.msra.mxu0 0
        %2553 = vmatpush.bf16.xpose.msra.mxu0 0
        %2554 = vmatpush.bf16.xpose.msra.mxu0 0
        %2555 = vmatpush.bf16.xpose.msra.mxu0 %v2549
        %2556 = vmatpush.bf16.xpose.msra.mxu0 %v2546
        %2557 = vmatpush.bf16.xpose.msra.mxu0 %v2543
        %2558 = vmatpush.bf16.xpose.msra.mxu0 %v2540
        %2559 = vmatmul.bf16.gmra.mxu0 %v2537
        %v2560 = vpop.f32.mrf.mxu0
        %v2561 = vadd.f32 0.0, %v2560
        %v2562 = vpop.f32.mrf.mxu0
        %v2563 = vadd.f32 0.0, %v2562
        %2564 = vdwg.mxu0
        %v2565 = vpack.c.bf16 %v2509, %v2507
        %v2566 = vpack.c.bf16 %v2563, %v2561
        %2568 = vset.pattern.permute.xlu0 0
        %2569 = vperm.xlu0 %2568, %v778
        %v2570 = vpop.permute.xlu0 %2569
        %2573 = vset.pattern.permute.xlu0 0
        %2574 = vperm.xlu0 %2573, %v779
        %v2575 = vpop.permute.xlu0 %2574
        %2578 = vset.pattern.permute.xlu0 0
        %2579 = vperm.xlu0 %2578, %v780
        %v2580 = vpop.permute.xlu0 %2579
        %2583 = vset.pattern.permute.xlu0 0
        %2584 = vperm.xlu0 %2583, %v781
        %v2585 = vpop.permute.xlu0 %2584
        %v2591 = vunpack.c.l.b16 %v774
        %v2592 = vunpack.c.l.b16 %v775
        %v2593 = vunpack.c.l.b16 %v776
        %v2594 = vunpack.c.l.b16 %v777
        %v2595 = vpack.c.b16 %v2592, %v2591
        %v2596 = vpack.c.b16 %v2594, %v2593
        %v2598 = vsel %vm1050, %v2595, 0
        %v2601 = vsel %vm1050, %v2596, 0
        %2603 = vmatpush.bf16.msra.mxu0 0
        %2604 = vmatpush.bf16.msra.mxu0 0
        %2605 = vmatpush.bf16.msra.mxu0 0
        %2606 = vmatpush.bf16.msra.mxu0 0
        %2607 = vmatpush.bf16.msra.mxu0 0
        %2608 = vmatpush.bf16.msra.mxu0 0
        %2609 = vmatpush.bf16.msra.mxu0 %v2566
        %2610 = vmatpush.bf16.msra.mxu0 %v2565
        %2611 = vmatmul.bf16.gmra.mxu0 %v2598
        %v2612 = vpop.f32.mrf.mxu0
        %v2613 = vadd.f32 %v2570, %v2612
        %v2614 = vpop.f32.mrf.mxu0
        %v2615 = vadd.f32 %v2575, %v2614
        %2616 = vmatmul.bf16.gmra.mxu0 %v2601
        %v2617 = vpop.f32.mrf.mxu0
        %v2618 = vadd.f32 %v2580, %v2617
        %v2619 = vpop.f32.mrf.mxu0
        %v2620 = vadd.f32 %v2585, %v2619
        %2621 = vdwg.mxu0
        %v2622 = vadd.f32 %v1851, %v2613
        %v2623 = vadd.f32 %v1852, %v2615
        %v2624 = vadd.f32 %v1853, %v2618
        %v2625 = vadd.f32 %v1854, %v2620
        %v2626 = vsel %vm874, %v2622, 0.0
        %v2627 = vsel %vm874, %v2623, 0.0
        %v2628 = vadd.f32 %v2626, %v2627
        %v2629 = vsel %vm874, %v2624, 0.0
        %v2630 = vadd.f32 %v2628, %v2629
        %v2631 = vsel %vm874, %v2625, 0.0
        %v2632 = vadd.f32 %v2630, %v2631
        %v2633 = vrot.slane %v2632, 4
        %v2634 = vadd.f32 %v2632, %v2633
        %v2635 = vrot.slane %v2634, 2
        %v2636 = vadd.f32 %v2634, %v2635
        %v2637 = vrot.slane %v2636, 1
        %v2638 = vadd.f32 %v2636, %v2637
        %v2639 = vmul.f32 %v2638, %v1095
        %v2640 = vsub.f32 %v2622, %v2639
        %v2641 = vsub.f32 %v2623, %v2639
        %v2642 = vsub.f32 %v2624, %v2639
        %v2643 = vsub.f32 %v2625, %v2639
        %v2644 = vmul.f32 %v2640, %v2640
        %v2645 = vmul.f32 %v2641, %v2641
        %v2646 = vmul.f32 %v2642, %v2642
        %v2647 = vmul.f32 %v2643, %v2643
        %v2648 = vsel %vm874, %v2644, 0.0
        %v2649 = vsel %vm874, %v2645, 0.0
        %v2650 = vadd.f32 %v2648, %v2649
        %v2651 = vsel %vm874, %v2646, 0.0
        %v2652 = vadd.f32 %v2650, %v2651
        %v2653 = vsel %vm874, %v2647, 0.0
        %v2654 = vadd.f32 %v2652, %v2653
        %v2655 = vrot.slane %v2654, 4
        %v2656 = vadd.f32 %v2654, %v2655
        %v2657 = vrot.slane %v2656, 2
        %v2658 = vadd.f32 %v2656, %v2657
        %v2659 = vrot.slane %v2658, 1
        %v2660 = vadd.f32 %v2658, %v2659
        %v2661 = vmul.f32 %v2660, %v1095
        %v2662 = vadd.f32 %v2661, 1e-05
        %v2663 = vrsqrt.pop %v2662
        %v2664 = vmul.f32 %v2663, %v2662
        %v2665 = vmul.f32 %v2664, %v2663
        %v2666 = vmul.f32 0.5, %v2665
        %v2667 = vsub.f32 1.5, %v2666
        %v2668 = vmul.f32 %v2663, %v2667
        %vm2669 = vweird.f32 %v2662
        %vm2670 = vweird.f32 %v2663
        %vm2671 = vmor %vm2669, %vm2670
        %v2672 = vsel %vm2671, %v2663, %v2668
        %v2673 = vmul.f32 %v2640, %v2672
        %v2674 = vmul.f32 %v2641, %v2672
        %v2675 = vmul.f32 %v2642, %v2672
        %v2676 = vmul.f32 %v2643, %v2672
        %2678 = vset.pattern.permute.xlu0 0
        %2679 = vperm.xlu0 %2678, %v782
        %v2680 = vpop.permute.xlu0 %2679
        %2683 = vset.pattern.permute.xlu0 0
        %2684 = vperm.xlu0 %2683, %v783
        %v2685 = vpop.permute.xlu0 %2684
        %2688 = vset.pattern.permute.xlu0 0
        %2689 = vperm.xlu0 %2688, %v784
        %v2690 = vpop.permute.xlu0 %2689
        %2693 = vset.pattern.permute.xlu0 0
        %2694 = vperm.xlu0 %2693, %v785
        %v2695 = vpop.permute.xlu0 %2694
        %v2697 = vmul.f32 %v2673, %v2680
        %v2698 = vmul.f32 %v2674, %v2685
        %v2699 = vmul.f32 %v2675, %v2690
        %v2700 = vmul.f32 %v2676, %v2695
        %2702 = vset.pattern.permute.xlu0 0
        %2703 = vperm.xlu0 %2702, %v786
        %v2704 = vpop.permute.xlu0 %2703
        %2707 = vset.pattern.permute.xlu0 0
        %2708 = vperm.xlu0 %2707, %v787
        %v2709 = vpop.permute.xlu0 %2708
        %2712 = vset.pattern.permute.xlu0 0
        %2713 = vperm.xlu0 %2712, %v788
        %v2714 = vpop.permute.xlu0 %2713
        %2717 = vset.pattern.permute.xlu0 0
        %2718 = vperm.xlu0 %2717, %v789
        %v2719 = vpop.permute.xlu0 %2718
        %v2721 = vadd.f32 %v2697, %v2704
        %v2722 = vadd.f32 %v2698, %v2709
        %v2723 = vadd.f32 %v2699, %v2714
        %v2724 = vadd.f32 %v2700, %v2719
        %v2725 = vpack.c.bf16 %v2722, %v2721
        %v2726 = vpack.c.bf16 %v2724, %v2723
        %2728 = vset.pattern.permute.xlu0 0
        %2729 = vperm.xlu0 %2728, %v822
        %v2730 = vpop.permute.xlu0 %2729
        %2733 = vset.pattern.permute.xlu0 0
        %2734 = vperm.xlu0 %2733, %v823
        %v2735 = vpop.permute.xlu0 %2734
        %2738 = vset.pattern.permute.xlu0 0
        %2739 = vperm.xlu0 %2738, %v824
        %v2740 = vpop.permute.xlu0 %2739
        %2743 = vset.pattern.permute.xlu0 0
        %2744 = vperm.xlu0 %2743, %v825
        %v2745 = vpop.permute.xlu0 %2744
        %2748 = vset.pattern.permute.xlu0 0
        %2749 = vperm.xlu0 %2748, %v826
        %v2750 = vpop.permute.xlu0 %2749
        %2753 = vset.pattern.permute.xlu0 0
        %2754 = vperm.xlu0 %2753, %v827
        %v2755 = vpop.permute.xlu0 %2754
        %2758 = vset.pattern.permute.xlu0 0
        %2759 = vperm.xlu0 %2758, %v828
        %v2760 = vpop.permute.xlu0 %2759
        %2763 = vset.pattern.permute.xlu0 0
        %2764 = vperm.xlu0 %2763, %v829
        %v2765 = vpop.permute.xlu0 %2764
        %2768 = vset.pattern.permute.xlu0 0
        %2769 = vperm.xlu0 %2768, %v830
        %v2770 = vpop.permute.xlu0 %2769
        %2773 = vset.pattern.permute.xlu0 0
        %2774 = vperm.xlu0 %2773, %v831
        %v2775 = vpop.permute.xlu0 %2774
        %2778 = vset.pattern.permute.xlu0 0
        %2779 = vperm.xlu0 %2778, %v832
        %v2780 = vpop.permute.xlu0 %2779
        %2783 = vset.pattern.permute.xlu0 0
        %2784 = vperm.xlu0 %2783, %v833
        %v2785 = vpop.permute.xlu0 %2784
        %2788 = vset.pattern.permute.xlu0 0
        %2789 = vperm.xlu0 %2788, %v834
        %v2790 = vpop.permute.xlu0 %2789
        %2793 = vset.pattern.permute.xlu0 0
        %2794 = vperm.xlu0 %2793, %v835
        %v2795 = vpop.permute.xlu0 %2794
        %2798 = vset.pattern.permute.xlu0 0
        %2799 = vperm.xlu0 %2798, %v836
        %v2800 = vpop.permute.xlu0 %2799
        %2803 = vset.pattern.permute.xlu0 0
        %2804 = vperm.xlu0 %2803, %v837
        %v2805 = vpop.permute.xlu0 %2804
        %2808 = vset.pattern.permute.xlu0 0
        %2809 = vperm.xlu0 %2808, %v838
        %v2810 = vpop.permute.xlu0 %2809
        %2813 = vset.pattern.permute.xlu0 0
        %2814 = vperm.xlu0 %2813, %v839
        %v2815 = vpop.permute.xlu0 %2814
        %2818 = vset.pattern.permute.xlu0 0
        %2819 = vperm.xlu0 %2818, %v840
        %v2820 = vpop.permute.xlu0 %2819
        %2823 = vset.pattern.permute.xlu0 0
        %2824 = vperm.xlu0 %2823, %v841
        %v2825 = vpop.permute.xlu0 %2824
        %2828 = vset.pattern.permute.xlu0 0
        %2829 = vperm.xlu0 %2828, %v842
        %v2830 = vpop.permute.xlu0 %2829
        %2833 = vset.pattern.permute.xlu0 0
        %2834 = vperm.xlu0 %2833, %v843
        %v2835 = vpop.permute.xlu0 %2834
        %2838 = vset.pattern.permute.xlu0 0
        %2839 = vperm.xlu0 %2838, %v844
        %v2840 = vpop.permute.xlu0 %2839
        %2843 = vset.pattern.permute.xlu0 0
        %2844 = vperm.xlu0 %2843, %v845
        %v2845 = vpop.permute.xlu0 %2844
        %2848 = vset.pattern.permute.xlu0 0
        %2849 = vperm.xlu0 %2848, %v846
        %v2850 = vpop.permute.xlu0 %2849
        %2853 = vset.pattern.permute.xlu0 0
        %2854 = vperm.xlu0 %2853, %v847
        %v2855 = vpop.permute.xlu0 %2854
        %2858 = vset.pattern.permute.xlu0 0
        %2859 = vperm.xlu0 %2858, %v848
        %v2860 = vpop.permute.xlu0 %2859
        %2863 = vset.pattern.permute.xlu0 0
        %2864 = vperm.xlu0 %2863, %v849
        %v2865 = vpop.permute.xlu0 %2864
        %2868 = vset.pattern.permute.xlu0 0
        %2869 = vperm.xlu0 %2868, %v850
        %v2870 = vpop.permute.xlu0 %2869
        %2873 = vset.pattern.permute.xlu0 0
        %2874 = vperm.xlu0 %2873, %v851
        %v2875 = vpop.permute.xlu0 %2874
        %2878 = vset.pattern.permute.xlu0 0
        %2879 = vperm.xlu0 %2878, %v852
        %v2880 = vpop.permute.xlu0 %2879
        %2883 = vset.pattern.permute.xlu0 0
        %2884 = vperm.xlu0 %2883, %v853
        %v2885 = vpop.permute.xlu0 %2884
        %v2919 = vunpack.c.l.b16 %v790
        %v2920 = vunpack.c.l.b16 %v791
        %v2921 = vunpack.c.l.b16 %v792
        %v2922 = vunpack.c.l.b16 %v793
        %v2923 = vunpack.c.l.b16 %v794
        %v2924 = vunpack.c.l.b16 %v795
        %v2925 = vunpack.c.l.b16 %v796
        %v2926 = vunpack.c.l.b16 %v797
        %v2927 = vunpack.c.l.b16 %v798
        %v2928 = vunpack.c.l.b16 %v799
        %v2929 = vunpack.c.l.b16 %v800
        %v2930 = vunpack.c.l.b16 %v801
        %v2931 = vunpack.c.l.b16 %v802
        %v2932 = vunpack.c.l.b16 %v803
        %v2933 = vunpack.c.l.b16 %v804
        %v2934 = vunpack.c.l.b16 %v805
        %v2935 = vunpack.c.l.b16 %v806
        %v2936 = vunpack.c.l.b16 %v807
        %v2937 = vunpack.c.l.b16 %v808
        %v2938 = vunpack.c.l.b16 %v809
        %v2939 = vunpack.c.l.b16 %v810
        %v2940 = vunpack.c.l.b16 %v811
        %v2941 = vunpack.c.l.b16 %v812
        %v2942 = vunpack.c.l.b16 %v813
        %v2943 = vunpack.c.l.b16 %v814
        %v2944 = vunpack.c.l.b16 %v815
        %v2945 = vunpack.c.l.b16 %v816
        %v2946 = vunpack.c.l.b16 %v817
        %v2947 = vunpack.c.l.b16 %v818
        %v2948 = vunpack.c.l.b16 %v819
        %v2949 = vunpack.c.l.b16 %v820
        %v2950 = vunpack.c.l.b16 %v821
        %v2951 = vpack.c.b16 %v2920, %v2919
        %v2952 = vpack.c.b16 %v2922, %v2921
        %v2953 = vpack.c.b16 %v2924, %v2923
        %v2954 = vpack.c.b16 %v2926, %v2925
        %v2955 = vpack.c.b16 %v2928, %v2927
        %v2956 = vpack.c.b16 %v2930, %v2929
        %v2957 = vpack.c.b16 %v2932, %v2931
        %v2958 = vpack.c.b16 %v2934, %v2933
        %v2959 = vpack.c.b16 %v2936, %v2935
        %v2960 = vpack.c.b16 %v2938, %v2937
        %v2961 = vpack.c.b16 %v2940, %v2939
        %v2962 = vpack.c.b16 %v2942, %v2941
        %v2963 = vpack.c.b16 %v2944, %v2943
        %v2964 = vpack.c.b16 %v2946, %v2945
        %v2965 = vpack.c.b16 %v2948, %v2947
        %v2966 = vpack.c.b16 %v2950, %v2949
        %v2968 = vsel %vm1050, %v2951, 0
        %v2971 = vsel %vm1050, %v2952, 0
        %v2974 = vsel %vm1050, %v2953, 0
        %v2977 = vsel %vm1050, %v2954, 0
        %v2980 = vsel %vm1050, %v2955, 0
        %v2983 = vsel %vm1050, %v2956, 0
        %v2986 = vsel %vm1050, %v2957, 0
        %v2989 = vsel %vm1050, %v2958, 0
        %v2992 = vsel %vm1050, %v2959, 0
        %v2995 = vsel %vm1050, %v2960, 0
        %v2998 = vsel %vm1050, %v2961, 0
        %v3001 = vsel %vm1050, %v2962, 0
        %v3004 = vsel %vm1050, %v2963, 0
        %v3007 = vsel %vm1050, %v2964, 0
        %v3010 = vsel %vm1050, %v2965, 0
        %v3013 = vsel %vm1050, %v2966, 0
        %3015 = vmatpush.bf16.msra.mxu0 0
        %3016 = vmatpush.bf16.msra.mxu0 0
        %3017 = vmatpush.bf16.msra.mxu0 0
        %3018 = vmatpush.bf16.msra.mxu0 0
        %3019 = vmatpush.bf16.msra.mxu0 0
        %3020 = vmatpush.bf16.msra.mxu0 0
        %3021 = vmatpush.bf16.msra.mxu0 %v2726
        %3022 = vmatpush.bf16.msra.mxu0 %v2725
        %3023 = vmatmul.bf16.gmra.mxu0 %v2968
        %v3024 = vpop.f32.mrf.mxu0
        %v3025 = vadd.f32 %v2730, %v3024
        %v3026 = vpop.f32.mrf.mxu0
        %v3027 = vadd.f32 %v2735, %v3026
        %3028 = vmatmul.bf16.gmra.mxu0 %v2971
        %v3029 = vpop.f32.mrf.mxu0
        %v3030 = vadd.f32 %v2740, %v3029
        %v3031 = vpop.f32.mrf.mxu0
        %v3032 = vadd.f32 %v2745, %v3031
        %3033 = vmatmul.bf16.gmra.mxu0 %v2974
        %v3034 = vpop.f32.mrf.mxu0
        %v3035 = vadd.f32 %v2750, %v3034
        %v3036 = vpop.f32.mrf.mxu0
        %v3037 = vadd.f32 %v2755, %v3036
        %3038 = vmatmul.bf16.gmra.mxu0 %v2977
        %v3039 = vpop.f32.mrf.mxu0
        %v3040 = vadd.f32 %v2760, %v3039
        %v3041 = vpop.f32.mrf.mxu0
        %v3042 = vadd.f32 %v2765, %v3041
        %3043 = vmatmul.bf16.gmra.mxu0 %v2980
        %v3044 = vpop.f32.mrf.mxu0
        %v3045 = vadd.f32 %v2770, %v3044
        %v3046 = vpop.f32.mrf.mxu0
        %v3047 = vadd.f32 %v2775, %v3046
        %3048 = vmatmul.bf16.gmra.mxu0 %v2983
        %v3049 = vpop.f32.mrf.mxu0
        %v3050 = vadd.f32 %v2780, %v3049
        %v3051 = vpop.f32.mrf.mxu0
        %v3052 = vadd.f32 %v2785, %v3051
        %3053 = vmatmul.bf16.gmra.mxu0 %v2986
        %v3054 = vpop.f32.mrf.mxu0
        %v3055 = vadd.f32 %v2790, %v3054
        %v3056 = vpop.f32.mrf.mxu0
        %v3057 = vadd.f32 %v2795, %v3056
        %3058 = vmatmul.bf16.gmra.mxu0 %v2989
        %v3059 = vpop.f32.mrf.mxu0
        %v3060 = vadd.f32 %v2800, %v3059
        %v3061 = vpop.f32.mrf.mxu0
        %v3062 = vadd.f32 %v2805, %v3061
        %3063 = vmatmul.bf16.gmra.mxu0 %v2992
        %v3064 = vpop.f32.mrf.mxu0
        %v3065 = vadd.f32 %v2810, %v3064
        %v3066 = vpop.f32.mrf.mxu0
        %v3067 = vadd.f32 %v2815, %v3066
        %3068 = vmatmul.bf16.gmra.mxu0 %v2995
        %v3069 = vpop.f32.mrf.mxu0
        %v3070 = vadd.f32 %v2820, %v3069
        %v3071 = vpop.f32.mrf.mxu0
        %v3072 = vadd.f32 %v2825, %v3071
        %3073 = vmatmul.bf16.gmra.mxu0 %v2998
        %v3074 = vpop.f32.mrf.mxu0
        %v3075 = vadd.f32 %v2830, %v3074
        %v3076 = vpop.f32.mrf.mxu0
        %v3077 = vadd.f32 %v2835, %v3076
        %3078 = vmatmul.bf16.gmra.mxu0 %v3001
        %v3079 = vpop.f32.mrf.mxu0
        %v3080 = vadd.f32 %v2840, %v3079
        %v3081 = vpop.f32.mrf.mxu0
        %v3082 = vadd.f32 %v2845, %v3081
        %3083 = vmatmul.bf16.gmra.mxu0 %v3004
        %v3084 = vpop.f32.mrf.mxu0
        %v3085 = vadd.f32 %v2850, %v3084
        %v3086 = vpop.f32.mrf.mxu0
        %v3087 = vadd.f32 %v2855, %v3086
        %3088 = vmatmul.bf16.gmra.mxu0 %v3007
        %v3089 = vpop.f32.mrf.mxu0
        %v3090 = vadd.f32 %v2860, %v3089
        %v3091 = vpop.f32.mrf.mxu0
        %v3092 = vadd.f32 %v2865, %v3091
        %3093 = vmatmul.bf16.gmra.mxu0 %v3010
        %v3094 = vpop.f32.mrf.mxu0
        %v3095 = vadd.f32 %v2870, %v3094
        %v3096 = vpop.f32.mrf.mxu0
        %v3097 = vadd.f32 %v2875, %v3096
        %3098 = vmatmul.bf16.gmra.mxu0 %v3013
        %v3099 = vpop.f32.mrf.mxu0
        %v3100 = vadd.f32 %v2880, %v3099
        %v3101 = vpop.f32.mrf.mxu0
        %v3102 = vadd.f32 %v2885, %v3101
        %3103 = vdwg.mxu0
        %v3104 = vmul.f32 %v3065, 0.5
        %v3105 = vmul.f32 %v3067, 0.5
        %v3106 = vmul.f32 %v3070, 0.5
        %v3107 = vmul.f32 %v3072, 0.5
        %v3108 = vmul.f32 %v3075, 0.5
        %v3109 = vmul.f32 %v3077, 0.5
        %v3110 = vmul.f32 %v3080, 0.5
        %v3111 = vmul.f32 %v3082, 0.5
        %v3112 = vmul.f32 %v3085, 0.5
        %v3113 = vmul.f32 %v3087, 0.5
        %v3114 = vmul.f32 %v3090, 0.5
        %v3115 = vmul.f32 %v3092, 0.5
        %v3116 = vmul.f32 %v3095, 0.5
        %v3117 = vmul.f32 %v3097, 0.5
        %v3118 = vmul.f32 %v3100, 0.5
        %v3119 = vmul.f32 %v3102, 0.5
        %v3120 = vmul.f32 %v3065, 0.70710677
        %v3121 = vmul.f32 %v3067, 0.70710677
        %v3122 = vmul.f32 %v3070, 0.70710677
        %v3123 = vmul.f32 %v3072, 0.70710677
        %v3124 = vmul.f32 %v3075, 0.70710677
        %v3125 = vmul.f32 %v3077, 0.70710677
        %v3126 = vmul.f32 %v3080, 0.70710677
        %v3127 = vmul.f32 %v3082, 0.70710677
        %v3128 = vmul.f32 %v3085, 0.70710677
        %v3129 = vmul.f32 %v3087, 0.70710677
        %v3130 = vmul.f32 %v3090, 0.70710677
        %v3131 = vmul.f32 %v3092, 0.70710677
        %v3132 = vmul.f32 %v3095, 0.70710677
        %v3133 = vmul.f32 %v3097, 0.70710677
        %v3134 = vmul.f32 %v3100, 0.70710677
        %v3135 = vmul.f32 %v3102, 0.70710677
        %v3136 = vmul.f32 %v3120, %v3120
        %v3137 = vmin.f32 16.0, %v3136
        %v3138 = vmul.f32 %v3137, 2.1237322e-06
        %v3139 = vadd.f32 %v3138, 0.00028619796
        %v3140 = vmul.f32 %v3137, %v3139
        %v3141 = vadd.f32 %v3140, 0.0036580483
        %v3142 = vmul.f32 %v3137, %v3141
        %v3143 = vadd.f32 %v3142, 0.05243302
        %v3144 = vmul.f32 %v3137, %v3143
        %v3145 = vadd.f32 %v3144, 0.18741608
        %v3146 = vmul.f32 %v3137, %v3145
        %v3147 = vadd.f32 %v3146, 1.1283791
        %v3148 = vmul.f32 %v3120, %v3147
        %v3149 = vmul.f32 %v3137, 3.8918573e-05
        %v3150 = vadd.f32 %v3149, 0.001143296
        %v3151 = vmul.f32 %v3137, %v3150
        %v3152 = vadd.f32 %v3151, 0.014752088
        %v3153 = vmul.f32 %v3137, %v3152
        %v3154 = vadd.f32 %v3153, 0.112945676
        %v3155 = vmul.f32 %v3137, %v3154
        %v3156 = vadd.f32 %v3155, 0.4994258
        %v3157 = vmul.f32 %v3137, %v3156
        %v3158 = vadd.f32 %v3157, 1.0
        %v3159 = vrcp.pop %v3158
        %v3160 = vmul.f32 %v3158, %v3159
        %v3161 = vsub.f32 1.0, %v3160
        %v3162 = vmul.f32 %v3159, %v3161
        %v3163 = vadd.f32 %v3159, %v3162
        %vm3164 = vweird.f32 %v3158
        %vm3165 = vweird.f32 %v3159
        %vm3166 = vmor %vm3164, %vm3165
        %v3167 = vsel %vm3166, %v3159, %v3163
        %v3168 = vand.u32 2147483647, %v3158
        %vm3169 = vcmp.eq.f32.partialorder %v3168, 8.507059e+37
        %v3170 = vand.u32 %v3158, 2147483648
        %v3171 = vor.u32 1.1754944e-38, %v3170
        %v3172 = vsel %vm3169, %v3171, %v3167
        %v3173 = vmul.f32 %v3148, %v3172
        %v3174 = vmin.f32 %v3173, 1.0
        %v3175 = vmax.f32 %v3174, -1.0
        %v3176 = vmul.f32 %v3121, %v3121
        %v3177 = vmin.f32 16.0, %v3176
        %v3178 = vmul.f32 %v3177, 2.1237322e-06
        %v3179 = vadd.f32 %v3178, 0.00028619796
        %v3180 = vmul.f32 %v3177, %v3179
        %v3181 = vadd.f32 %v3180, 0.0036580483
        %v3182 = vmul.f32 %v3177, %v3181
        %v3183 = vadd.f32 %v3182, 0.05243302
        %v3184 = vmul.f32 %v3177, %v3183
        %v3185 = vadd.f32 %v3184, 0.18741608
        %v3186 = vmul.f32 %v3177, %v3185
        %v3187 = vadd.f32 %v3186, 1.1283791
        %v3188 = vmul.f32 %v3121, %v3187
        %v3189 = vmul.f32 %v3177, 3.8918573e-05
        %v3190 = vadd.f32 %v3189, 0.001143296
        %v3191 = vmul.f32 %v3177, %v3190
        %v3192 = vadd.f32 %v3191, 0.014752088
        %v3193 = vmul.f32 %v3177, %v3192
        %v3194 = vadd.f32 %v3193, 0.112945676
        %v3195 = vmul.f32 %v3177, %v3194
        %v3196 = vadd.f32 %v3195, 0.4994258
        %v3197 = vmul.f32 %v3177, %v3196
        %v3198 = vadd.f32 %v3197, 1.0
        %v3199 = vrcp.pop %v3198
        %v3200 = vmul.f32 %v3198, %v3199
        %v3201 = vsub.f32 1.0, %v3200
        %v3202 = vmul.f32 %v3199, %v3201
        %v3203 = vadd.f32 %v3199, %v3202
        %vm3204 = vweird.f32 %v3198
        %vm3205 = vweird.f32 %v3199
        %vm3206 = vmor %vm3204, %vm3205
        %v3207 = vsel %vm3206, %v3199, %v3203
        %v3208 = vand.u32 2147483647, %v3198
        %vm3209 = vcmp.eq.f32.partialorder %v3208, 8.507059e+37
        %v3210 = vand.u32 %v3198, 2147483648
        %v3211 = vor.u32 1.1754944e-38, %v3210
        %v3212 = vsel %vm3209, %v3211, %v3207
        %v3213 = vmul.f32 %v3188, %v3212
        %v3214 = vmin.f32 %v3213, 1.0
        %v3215 = vmax.f32 %v3214, -1.0
        %v3216 = vmul.f32 %v3122, %v3122
        %v3217 = vmin.f32 16.0, %v3216
        %v3218 = vmul.f32 %v3217, 2.1237322e-06
        %v3219 = vadd.f32 %v3218, 0.00028619796
        %v3220 = vmul.f32 %v3217, %v3219
        %v3221 = vadd.f32 %v3220, 0.0036580483
        %v3222 = vmul.f32 %v3217, %v3221
        %v3223 = vadd.f32 %v3222, 0.05243302
        %v3224 = vmul.f32 %v3217, %v3223
        %v3225 = vadd.f32 %v3224, 0.18741608
        %v3226 = vmul.f32 %v3217, %v3225
        %v3227 = vadd.f32 %v3226, 1.1283791
        %v3228 = vmul.f32 %v3122, %v3227
        %v3229 = vmul.f32 %v3217, 3.8918573e-05
        %v3230 = vadd.f32 %v3229, 0.001143296
        %v3231 = vmul.f32 %v3217, %v3230
        %v3232 = vadd.f32 %v3231, 0.014752088
        %v3233 = vmul.f32 %v3217, %v3232
        %v3234 = vadd.f32 %v3233, 0.112945676
        %v3235 = vmul.f32 %v3217, %v3234
        %v3236 = vadd.f32 %v3235, 0.4994258
        %v3237 = vmul.f32 %v3217, %v3236
        %v3238 = vadd.f32 %v3237, 1.0
        %v3239 = vrcp.pop %v3238
        %v3240 = vmul.f32 %v3238, %v3239
        %v3241 = vsub.f32 1.0, %v3240
        %v3242 = vmul.f32 %v3239, %v3241
        %v3243 = vadd.f32 %v3239, %v3242
        %vm3244 = vweird.f32 %v3238
        %vm3245 = vweird.f32 %v3239
        %vm3246 = vmor %vm3244, %vm3245
        %v3247 = vsel %vm3246, %v3239, %v3243
        %v3248 = vand.u32 2147483647, %v3238
        %vm3249 = vcmp.eq.f32.partialorder %v3248, 8.507059e+37
        %v3250 = vand.u32 %v3238, 2147483648
        %v3251 = vor.u32 1.1754944e-38, %v3250
        %v3252 = vsel %vm3249, %v3251, %v3247
        %v3253 = vmul.f32 %v3228, %v3252
        %v3254 = vmin.f32 %v3253, 1.0
        %v3255 = vmax.f32 %v3254, -1.0
        %v3256 = vmul.f32 %v3123, %v3123
        %v3257 = vmin.f32 16.0, %v3256
        %v3258 = vmul.f32 %v3257, 2.1237322e-06
        %v3259 = vadd.f32 %v3258, 0.00028619796
        %v3260 = vmul.f32 %v3257, %v3259
        %v3261 = vadd.f32 %v3260, 0.0036580483
        %v3262 = vmul.f32 %v3257, %v3261
        %v3263 = vadd.f32 %v3262, 0.05243302
        %v3264 = vmul.f32 %v3257, %v3263
        %v3265 = vadd.f32 %v3264, 0.18741608
        %v3266 = vmul.f32 %v3257, %v3265
        %v3267 = vadd.f32 %v3266, 1.1283791
        %v3268 = vmul.f32 %v3123, %v3267
        %v3269 = vmul.f32 %v3257, 3.8918573e-05
        %v3270 = vadd.f32 %v3269, 0.001143296
        %v3271 = vmul.f32 %v3257, %v3270
        %v3272 = vadd.f32 %v3271, 0.014752088
        %v3273 = vmul.f32 %v3257, %v3272
        %v3274 = vadd.f32 %v3273, 0.112945676
        %v3275 = vmul.f32 %v3257, %v3274
        %v3276 = vadd.f32 %v3275, 0.4994258
        %v3277 = vmul.f32 %v3257, %v3276
        %v3278 = vadd.f32 %v3277, 1.0
        %v3279 = vrcp.pop %v3278
        %v3280 = vmul.f32 %v3278, %v3279
        %v3281 = vsub.f32 1.0, %v3280
        %v3282 = vmul.f32 %v3279, %v3281
        %v3283 = vadd.f32 %v3279, %v3282
        %vm3284 = vweird.f32 %v3278
        %vm3285 = vweird.f32 %v3279
        %vm3286 = vmor %vm3284, %vm3285
        %v3287 = vsel %vm3286, %v3279, %v3283
        %v3288 = vand.u32 2147483647, %v3278
        %vm3289 = vcmp.eq.f32.partialorder %v3288, 8.507059e+37
        %v3290 = vand.u32 %v3278, 2147483648
        %v3291 = vor.u32 1.1754944e-38, %v3290
        %v3292 = vsel %vm3289, %v3291, %v3287
        %v3293 = vmul.f32 %v3268, %v3292
        %v3294 = vmin.f32 %v3293, 1.0
        %v3295 = vmax.f32 %v3294, -1.0
        %v3296 = vmul.f32 %v3124, %v3124
        %v3297 = vmin.f32 16.0, %v3296
        %v3298 = vmul.f32 %v3297, 2.1237322e-06
        %v3299 = vadd.f32 %v3298, 0.00028619796
        %v3300 = vmul.f32 %v3297, %v3299
        %v3301 = vadd.f32 %v3300, 0.0036580483
        %v3302 = vmul.f32 %v3297, %v3301
        %v3303 = vadd.f32 %v3302, 0.05243302
        %v3304 = vmul.f32 %v3297, %v3303
        %v3305 = vadd.f32 %v3304, 0.18741608
        %v3306 = vmul.f32 %v3297, %v3305
        %v3307 = vadd.f32 %v3306, 1.1283791
        %v3308 = vmul.f32 %v3124, %v3307
        %v3309 = vmul.f32 %v3297, 3.8918573e-05
        %v3310 = vadd.f32 %v3309, 0.001143296
        %v3311 = vmul.f32 %v3297, %v3310
        %v3312 = vadd.f32 %v3311, 0.014752088
        %v3313 = vmul.f32 %v3297, %v3312
        %v3314 = vadd.f32 %v3313, 0.112945676
        %v3315 = vmul.f32 %v3297, %v3314
        %v3316 = vadd.f32 %v3315, 0.4994258
        %v3317 = vmul.f32 %v3297, %v3316
        %v3318 = vadd.f32 %v3317, 1.0
        %v3319 = vrcp.pop %v3318
        %v3320 = vmul.f32 %v3318, %v3319
        %v3321 = vsub.f32 1.0, %v3320
        %v3322 = vmul.f32 %v3319, %v3321
        %v3323 = vadd.f32 %v3319, %v3322
        %vm3324 = vweird.f32 %v3318
        %vm3325 = vweird.f32 %v3319
        %vm3326 = vmor %vm3324, %vm3325
        %v3327 = vsel %vm3326, %v3319, %v3323
        %v3328 = vand.u32 2147483647, %v3318
        %vm3329 = vcmp.eq.f32.partialorder %v3328, 8.507059e+37
        %v3330 = vand.u32 %v3318, 2147483648
        %v3331 = vor.u32 1.1754944e-38, %v3330
        %v3332 = vsel %vm3329, %v3331, %v3327
        %v3333 = vmul.f32 %v3308, %v3332
        %v3334 = vmin.f32 %v3333, 1.0
        %v3335 = vmax.f32 %v3334, -1.0
        %v3336 = vmul.f32 %v3125, %v3125
        %v3337 = vmin.f32 16.0, %v3336
        %v3338 = vmul.f32 %v3337, 2.1237322e-06
        %v3339 = vadd.f32 %v3338, 0.00028619796
        %v3340 = vmul.f32 %v3337, %v3339
        %v3341 = vadd.f32 %v3340, 0.0036580483
        %v3342 = vmul.f32 %v3337, %v3341
        %v3343 = vadd.f32 %v3342, 0.05243302
        %v3344 = vmul.f32 %v3337, %v3343
        %v3345 = vadd.f32 %v3344, 0.18741608
        %v3346 = vmul.f32 %v3337, %v3345
        %v3347 = vadd.f32 %v3346, 1.1283791
        %v3348 = vmul.f32 %v3125, %v3347
        %v3349 = vmul.f32 %v3337, 3.8918573e-05
        %v3350 = vadd.f32 %v3349, 0.001143296
        %v3351 = vmul.f32 %v3337, %v3350
        %v3352 = vadd.f32 %v3351, 0.014752088
        %v3353 = vmul.f32 %v3337, %v3352
        %v3354 = vadd.f32 %v3353, 0.112945676
        %v3355 = vmul.f32 %v3337, %v3354
        %v3356 = vadd.f32 %v3355, 0.4994258
        %v3357 = vmul.f32 %v3337, %v3356
        %v3358 = vadd.f32 %v3357, 1.0
        %v3359 = vrcp.pop %v3358
        %v3360 = vmul.f32 %v3358, %v3359
        %v3361 = vsub.f32 1.0, %v3360
        %v3362 = vmul.f32 %v3359, %v3361
        %v3363 = vadd.f32 %v3359, %v3362
        %vm3364 = vweird.f32 %v3358
        %vm3365 = vweird.f32 %v3359
        %vm3366 = vmor %vm3364, %vm3365
        %v3367 = vsel %vm3366, %v3359, %v3363
        %v3368 = vand.u32 2147483647, %v3358
        %vm3369 = vcmp.eq.f32.partialorder %v3368, 8.507059e+37
        %v3370 = vand.u32 %v3358, 2147483648
        %v3371 = vor.u32 1.1754944e-38, %v3370
        %v3372 = vsel %vm3369, %v3371, %v3367
        %v3373 = vmul.f32 %v3348, %v3372
        %v3374 = vmin.f32 %v3373, 1.0
        %v3375 = vmax.f32 %v3374, -1.0
        %v3376 = vmul.f32 %v3126, %v3126
        %v3377 = vmin.f32 16.0, %v3376
        %v3378 = vmul.f32 %v3377, 2.1237322e-06
        %v3379 = vadd.f32 %v3378, 0.00028619796
        %v3380 = vmul.f32 %v3377, %v3379
        %v3381 = vadd.f32 %v3380, 0.0036580483
        %v3382 = vmul.f32 %v3377, %v3381
        %v3383 = vadd.f32 %v3382, 0.05243302
        %v3384 = vmul.f32 %v3377, %v3383
        %v3385 = vadd.f32 %v3384, 0.18741608
        %v3386 = vmul.f32 %v3377, %v3385
        %v3387 = vadd.f32 %v3386, 1.1283791
        %v3388 = vmul.f32 %v3126, %v3387
        %v3389 = vmul.f32 %v3377, 3.8918573e-05
        %v3390 = vadd.f32 %v3389, 0.001143296
        %v3391 = vmul.f32 %v3377, %v3390
        %v3392 = vadd.f32 %v3391, 0.014752088
        %v3393 = vmul.f32 %v3377, %v3392
        %v3394 = vadd.f32 %v3393, 0.112945676
        %v3395 = vmul.f32 %v3377, %v3394
        %v3396 = vadd.f32 %v3395, 0.4994258
        %v3397 = vmul.f32 %v3377, %v3396
        %v3398 = vadd.f32 %v3397, 1.0
        %v3399 = vrcp.pop %v3398
        %v3400 = vmul.f32 %v3398, %v3399
        %v3401 = vsub.f32 1.0, %v3400
        %v3402 = vmul.f32 %v3399, %v3401
        %v3403 = vadd.f32 %v3399, %v3402
        %vm3404 = vweird.f32 %v3398
        %vm3405 = vweird.f32 %v3399
        %vm3406 = vmor %vm3404, %vm3405
        %v3407 = vsel %vm3406, %v3399, %v3403
        %v3408 = vand.u32 2147483647, %v3398
        %vm3409 = vcmp.eq.f32.partialorder %v3408, 8.507059e+37
        %v3410 = vand.u32 %v3398, 2147483648
        %v3411 = vor.u32 1.1754944e-38, %v3410
        %v3412 = vsel %vm3409, %v3411, %v3407
        %v3413 = vmul.f32 %v3388, %v3412
        %v3414 = vmin.f32 %v3413, 1.0
        %v3415 = vmax.f32 %v3414, -1.0
        %v3416 = vmul.f32 %v3127, %v3127
        %v3417 = vmin.f32 16.0, %v3416
        %v3418 = vmul.f32 %v3417, 2.1237322e-06
        %v3419 = vadd.f32 %v3418, 0.00028619796
        %v3420 = vmul.f32 %v3417, %v3419
        %v3421 = vadd.f32 %v3420, 0.0036580483
        %v3422 = vmul.f32 %v3417, %v3421
        %v3423 = vadd.f32 %v3422, 0.05243302
        %v3424 = vmul.f32 %v3417, %v3423
        %v3425 = vadd.f32 %v3424, 0.18741608
        %v3426 = vmul.f32 %v3417, %v3425
        %v3427 = vadd.f32 %v3426, 1.1283791
        %v3428 = vmul.f32 %v3127, %v3427
        %v3429 = vmul.f32 %v3417, 3.8918573e-05
        %v3430 = vadd.f32 %v3429, 0.001143296
        %v3431 = vmul.f32 %v3417, %v3430
        %v3432 = vadd.f32 %v3431, 0.014752088
        %v3433 = vmul.f32 %v3417, %v3432
        %v3434 = vadd.f32 %v3433, 0.112945676
        %v3435 = vmul.f32 %v3417, %v3434
        %v3436 = vadd.f32 %v3435, 0.4994258
        %v3437 = vmul.f32 %v3417, %v3436
        %v3438 = vadd.f32 %v3437, 1.0
        %v3439 = vrcp.pop %v3438
        %v3440 = vmul.f32 %v3438, %v3439
        %v3441 = vsub.f32 1.0, %v3440
        %v3442 = vmul.f32 %v3439, %v3441
        %v3443 = vadd.f32 %v3439, %v3442
        %vm3444 = vweird.f32 %v3438
        %vm3445 = vweird.f32 %v3439
        %vm3446 = vmor %vm3444, %vm3445
        %v3447 = vsel %vm3446, %v3439, %v3443
        %v3448 = vand.u32 2147483647, %v3438
        %vm3449 = vcmp.eq.f32.partialorder %v3448, 8.507059e+37
        %v3450 = vand.u32 %v3438, 2147483648
        %v3451 = vor.u32 1.1754944e-38, %v3450
        %v3452 = vsel %vm3449, %v3451, %v3447
        %v3453 = vmul.f32 %v3428, %v3452
        %v3454 = vmin.f32 %v3453, 1.0
        %v3455 = vmax.f32 %v3454, -1.0
        %v3456 = vmul.f32 %v3128, %v3128
        %v3457 = vmin.f32 16.0, %v3456
        %v3458 = vmul.f32 %v3457, 2.1237322e-06
        %v3459 = vadd.f32 %v3458, 0.00028619796
        %v3460 = vmul.f32 %v3457, %v3459
        %v3461 = vadd.f32 %v3460, 0.0036580483
        %v3462 = vmul.f32 %v3457, %v3461
        %v3463 = vadd.f32 %v3462, 0.05243302
        %v3464 = vmul.f32 %v3457, %v3463
        %v3465 = vadd.f32 %v3464, 0.18741608
        %v3466 = vmul.f32 %v3457, %v3465
        %v3467 = vadd.f32 %v3466, 1.1283791
        %v3468 = vmul.f32 %v3128, %v3467
        %v3469 = vmul.f32 %v3457, 3.8918573e-05
        %v3470 = vadd.f32 %v3469, 0.001143296
        %v3471 = vmul.f32 %v3457, %v3470
        %v3472 = vadd.f32 %v3471, 0.014752088
        %v3473 = vmul.f32 %v3457, %v3472
        %v3474 = vadd.f32 %v3473, 0.112945676
        %v3475 = vmul.f32 %v3457, %v3474
        %v3476 = vadd.f32 %v3475, 0.4994258
        %v3477 = vmul.f32 %v3457, %v3476
        %v3478 = vadd.f32 %v3477, 1.0
        %v3479 = vrcp.pop %v3478
        %v3480 = vmul.f32 %v3478, %v3479
        %v3481 = vsub.f32 1.0, %v3480
        %v3482 = vmul.f32 %v3479, %v3481
        %v3483 = vadd.f32 %v3479, %v3482
        %vm3484 = vweird.f32 %v3478
        %vm3485 = vweird.f32 %v3479
        %vm3486 = vmor %vm3484, %vm3485
        %v3487 = vsel %vm3486, %v3479, %v3483
        %v3488 = vand.u32 2147483647, %v3478
        %vm3489 = vcmp.eq.f32.partialorder %v3488, 8.507059e+37
        %v3490 = vand.u32 %v3478, 2147483648
        %v3491 = vor.u32 1.1754944e-38, %v3490
        %v3492 = vsel %vm3489, %v3491, %v3487
        %v3493 = vmul.f32 %v3468, %v3492
        %v3494 = vmin.f32 %v3493, 1.0
        %v3495 = vmax.f32 %v3494, -1.0
        %v3496 = vmul.f32 %v3129, %v3129
        %v3497 = vmin.f32 16.0, %v3496
        %v3498 = vmul.f32 %v3497, 2.1237322e-06
        %v3499 = vadd.f32 %v3498, 0.00028619796
        %v3500 = vmul.f32 %v3497, %v3499
        %v3501 = vadd.f32 %v3500, 0.0036580483
        %v3502 = vmul.f32 %v3497, %v3501
        %v3503 = vadd.f32 %v3502, 0.05243302
        %v3504 = vmul.f32 %v3497, %v3503
        %v3505 = vadd.f32 %v3504, 0.18741608
        %v3506 = vmul.f32 %v3497, %v3505
        %v3507 = vadd.f32 %v3506, 1.1283791
        %v3508 = vmul.f32 %v3129, %v3507
        %v3509 = vmul.f32 %v3497, 3.8918573e-05
        %v3510 = vadd.f32 %v3509, 0.001143296
        %v3511 = vmul.f32 %v3497, %v3510
        %v3512 = vadd.f32 %v3511, 0.014752088
        %v3513 = vmul.f32 %v3497, %v3512
        %v3514 = vadd.f32 %v3513, 0.112945676
        %v3515 = vmul.f32 %v3497, %v3514
        %v3516 = vadd.f32 %v3515, 0.4994258
        %v3517 = vmul.f32 %v3497, %v3516
        %v3518 = vadd.f32 %v3517, 1.0
        %v3519 = vrcp.pop %v3518
        %v3520 = vmul.f32 %v3518, %v3519
        %v3521 = vsub.f32 1.0, %v3520
        %v3522 = vmul.f32 %v3519, %v3521
        %v3523 = vadd.f32 %v3519, %v3522
        %vm3524 = vweird.f32 %v3518
        %vm3525 = vweird.f32 %v3519
        %vm3526 = vmor %vm3524, %vm3525
        %v3527 = vsel %vm3526, %v3519, %v3523
        %v3528 = vand.u32 2147483647, %v3518
        %vm3529 = vcmp.eq.f32.partialorder %v3528, 8.507059e+37
        %v3530 = vand.u32 %v3518, 2147483648
        %v3531 = vor.u32 1.1754944e-38, %v3530
        %v3532 = vsel %vm3529, %v3531, %v3527
        %v3533 = vmul.f32 %v3508, %v3532
        %v3534 = vmin.f32 %v3533, 1.0
        %v3535 = vmax.f32 %v3534, -1.0
        %v3536 = vmul.f32 %v3130, %v3130
        %v3537 = vmin.f32 16.0, %v3536
        %v3538 = vmul.f32 %v3537, 2.1237322e-06
        %v3539 = vadd.f32 %v3538, 0.00028619796
        %v3540 = vmul.f32 %v3537, %v3539
        %v3541 = vadd.f32 %v3540, 0.0036580483
        %v3542 = vmul.f32 %v3537, %v3541
        %v3543 = vadd.f32 %v3542, 0.05243302
        %v3544 = vmul.f32 %v3537, %v3543
        %v3545 = vadd.f32 %v3544, 0.18741608
        %v3546 = vmul.f32 %v3537, %v3545
        %v3547 = vadd.f32 %v3546, 1.1283791
        %v3548 = vmul.f32 %v3130, %v3547
        %v3549 = vmul.f32 %v3537, 3.8918573e-05
        %v3550 = vadd.f32 %v3549, 0.001143296
        %v3551 = vmul.f32 %v3537, %v3550
        %v3552 = vadd.f32 %v3551, 0.014752088
        %v3553 = vmul.f32 %v3537, %v3552
        %v3554 = vadd.f32 %v3553, 0.112945676
        %v3555 = vmul.f32 %v3537, %v3554
        %v3556 = vadd.f32 %v3555, 0.4994258
        %v3557 = vmul.f32 %v3537, %v3556
        %v3558 = vadd.f32 %v3557, 1.0
        %v3559 = vrcp.pop %v3558
        %v3560 = vmul.f32 %v3558, %v3559
        %v3561 = vsub.f32 1.0, %v3560
        %v3562 = vmul.f32 %v3559, %v3561
        %v3563 = vadd.f32 %v3559, %v3562
        %vm3564 = vweird.f32 %v3558
        %vm3565 = vweird.f32 %v3559
        %vm3566 = vmor %vm3564, %vm3565
        %v3567 = vsel %vm3566, %v3559, %v3563
        %v3568 = vand.u32 2147483647, %v3558
        %vm3569 = vcmp.eq.f32.partialorder %v3568, 8.507059e+37
        %v3570 = vand.u32 %v3558, 2147483648
        %v3571 = vor.u32 1.1754944e-38, %v3570
        %v3572 = vsel %vm3569, %v3571, %v3567
        %v3573 = vmul.f32 %v3548, %v3572
        %v3574 = vmin.f32 %v3573, 1.0
        %v3575 = vmax.f32 %v3574, -1.0
        %v3576 = vmul.f32 %v3131, %v3131
        %v3577 = vmin.f32 16.0, %v3576
        %v3578 = vmul.f32 %v3577, 2.1237322e-06
        %v3579 = vadd.f32 %v3578, 0.00028619796
        %v3580 = vmul.f32 %v3577, %v3579
        %v3581 = vadd.f32 %v3580, 0.0036580483
        %v3582 = vmul.f32 %v3577, %v3581
        %v3583 = vadd.f32 %v3582, 0.05243302
        %v3584 = vmul.f32 %v3577, %v3583
        %v3585 = vadd.f32 %v3584, 0.18741608
        %v3586 = vmul.f32 %v3577, %v3585
        %v3587 = vadd.f32 %v3586, 1.1283791
        %v3588 = vmul.f32 %v3131, %v3587
        %v3589 = vmul.f32 %v3577, 3.8918573e-05
        %v3590 = vadd.f32 %v3589, 0.001143296
        %v3591 = vmul.f32 %v3577, %v3590
        %v3592 = vadd.f32 %v3591, 0.014752088
        %v3593 = vmul.f32 %v3577, %v3592
        %v3594 = vadd.f32 %v3593, 0.112945676
        %v3595 = vmul.f32 %v3577, %v3594
        %v3596 = vadd.f32 %v3595, 0.4994258
        %v3597 = vmul.f32 %v3577, %v3596
        %v3598 = vadd.f32 %v3597, 1.0
        %v3599 = vrcp.pop %v3598
        %v3600 = vmul.f32 %v3598, %v3599
        %v3601 = vsub.f32 1.0, %v3600
        %v3602 = vmul.f32 %v3599, %v3601
        %v3603 = vadd.f32 %v3599, %v3602
        %vm3604 = vweird.f32 %v3598
        %vm3605 = vweird.f32 %v3599
        %vm3606 = vmor %vm3604, %vm3605
        %v3607 = vsel %vm3606, %v3599, %v3603
        %v3608 = vand.u32 2147483647, %v3598
        %vm3609 = vcmp.eq.f32.partialorder %v3608, 8.507059e+37
        %v3610 = vand.u32 %v3598, 2147483648
        %v3611 = vor.u32 1.1754944e-38, %v3610
        %v3612 = vsel %vm3609, %v3611, %v3607
        %v3613 = vmul.f32 %v3588, %v3612
        %v3614 = vmin.f32 %v3613, 1.0
        %v3615 = vmax.f32 %v3614, -1.0
        %v3616 = vmul.f32 %v3132, %v3132
        %v3617 = vmin.f32 16.0, %v3616
        %v3618 = vmul.f32 %v3617, 2.1237322e-06
        %v3619 = vadd.f32 %v3618, 0.00028619796
        %v3620 = vmul.f32 %v3617, %v3619
        %v3621 = vadd.f32 %v3620, 0.0036580483
        %v3622 = vmul.f32 %v3617, %v3621
        %v3623 = vadd.f32 %v3622, 0.05243302
        %v3624 = vmul.f32 %v3617, %v3623
        %v3625 = vadd.f32 %v3624, 0.18741608
        %v3626 = vmul.f32 %v3617, %v3625
        %v3627 = vadd.f32 %v3626, 1.1283791
        %v3628 = vmul.f32 %v3132, %v3627
        %v3629 = vmul.f32 %v3617, 3.8918573e-05
        %v3630 = vadd.f32 %v3629, 0.001143296
        %v3631 = vmul.f32 %v3617, %v3630
        %v3632 = vadd.f32 %v3631, 0.014752088
        %v3633 = vmul.f32 %v3617, %v3632
        %v3634 = vadd.f32 %v3633, 0.112945676
        %v3635 = vmul.f32 %v3617, %v3634
        %v3636 = vadd.f32 %v3635, 0.4994258
        %v3637 = vmul.f32 %v3617, %v3636
        %v3638 = vadd.f32 %v3637, 1.0
        %v3639 = vrcp.pop %v3638
        %v3640 = vmul.f32 %v3638, %v3639
        %v3641 = vsub.f32 1.0, %v3640
        %v3642 = vmul.f32 %v3639, %v3641
        %v3643 = vadd.f32 %v3639, %v3642
        %vm3644 = vweird.f32 %v3638
        %vm3645 = vweird.f32 %v3639
        %vm3646 = vmor %vm3644, %vm3645
        %v3647 = vsel %vm3646, %v3639, %v3643
        %v3648 = vand.u32 2147483647, %v3638
        %vm3649 = vcmp.eq.f32.partialorder %v3648, 8.507059e+37
        %v3650 = vand.u32 %v3638, 2147483648
        %v3651 = vor.u32 1.1754944e-38, %v3650
        %v3652 = vsel %vm3649, %v3651, %v3647
        %v3653 = vmul.f32 %v3628, %v3652
        %v3654 = vmin.f32 %v3653, 1.0
        %v3655 = vmax.f32 %v3654, -1.0
        %v3656 = vmul.f32 %v3133, %v3133
        %v3657 = vmin.f32 16.0, %v3656
        %v3658 = vmul.f32 %v3657, 2.1237322e-06
        %v3659 = vadd.f32 %v3658, 0.00028619796
        %v3660 = vmul.f32 %v3657, %v3659
        %v3661 = vadd.f32 %v3660, 0.0036580483
        %v3662 = vmul.f32 %v3657, %v3661
        %v3663 = vadd.f32 %v3662, 0.05243302
        %v3664 = vmul.f32 %v3657, %v3663
        %v3665 = vadd.f32 %v3664, 0.18741608
        %v3666 = vmul.f32 %v3657, %v3665
        %v3667 = vadd.f32 %v3666, 1.1283791
        %v3668 = vmul.f32 %v3133, %v3667
        %v3669 = vmul.f32 %v3657, 3.8918573e-05
        %v3670 = vadd.f32 %v3669, 0.001143296
        %v3671 = vmul.f32 %v3657, %v3670
        %v3672 = vadd.f32 %v3671, 0.014752088
        %v3673 = vmul.f32 %v3657, %v3672
        %v3674 = vadd.f32 %v3673, 0.112945676
        %v3675 = vmul.f32 %v3657, %v3674
        %v3676 = vadd.f32 %v3675, 0.4994258
        %v3677 = vmul.f32 %v3657, %v3676
        %v3678 = vadd.f32 %v3677, 1.0
        %v3679 = vrcp.pop %v3678
        %v3680 = vmul.f32 %v3678, %v3679
        %v3681 = vsub.f32 1.0, %v3680
        %v3682 = vmul.f32 %v3679, %v3681
        %v3683 = vadd.f32 %v3679, %v3682
        %vm3684 = vweird.f32 %v3678
        %vm3685 = vweird.f32 %v3679
        %vm3686 = vmor %vm3684, %vm3685
        %v3687 = vsel %vm3686, %v3679, %v3683
        %v3688 = vand.u32 2147483647, %v3678
        %vm3689 = vcmp.eq.f32.partialorder %v3688, 8.507059e+37
        %v3690 = vand.u32 %v3678, 2147483648
        %v3691 = vor.u32 1.1754944e-38, %v3690
        %v3692 = vsel %vm3689, %v3691, %v3687
        %v3693 = vmul.f32 %v3668, %v3692
        %v3694 = vmin.f32 %v3693, 1.0
        %v3695 = vmax.f32 %v3694, -1.0
        %v3696 = vmul.f32 %v3134, %v3134
        %v3697 = vmin.f32 16.0, %v3696
        %v3698 = vmul.f32 %v3697, 2.1237322e-06
        %v3699 = vadd.f32 %v3698, 0.00028619796
        %v3700 = vmul.f32 %v3697, %v3699
        %v3701 = vadd.f32 %v3700, 0.0036580483
        %v3702 = vmul.f32 %v3697, %v3701
        %v3703 = vadd.f32 %v3702, 0.05243302
        %v3704 = vmul.f32 %v3697, %v3703
        %v3705 = vadd.f32 %v3704, 0.18741608
        %v3706 = vmul.f32 %v3697, %v3705
        %v3707 = vadd.f32 %v3706, 1.1283791
        %v3708 = vmul.f32 %v3134, %v3707
        %v3709 = vmul.f32 %v3697, 3.8918573e-05
        %v3710 = vadd.f32 %v3709, 0.001143296
        %v3711 = vmul.f32 %v3697, %v3710
        %v3712 = vadd.f32 %v3711, 0.014752088
        %v3713 = vmul.f32 %v3697, %v3712
        %v3714 = vadd.f32 %v3713, 0.112945676
        %v3715 = vmul.f32 %v3697, %v3714
        %v3716 = vadd.f32 %v3715, 0.4994258
        %v3717 = vmul.f32 %v3697, %v3716
        %v3718 = vadd.f32 %v3717, 1.0
        %v3719 = vrcp.pop %v3718
        %v3720 = vmul.f32 %v3718, %v3719
        %v3721 = vsub.f32 1.0, %v3720
        %v3722 = vmul.f32 %v3719, %v3721
        %v3723 = vadd.f32 %v3719, %v3722
        %vm3724 = vweird.f32 %v3718
        %vm3725 = vweird.f32 %v3719
        %vm3726 = vmor %vm3724, %vm3725
        %v3727 = vsel %vm3726, %v3719, %v3723
        %v3728 = vand.u32 2147483647, %v3718
        %vm3729 = vcmp.eq.f32.partialorder %v3728, 8.507059e+37
        %v3730 = vand.u32 %v3718, 2147483648
        %v3731 = vor.u32 1.1754944e-38, %v3730
        %v3732 = vsel %vm3729, %v3731, %v3727
        %v3733 = vmul.f32 %v3708, %v3732
        %v3734 = vmin.f32 %v3733, 1.0
        %v3735 = vmax.f32 %v3734, -1.0
        %v3736 = vmul.f32 %v3135, %v3135
        %v3737 = vmin.f32 16.0, %v3736
        %v3738 = vmul.f32 %v3737, 2.1237322e-06
        %v3739 = vadd.f32 %v3738, 0.00028619796
        %v3740 = vmul.f32 %v3737, %v3739
        %v3741 = vadd.f32 %v3740, 0.0036580483
        %v3742 = vmul.f32 %v3737, %v3741
        %v3743 = vadd.f32 %v3742, 0.05243302
        %v3744 = vmul.f32 %v3737, %v3743
        %v3745 = vadd.f32 %v3744, 0.18741608
        %v3746 = vmul.f32 %v3737, %v3745
        %v3747 = vadd.f32 %v3746, 1.1283791
        %v3748 = vmul.f32 %v3135, %v3747
        %v3749 = vmul.f32 %v3737, 3.8918573e-05
        %v3750 = vadd.f32 %v3749, 0.001143296
        %v3751 = vmul.f32 %v3737, %v3750
        %v3752 = vadd.f32 %v3751, 0.014752088
        %v3753 = vmul.f32 %v3737, %v3752
        %v3754 = vadd.f32 %v3753, 0.112945676
        %v3755 = vmul.f32 %v3737, %v3754
        %v3756 = vadd.f32 %v3755, 0.4994258
        %v3757 = vmul.f32 %v3737, %v3756
        %v3758 = vadd.f32 %v3757, 1.0
        %v3759 = vrcp.pop %v3758
        %v3760 = vmul.f32 %v3758, %v3759
        %v3761 = vsub.f32 1.0, %v3760
        %v3762 = vmul.f32 %v3759, %v3761
        %v3763 = vadd.f32 %v3759, %v3762
        %vm3764 = vweird.f32 %v3758
        %vm3765 = vweird.f32 %v3759
        %vm3766 = vmor %vm3764, %vm3765
        %v3767 = vsel %vm3766, %v3759, %v3763
        %v3768 = vand.u32 2147483647, %v3758
        %vm3769 = vcmp.eq.f32.partialorder %v3768, 8.507059e+37
        %v3770 = vand.u32 %v3758, 2147483648
        %v3771 = vor.u32 1.1754944e-38, %v3770
        %v3772 = vsel %vm3769, %v3771, %v3767
        %v3773 = vmul.f32 %v3748, %v3772
        %v3774 = vmin.f32 %v3773, 1.0
        %v3775 = vmax.f32 %v3774, -1.0
        %v3776 = vadd.f32 %v3175, 1.0
        %v3777 = vadd.f32 %v3215, 1.0
        %v3778 = vadd.f32 %v3255, 1.0
        %v3779 = vadd.f32 %v3295, 1.0
        %v3780 = vadd.f32 %v3335, 1.0
        %v3781 = vadd.f32 %v3375, 1.0
        %v3782 = vadd.f32 %v3415, 1.0
        %v3783 = vadd.f32 %v3455, 1.0
        %v3784 = vadd.f32 %v3495, 1.0
        %v3785 = vadd.f32 %v3535, 1.0
        %v3786 = vadd.f32 %v3575, 1.0
        %v3787 = vadd.f32 %v3615, 1.0
        %v3788 = vadd.f32 %v3655, 1.0
        %v3789 = vadd.f32 %v3695, 1.0
        %v3790 = vadd.f32 %v3735, 1.0
        %v3791 = vadd.f32 %v3775, 1.0
        %v3792 = vmul.f32 %v3104, %v3776
        %v3793 = vmul.f32 %v3105, %v3777
        %v3794 = vmul.f32 %v3106, %v3778
        %v3795 = vmul.f32 %v3107, %v3779
        %v3796 = vmul.f32 %v3108, %v3780
        %v3797 = vmul.f32 %v3109, %v3781
        %v3798 = vmul.f32 %v3110, %v3782
        %v3799 = vmul.f32 %v3111, %v3783
        %v3800 = vmul.f32 %v3112, %v3784
        %v3801 = vmul.f32 %v3113, %v3785
        %v3802 = vmul.f32 %v3114, %v3786
        %v3803 = vmul.f32 %v3115, %v3787
        %v3804 = vmul.f32 %v3116, %v3788
        %v3805 = vmul.f32 %v3117, %v3789
        %v3806 = vmul.f32 %v3118, %v3790
        %v3807 = vmul.f32 %v3119, %v3791
        %v3808 = vmul.f32 %v3025, %v3792
        %v3809 = vmul.f32 %v3027, %v3793
        %v3810 = vmul.f32 %v3030, %v3794
        %v3811 = vmul.f32 %v3032, %v3795
        %v3812 = vmul.f32 %v3035, %v3796
        %v3813 = vmul.f32 %v3037, %v3797
        %v3814 = vmul.f32 %v3040, %v3798
        %v3815 = vmul.f32 %v3042, %v3799
        %v3816 = vmul.f32 %v3045, %v3800
        %v3817 = vmul.f32 %v3047, %v3801
        %v3818 = vmul.f32 %v3050, %v3802
        %v3819 = vmul.f32 %v3052, %v3803
        %v3820 = vmul.f32 %v3055, %v3804
        %v3821 = vmul.f32 %v3057, %v3805
        %v3822 = vmul.f32 %v3060, %v3806
        %v3823 = vmul.f32 %v3062, %v3807
        %v3824 = vpack.c.bf16 %v3809, %v3808
        %v3825 = vpack.c.bf16 %v3811, %v3810
        %v3826 = vpack.c.bf16 %v3813, %v3812
        %v3827 = vpack.c.bf16 %v3815, %v3814
        %v3828 = vpack.c.bf16 %v3817, %v3816
        %v3829 = vpack.c.bf16 %v3819, %v3818
        %v3830 = vpack.c.bf16 %v3821, %v3820
        %v3831 = vpack.c.bf16 %v3823, %v3822
        %3833 = vset.pattern.permute.xlu0 0
        %3834 = vperm.xlu0 %3833, %v858
        %v3835 = vpop.permute.xlu0 %3834
        %3838 = vset.pattern.permute.xlu0 0
        %3839 = vperm.xlu0 %3838, %v859
        %v3840 = vpop.permute.xlu0 %3839
        %3843 = vset.pattern.permute.xlu0 0
        %3844 = vperm.xlu0 %3843, %v860
        %v3845 = vpop.permute.xlu0 %3844
        %3848 = vset.pattern.permute.xlu0 0
        %3849 = vperm.xlu0 %3848, %v861
        %v3850 = vpop.permute.xlu0 %3849
        %v3856 = vunpack.c.l.b16 %v854
        %v3857 = vunpack.c.l.b16 %v855
        %v3858 = vunpack.c.l.b16 %v856
        %v3859 = vunpack.c.l.b16 %v857
        %v3860 = vpack.c.b16 %v3857, %v3856
        %v3861 = vpack.c.b16 %v3859, %v3858
        %3864 = vmatpush.bf16.msra.mxu0 %v3831
        %3865 = vmatpush.bf16.msra.mxu0 %v3830
        %3866 = vmatpush.bf16.msra.mxu0 %v3829
        %3867 = vmatpush.bf16.msra.mxu0 %v3828
        %3868 = vmatpush.bf16.msra.mxu0 %v3827
        %3869 = vmatpush.bf16.msra.mxu0 %v3826
        %3870 = vmatpush.bf16.msra.mxu0 %v3825
        %3871 = vmatpush.bf16.msra.mxu0 %v3824
        %3872 = vmatmul.bf16.gmra.mxu0 %v3860
        %v3873 = vpop.f32.mrf.mxu0
        %v3874 = vadd.f32 %v3835, %v3873
        %v3875 = vpop.f32.mrf.mxu0
        %v3876 = vadd.f32 %v3840, %v3875
        %3877 = vmatmul.bf16.gmra.mxu0 %v3861
        %v3878 = vpop.f32.mrf.mxu0
        %v3879 = vadd.f32 %v3845, %v3878
        %v3880 = vpop.f32.mrf.mxu0
        %v3881 = vadd.f32 %v3850, %v3880
        %3882 = vdwg.mxu0
        %v3883 = vadd.f32 %v2622, %v3874
        %v3884 = vadd.f32 %v2623, %v3876
        %v3885 = vadd.f32 %v2624, %v3879
        %v3886 = vadd.f32 %v2625, %v3881
        %v3887 = vpack.c.bf16 %v3884, %v3883
        %v3888 = vpack.c.bf16 %v3886, %v3885
        %3890 = vset.pattern.permute.xlu0 0
        %3891 = vperm.xlu0 %3890, %v866
        %v3892 = vpop.permute.xlu0 %3891
        %3895 = vset.pattern.permute.xlu0 0
        %3896 = vperm.xlu0 %3895, %v867
        %v3897 = vpop.permute.xlu0 %3896
        %3900 = vset.pattern.permute.xlu0 0
        %3901 = vperm.xlu0 %3900, %v868
        %v3902 = vpop.permute.xlu0 %3901
        %3905 = vset.pattern.permute.xlu0 0
        %3906 = vperm.xlu0 %3905, %v869
        %v3907 = vpop.permute.xlu0 %3906
        %v3913 = vunpack.c.l.b16 %v862
        %v3914 = vunpack.c.l.b16 %v863
        %v3915 = vunpack.c.l.b16 %v864
        %v3916 = vunpack.c.l.b16 %v865
        %v3917 = vpack.c.b16 %v3914, %v3913
        %v3918 = vpack.c.b16 %v3916, %v3915
        %v3920 = vsel %vm1050, %v3917, 0
        %v3923 = vsel %vm1050, %v3918, 0
        %3925 = vmatpush.bf16.msra.mxu0 0
        %3926 = vmatpush.bf16.msra.mxu0 0
        %3927 = vmatpush.bf16.msra.mxu0 0
        %3928 = vmatpush.bf16.msra.mxu0 0
        %3929 = vmatpush.bf16.msra.mxu0 0
        %3930 = vmatpush.bf16.msra.mxu0 0
        %3931 = vmatpush.bf16.msra.mxu0 %v3888
        %3932 = vmatpush.bf16.msra.mxu0 %v3887
        %3933 = vmatmul.bf16.gmra.mxu0 %v3920
        %v3934 = vpop.f32.mrf.mxu0
        %v3935 = vadd.f32 %v3892, %v3934
        %v3936 = vpop.f32.mrf.mxu0
        %v3937 = vadd.f32 %v3897, %v3936
        %3938 = vmatmul.bf16.gmra.mxu0 %v3923
        %v3939 = vpop.f32.mrf.mxu0
        %v3940 = vadd.f32 %v3902, %v3939
        %v3941 = vpop.f32.mrf.mxu0
        %v3942 = vadd.f32 %v3907, %v3941
        %3943 = vdwg.mxu0
        %v3944 = vadd.f32 %v3935, %v870
        %v3945 = vadd.f32 %v3937, %v871
        %v3946 = vadd.f32 %v3940, %v872
        %v3947 = vadd.f32 %v3942, %v873
        %3948 = vst.msk [vmem:[%s703] sm:$0xff] %vm874, %v3944
        %3949 = vst.msk [vmem:[%s703 + $0x8] sm:$0xff] %vm874, %v3945
        %3950 = vst.msk [vmem:[%s703 + $0x10] sm:$0xff] %vm874, %v3946
        %3951 = vst.msk [vmem:[%s703 + $0x18] sm:$0xff] %vm874, %v3947
        %s3952 = sand.u32 %s533, 1
        %s3953 = scalar_lea.sflag [#allocation3], %s3952
        %s3954 = sand.u32 %s533, 1
        %s3955 = smul.addr %s3954, 32
        %s3956 = scalar_lea.vmem [#allocation2], %s3955
        // Predicated region
        $region113: #{tpu_custom_call.1} parent=111 // pred_check
          %p3957 = pneg %p543
        $region114: #{tpu_custom_call.1} parent=111 // pred_check_branch
          %3959 = sbr.rel (%p3957) target = $region116
        $region115: #{tpu_custom_call.1} parent=111 // pred_region
          %3961 = vsyncadd %s3953, 0
          %s3962 = smul.addr %s37, 4
          %s3963 = smul.addr %s3962, 8
          %s3964 = scalar_lea.hbm %s23, %s3963
          %s3965 = sshll.u32 %s3956, 4
          %s3966 = int_to_ptr.vmem [resolvable:$true] %s3965
          %s3967 = sshll.u32 %s3964, 4
          %s3968 = int_to_ptr.hbm [resolvable:$true] %s3967
          %3973 = dma.vmem_to_hbm [thread:$0]  %s3966, 512, %s3968, %s3953, 128, 128, 8
        $region116: #{tpu_custom_call.1} parent=111 // pred_fallthru
          _
      $region112: #{tpu_custom_call.1} parent=5 // pred_fallthru
        _
      %p3974 = scmp.le.s32.totalorder 2, %s32
      // Predicated region
      $region117: #{tpu_custom_call.1} parent=5 // pred_check
        %p3975 = pneg %p3974
      $region118: #{tpu_custom_call.1} parent=5 // pred_check_branch
        %3977 = sbr.rel (%p3975) target = $region120
      $region119: #{tpu_custom_call.1} parent=5 // pred_region
        %s3978 = ssub.s32 %s32, 2
        // Predicated region
        $region121: #{tpu_custom_call.1} parent=119 // pred_check
          %p3979 = pneg %p549
        $region122: #{tpu_custom_call.1} parent=119 // pred_check_branch
          %3981 = sbr.rel (%p3979) target = $region124
        $region123: #{tpu_custom_call.1} parent=119 // pred_region
          %s3982 = sand.u32 %s534, 1
          %s3983 = scalar_lea.sflag [#allocation3], %s3982
          %s3984 = sand.u32 %s534, 1
          %s3985 = smul.addr %s3984, 32
          %s3986 = scalar_lea.vmem [#allocation2], %s3985
          %3988 = dma.done %s3983, 512
        $region124: #{tpu_custom_call.1} parent=119 // pred_fallthru
          _
      $region120: #{tpu_custom_call.1} parent=5 // pred_fallthru
        _
    $region6: #{tpu_custom_call.1} parent=1 // loop_footer
      %s36 = sadd.s32 1, %s32
    $region7: #{tpu_custom_call.1} parent=1 // loop_footer_branch
      %31 = sbr.rel target = $region3
    $region8: #{tpu_custom_call.1} parent=1 // loop_exit
      _
    %3989 = vsyncpa [#allocation3], 1
    %s3990 = scalar_lea.sflag [#allocation3], 1
    %3991 = vsyncpa %s3990, 1

</llo_original>
